<compile_context>
chip_gen: v7x
topology: tpu7x:2x2x1
jax: 0.10.0
libtpu: 0.0.40
codegen_flags: <defaults>
</compile_context>

<pallas_src>
import math
import functools

import jax
import jax.numpy as jnp
from jax.experimental import pallas as pl
from jax.experimental.pallas import tpu as pltpu


def _layer_norm(v, gamma, beta, eps=1e-5):
    # v: (S, D) f32; gamma/beta: (1, D).  Biased variance, like nn.LayerNorm.
    mean = jnp.mean(v, axis=-1, keepdims=True)
    var = jnp.mean((v - mean) ** 2, axis=-1, keepdims=True)
    return (v - mean) * jax.lax.rsqrt(var + eps) * gamma + beta


def decoder_layer_kernel(
    x_ref, enc_ref, tgt_mask_ref, src_mask_ref,
    wqkv_ref, bqkv_ref, wo1_ref, bo1_ref,
    wq2_ref, bq2_ref, wkv2_ref, bkv2_ref, wo2_ref, bo2_ref,
    w1_ref, b1_ref, w2_ref, b2_ref,
    g1_ref, be1_ref, g2_ref, be2_ref, g3_ref, be3_ref,
    out_ref,
    *, num_heads, d_k,
):
    f32 = jnp.float32
    bf16 = jnp.bfloat16
    H = num_heads
    D = H * d_k

    x = x_ref[0]              # (S, D) f32
    enc = enc_ref[0]          # (S_enc, D) f32
    tgt_m = tgt_mask_ref[0]   # (S, S)      0 => masked
    src_m = src_mask_ref[0]   # (1, S_enc)  key-padding mask, 0 => masked
    S = x.shape[0]
    S_enc = enc.shape[0]

    def attend(qh, kh, vh, mask2d, wo_h, bo):
        # qh: (H, Sq, d_k) f32 (Q already scaled by 1/sqrt(d_k) on the host),
        # kh/vh: (H, Sk, d_k) f32; mask2d: (mq, Sk) with mq in {1, Sq}.
        s = jnp.einsum("hqd,hkd->hqk", qh.astype(bf16), kh.astype(bf16),
                       preferred_element_type=f32)                 # (H, Sq, Sk)
        # masked_fill semantics; mask compare computed once, broadcast over heads
        s = jnp.where((mask2d == 0)[None, :, :], jnp.float32(-1e9), s)
        s = s - jnp.max(s, axis=-1, keepdims=True)
        p = jnp.exp(s)
        p = p * pl.reciprocal(jnp.sum(p, axis=-1, keepdims=True), approx=True)
        ctx = jnp.einsum("hqk,hkd->hqd", p.astype(bf16), vh.astype(bf16),
                         preferred_element_type=f32)               # (H, Sq, d_k)
        # Head recombine folded into the output projection:
        # sum_h ctx_h @ Wo_h  ==  concat_h(ctx_h) @ Wo
        out_h = jnp.einsum("hqd,hdf->hqf", ctx.astype(bf16), wo_h,
                           preferred_element_type=f32)             # (H, Sq, D)
        return jnp.sum(out_h, axis=0) + bo                         # (Sq, D)

    # --- Self attention: fused head-major QKV projection ------------------
    xb = jnp.broadcast_to(x.astype(bf16)[None], (H, S, D))
    qkv = jnp.einsum("hsd,hde->hse", xb, wqkv_ref[...],
                     preferred_element_type=f32) + bqkv_ref[...]   # (H, S, 3*d_k)
    q1 = qkv[..., 0 * d_k:1 * d_k]
    k1 = qkv[..., 1 * d_k:2 * d_k]
    v1 = qkv[..., 2 * d_k:3 * d_k]
    attn1 = attend(q1, k1, v1, tgt_m, wo1_ref[...], bo1_ref[...])
    h1 = _layer_norm(x + attn1, g1_ref[...], be1_ref[...])         # dropout = id

    # --- Cross attention: head-major Q and fused KV of encoder output -----
    h1b = jnp.broadcast_to(h1.astype(bf16)[None], (H, S, D))
    q2 = jnp.einsum("hsd,hdk->hsk", h1b, wq2_ref[...],
                    preferred_element_type=f32) + bq2_ref[...]     # (H, S, d_k)
    encb = jnp.broadcast_to(enc.astype(bf16)[None], (H, S_enc, D))
    kv2 = jnp.einsum("hsd,hde->hse", encb, wkv2_ref[...],
                     preferred_element_type=f32) + bkv2_ref[...]   # (H, S_enc, 2*d_k)
    k2 = kv2[..., :d_k]
    v2 = kv2[..., d_k:]
    attn2 = attend(q2, k2, v2, src_m, wo2_ref[...], bo2_ref[...])
    h2 = _layer_norm(h1 + attn2, g2_ref[...], be2_ref[...])

    # --- Position-wise feed-forward ----------------------------------------
    ff = jnp.dot(h2.astype(bf16), w1_ref[...],
                 preferred_element_type=f32) + b1_ref[...]
    ff = jnp.maximum(ff, 0.0)
    ff = jnp.dot(ff.astype(bf16), w2_ref[...],
                 preferred_element_type=f32) + b2_ref[...]

    out_ref[0] = _layer_norm(h2 + ff, g3_ref[...], be3_ref[...])


def _pack_params(p, num_heads):
    """Repack (in, out) Linear weights into the head-major bf16 kernel layout."""
    D = p["wq1"].shape[0]
    d_k = D // num_heads
    scale = jnp.float32(1.0 / math.sqrt(d_k))
    bf16 = jnp.bfloat16

    def heads_in(w):      # (D, D) -> (H, D, d_k)   w[d, h*d_k+j] -> [h, d, j]
        return jnp.transpose(w.reshape(D, num_heads, d_k), (1, 0, 2))

    def heads_bias(b):    # (1, D) -> (H, 1, d_k)
        return jnp.transpose(b.reshape(1, num_heads, d_k), (1, 0, 2))

    def heads_out(w):     # (D, D) -> (H, d_k, D)   w[h*d_k+j, f] -> [h, j, f]
        return w.reshape(num_heads, d_k, D)

    # Self-attention fused QKV (Q pre-scaled by 1/sqrt(d_k)).
    wqkv = jnp.concatenate([heads_in(p["wq1"]) * scale,
                            heads_in(p["wk1"]),
                            heads_in(p["wv1"])], axis=-1)          # (H, D, 3*d_k)
    bqkv = jnp.concatenate([heads_bias(p["bq1"]) * scale,
                            heads_bias(p["bk1"]),
                            heads_bias(p["bv1"])], axis=-1)        # (H, 1, 3*d_k)
    # Cross-attention fused KV.
    wkv2 = jnp.concatenate([heads_in(p["wk2"]), heads_in(p["wv2"])], axis=-1)
    bkv2 = jnp.concatenate([heads_bias(p["bk2"]), heads_bias(p["bv2"])], axis=-1)

    return {
        "wqkv": wqkv.astype(bf16), "bqkv": bqkv,
        "wo1": heads_out(p["wo1"]).astype(bf16), "bo1": p["bo1"],
        "wq2": (heads_in(p["wq2"]) * scale).astype(bf16),
        "bq2": heads_bias(p["bq2"]) * scale,
        "wkv2": wkv2.astype(bf16), "bkv2": bkv2,
        "wo2": heads_out(p["wo2"]).astype(bf16), "bo2": p["bo2"],
        "w1": p["w1"].astype(bf16), "b1": p["b1"],
        "w2": p["w2"].astype(bf16), "b2": p["b2"],
        "g1": p["g1"], "be1": p["be1"],
        "g2": p["g2"], "be2": p["be2"],
        "g3": p["g3"], "be3": p["be3"],
    }


def decoder_layer(x, enc_out, src_mask, tgt_mask, params, *, num_heads):
    B, S, D = x.shape
    _, S_enc, _ = enc_out.shape
    H = num_heads
    d_k = D // num_heads
    d_ff = params["w1"].shape[1]

    kp = _pack_params(params, num_heads)
    weight_names = ["wqkv", "bqkv", "wo1", "bo1", "wq2", "bq2", "wkv2", "bkv2",
                    "wo2", "bo2", "w1", "b1", "w2", "b2",
                    "g1", "be1", "g2", "be2", "g3", "be3"]
    weights = [kp[n] for n in weight_names]

    in_specs = [
        pl.BlockSpec((1, S, D), lambda b: (b, 0, 0)),         # x
        pl.BlockSpec((1, S_enc, D), lambda b: (b, 0, 0)),     # enc_output
        pl.BlockSpec((1, S, S), lambda b: (b, 0, 0)),         # tgt_mask
        pl.BlockSpec((1, 1, S_enc), lambda b: (b, 0, 0)),     # src_mask
    ] + [
        # Grid-invariant weights (full-array blocks).
        # TODO(synk): single-buffer (pl.Buffered(1)) or stream d_ff tiles of
        #             w1/w2 via pl.ANY + manual DMA at production sizes (v7x).
        pl.BlockSpec(w.shape, lambda b, _nd=w.ndim: (0,) * _nd) for w in weights
    ]

    # VMEM budget: double-buffered I/O blocks + weights, plus in-kernel
    # intermediates (head-major broadcasts, qkv/kv2 projections, scores/probs,
    # per-head output projection, FFN hidden, residual/LN temps).
    def nbytes(a):
        return int(a.size) * a.dtype.itemsize

    io_bytes = 4 * (S * D + S_enc * D + S * S + S_enc + S * D)
    weight_bytes = sum(nbytes(w) for w in weights)
    inter_bytes = 4 * (
        3 * H * S * D + H * S_enc * D            # bf16 broadcasts (counted as f32)
        + H * S * 3 * d_k + H * S_enc * 2 * d_k + H * S * d_k   # qkv / kv2 / q2
        + 2 * H * S * S + 2 * H * S * S_enc      # scores + probs (self / cross)
        + 4 * H * S * D                          # ctx + per-head out projection
        + 2 * S * d_ff                           # FFN hidden
        + 8 * S * D)                             # residuals / LN temporaries
    vmem_need = 2 * (io_bytes + weight_bytes) + inter_bytes + (4 << 20)
    try:
        vmem_cap = int(pltpu.get_tpu_info().vmem_capacity_bytes)
    except Exception:
        vmem_cap = 64 << 20                      # conservative (v7x per-TC)
    cap_budget = max(vmem_cap - (16 << 20), 32 << 20)
    vmem_limit = int(min(max(vmem_need, 32 << 20), cap_budget))

    kernel = functools.partial(decoder_layer_kernel, num_heads=num_heads, d_k=d_k)

    return pl.pallas_call(
        kernel,
        out_shape=jax.ShapeDtypeStruct((B, S, D), jnp.float32),
        grid=(B,),
        in_specs=in_specs,
        out_specs=pl.BlockSpec((1, S, D), lambda b: (b, 0, 0)),
        compiler_params=pltpu.CompilerParams(
            dimension_semantics=("parallel",),
            vmem_limit_bytes=vmem_limit,
        ),
    )(x, enc_out, tgt_mask, src_mask, *weights)


def _reference(x, enc_out, src_mask, tgt_mask, p, num_heads):
    """Plain-JAX f32 reference mirroring the PyTorch DecoderLayer (eval mode)."""
    D = x.shape[-1]
    d_k = D // num_heads

    def ln(v, g, b, eps=1e-5):
        mu = jnp.mean(v, axis=-1, keepdims=True)
        var = jnp.mean((v - mu) ** 2, axis=-1, keepdims=True)
        return (v - mu) / jnp.sqrt(var + eps) * g + b

    def split_heads(t):
        b, s, _ = t.shape
        return t.reshape(b, s, num_heads, d_k).transpose(0, 2, 1, 3)

    def mha(q_in, kv_in, mask, wq, bq, wk, bk, wv, bv, wo, bo):
        q = split_heads(q_in @ wq + bq)
        k = split_heads(kv_in @ wk + bk)
        v = split_heads(kv_in @ wv + bv)
        scores = jnp.einsum("bhqd,bhkd->bhqk", q, k) / math.sqrt(d_k)
        scores = jnp.where(mask[:, None, :, :] == 0, -1e9, scores)
        probs = jax.nn.softmax(scores, axis=-1)
        ctx = jnp.einsum("bhqk,bhkd->bhqd", probs, v)
        ctx = ctx.transpose(0, 2, 1, 3).reshape(q_in.shape[0], q_in.shape[1], D)
        return ctx @ wo + bo

    a1 = mha(x, x, tgt_mask, p["wq1"], p["bq1"], p["wk1"], p["bk1"],
             p["wv1"], p["bv1"], p["wo1"], p["bo1"])
    h1 = ln(x + a1, p["g1"], p["be1"])
    a2 = mha(h1, enc_out, src_mask, p["wq2"], p["bq2"], p["wk2"], p["bk2"],
             p["wv2"], p["bv2"], p["wo2"], p["bo2"])
    h2 = ln(h1 + a2, p["g2"], p["be2"])
    ff = jnp.maximum(h2 @ p["w1"] + p["b1"], 0.0) @ p["w2"] + p["b2"]
    return ln(h2 + ff, p["g3"], p["be3"])


def _init_params(key, d_model, d_ff):
    ks = jax.random.split(key, 20)
    s = 0.02

    def lin(k, fi, fo):
        return jax.random.normal(k, (fi, fo), jnp.float32) * s

    def bias(k, fo):
        return jax.random.normal(k, (1, fo), jnp.float32) * s

    ones = jnp.ones((1, d_model), jnp.float32)
    zeros = jnp.zeros((1, d_model), jnp.float32)
    return {
        "wq1": lin(ks[0], d_model, d_model),  "bq1": bias(ks[1], d_model),
        "wk1": lin(ks[2], d_model, d_model),  "bk1": bias(ks[3], d_model),
        "wv1": lin(ks[4], d_model, d_model),  "bv1": bias(ks[5], d_model),
        "wo1": lin(ks[6], d_model, d_model),  "bo1": bias(ks[7], d_model),
        "wq2": lin(ks[8], d_model, d_model),  "bq2": bias(ks[9], d_model),
        "wk2": lin(ks[10], d_model, d_model), "bk2": bias(ks[11], d_model),
        "wv2": lin(ks[12], d_model, d_model), "bv2": bias(ks[13], d_model),
        "wo2": lin(ks[14], d_model, d_model), "bo2": bias(ks[15], d_model),
        "w1": lin(ks[16], d_model, d_ff),     "b1": bias(ks[17], d_ff),
        "w2": lin(ks[18], d_ff, d_model),     "b2": bias(ks[19], d_model),
        "g1": ones, "be1": zeros, "g2": ones, "be2": zeros, "g3": ones, "be3": zeros,
    }


if __name__ == "__main__":
    B, S, S_ENC, D, H, FF = 2, 8, 8, 128, 4, 256   # lane-dense D and d_ff

    key = jax.random.PRNGKey(0)
    kx, ke, kp = jax.random.split(key, 3)
    x = jax.random.normal(kx, (B, S, D), jnp.float32)
    enc_out = jax.random.normal(ke, (B, S_ENC, D), jnp.float32)

    # tgt mask: causal * target key-padding (batch 1 has last position padded).
    causal = jnp.tril(jnp.ones((S, S), jnp.float32))
    tgt_valid = jnp.array([S, S - 1])
    tgt_key = (jnp.arange(S)[None, :] < tgt_valid[:, None]).astype(jnp.float32)
    tgt_mask = causal[None, :, :] * tgt_key[:, None, :]                 # (B, S, S)

    # src mask: encoder key-padding mask only, (B, 1, S_enc).
    src_valid = jnp.array([S_ENC, S_ENC - 2])
    src_mask = (jnp.arange(S_ENC)[None, :] <
                src_valid[:, None]).astype(jnp.float32)[:, None, :]     # (B, 1, S_enc)

    params = _init_params(kp, D, FF)

    out = decoder_layer(x, enc_out, src_mask, tgt_mask, params, num_heads=H)
    out = jax.block_until_ready(out)

    ref = _reference(x, enc_out, src_mask, tgt_mask, params, H)
    assert out.shape == (B, S, D)
    # Tolerance covers bf16 MXU operands + approximate (EUP) softmax reciprocal.
    assert jnp.allclose(out, ref, atol=3e-2, rtol=3e-2), "mismatch vs reference"

    print("KERNEL_OK")
</pallas_src>

<mosaic_0001>
module attributes {stable_mosaic.version = 11 : i64} {
  func.func @decoder_layer_kernel(%arg0: i32, %arg1: memref<1x8x128xf32, #tpu.memory_space<vmem>>, %arg2: memref<1x8x128xf32, #tpu.memory_space<vmem>>, %arg3: memref<1x8x8xf32, #tpu.memory_space<vmem>>, %arg4: memref<1x1x8xf32, #tpu.memory_space<vmem>>, %arg5: memref<4x128x96xbf16, #tpu.memory_space<vmem>>, %arg6: memref<4x1x96xf32, #tpu.memory_space<vmem>>, %arg7: memref<4x32x128xbf16, #tpu.memory_space<vmem>>, %arg8: memref<1x128xf32, #tpu.memory_space<vmem>>, %arg9: memref<4x128x32xbf16, #tpu.memory_space<vmem>>, %arg10: memref<4x1x32xf32, #tpu.memory_space<vmem>>, %arg11: memref<4x128x64xbf16, #tpu.memory_space<vmem>>, %arg12: memref<4x1x64xf32, #tpu.memory_space<vmem>>, %arg13: memref<4x32x128xbf16, #tpu.memory_space<vmem>>, %arg14: memref<1x128xf32, #tpu.memory_space<vmem>>, %arg15: memref<128x256xbf16, #tpu.memory_space<vmem>>, %arg16: memref<1x256xf32, #tpu.memory_space<vmem>>, %arg17: memref<256x128xbf16, #tpu.memory_space<vmem>>, %arg18: memref<1x128xf32, #tpu.memory_space<vmem>>, %arg19: memref<1x128xf32, #tpu.memory_space<vmem>>, %arg20: memref<1x128xf32, #tpu.memory_space<vmem>>, %arg21: memref<1x128xf32, #tpu.memory_space<vmem>>, %arg22: memref<1x128xf32, #tpu.memory_space<vmem>>, %arg23: memref<1x128xf32, #tpu.memory_space<vmem>>, %arg24: memref<1x128xf32, #tpu.memory_space<vmem>>, %arg25: memref<1x8x128xf32, #tpu.memory_space<vmem>>) attributes {dimension_semantics = [#tpu.dimension_semantics<parallel>], iteration_bounds = array<i64: 2>, scalar_prefetch = 0 : i64, scratch_operands = 0 : i64, tpu.core_type = #tpu.core_type<tc>, window_params = [{transform_indices = @transform_0, window_bounds = array<i64: 1, 8, 128>}, {transform_indices = @transform_1, window_bounds = array<i64: 1, 8, 128>}, {transform_indices = @transform_2, window_bounds = array<i64: 1, 8, 8>}, {transform_indices = @transform_3, window_bounds = array<i64: 1, 1, 8>}, {pipeline_mode = #tpu.pipeline_mode<synchronous>, transform_indices = @transform_4, window_bounds = array<i64: 4, 128, 96>}, {pipeline_mode = #tpu.pipeline_mode<synchronous>, transform_indices = @transform_5, window_bounds = array<i64: 4, 1, 96>}, {pipeline_mode = #tpu.pipeline_mode<synchronous>, transform_indices = @transform_6, window_bounds = array<i64: 4, 32, 128>}, {pipeline_mode = #tpu.pipeline_mode<synchronous>, transform_indices = @transform_7, window_bounds = array<i64: 1, 128>}, {pipeline_mode = #tpu.pipeline_mode<synchronous>, transform_indices = @transform_8, window_bounds = array<i64: 4, 128, 32>}, {pipeline_mode = #tpu.pipeline_mode<synchronous>, transform_indices = @transform_9, window_bounds = array<i64: 4, 1, 32>}, {pipeline_mode = #tpu.pipeline_mode<synchronous>, transform_indices = @transform_10, window_bounds = array<i64: 4, 128, 64>}, {pipeline_mode = #tpu.pipeline_mode<synchronous>, transform_indices = @transform_11, window_bounds = array<i64: 4, 1, 64>}, {pipeline_mode = #tpu.pipeline_mode<synchronous>, transform_indices = @transform_12, window_bounds = array<i64: 4, 32, 128>}, {pipeline_mode = #tpu.pipeline_mode<synchronous>, transform_indices = @transform_13, window_bounds = array<i64: 1, 128>}, {pipeline_mode = #tpu.pipeline_mode<synchronous>, transform_indices = @transform_14, window_bounds = array<i64: 128, 256>}, {pipeline_mode = #tpu.pipeline_mode<synchronous>, transform_indices = @transform_15, window_bounds = array<i64: 1, 256>}, {pipeline_mode = #tpu.pipeline_mode<synchronous>, transform_indices = @transform_16, window_bounds = array<i64: 256, 128>}, {pipeline_mode = #tpu.pipeline_mode<synchronous>, transform_indices = @transform_17, window_bounds = array<i64: 1, 128>}, {pipeline_mode = #tpu.pipeline_mode<synchronous>, transform_indices = @transform_18, window_bounds = array<i64: 1, 128>}, {pipeline_mode = #tpu.pipeline_mode<synchronous>, transform_indices = @transform_19, window_bounds = array<i64: 1, 128>}, {pipeline_mode = #tpu.pipeline_mode<synchronous>, transform_indices = @transform_20, window_bounds = array<i64: 1, 128>}, {pipeline_mode = #tpu.pipeline_mode<synchronous>, transform_indices = @transform_21, window_bounds = array<i64: 1, 128>}, {pipeline_mode = #tpu.pipeline_mode<synchronous>, transform_indices = @transform_22, window_bounds = array<i64: 1, 128>}, {pipeline_mode = #tpu.pipeline_mode<synchronous>, transform_indices = @transform_23, window_bounds = array<i64: 1, 128>}, {transform_indices = @transform_24, window_bounds = array<i64: 1, 8, 128>}]} {
    %c0 = arith.constant 0 : index
    %c0_0 = arith.constant 0 : index
    %c0_1 = arith.constant 0 : index
    %0 = vector.load %arg1[%c0, %c0_0, %c0_1] : memref<1x8x128xf32, #tpu.memory_space<vmem>>, vector<1x8x128xf32>
    %1 = vector.shape_cast %0 : vector<1x8x128xf32> to vector<8x128xf32>
    %c0_2 = arith.constant 0 : index
    %c0_3 = arith.constant 0 : index
    %c0_4 = arith.constant 0 : index
    %2 = vector.load %arg2[%c0_2, %c0_3, %c0_4] : memref<1x8x128xf32, #tpu.memory_space<vmem>>, vector<1x8x128xf32>
    %3 = vector.shape_cast %2 : vector<1x8x128xf32> to vector<8x128xf32>
    %c0_5 = arith.constant 0 : index
    %c0_6 = arith.constant 0 : index
    %c0_7 = arith.constant 0 : index
    %4 = vector.load %arg3[%c0_5, %c0_6, %c0_7] : memref<1x8x8xf32, #tpu.memory_space<vmem>>, vector<1x8x8xf32>
    %5 = vector.shape_cast %4 : vector<1x8x8xf32> to vector<8x8xf32>
    %c0_8 = arith.constant 0 : index
    %c0_9 = arith.constant 0 : index
    %c0_10 = arith.constant 0 : index
    %6 = vector.load %arg4[%c0_8, %c0_9, %c0_10] : memref<1x1x8xf32, #tpu.memory_space<vmem>>, vector<1x1x8xf32>
    %7 = vector.shape_cast %6 : vector<1x1x8xf32> to vector<1x8xf32>
    %8 = arith.truncf %1 : vector<8x128xf32> to vector<8x128xbf16>
    %9 = vector.shape_cast %8 : vector<8x128xbf16> to vector<1x8x128xbf16>
    %10 = vector.shape_cast %9 : vector<1x8x128xbf16> to vector<1x8x128xbf16>
    %11 = vector.broadcast %10 : vector<1x8x128xbf16> to vector<4x8x128xbf16>
    %c0_11 = arith.constant 0 : index
    %c0_12 = arith.constant 0 : index
    %c0_13 = arith.constant 0 : index
    %12 = vector.load %arg5[%c0_11, %c0_12, %c0_13] : memref<4x128x96xbf16, #tpu.memory_space<vmem>>, vector<4x128x96xbf16>
    "tpu.trace_start"() <{level = 10 : i32, message = "hsd,hde->hse"}> : () -> ()
    %cst = arith.constant dense<0.000000e+00> : vector<4x8x96xf32>
    %13 = tpu.matmul %11, %12, %cst {dimension_numbers = #tpu.dot_dimension_numbers<[2], [1], [1], [2], [0, 0, 0, 1, 1, 2], [0], [0]>} : vector<4x8x128xbf16>, vector<4x128x96xbf16>, vector<4x8x96xf32> -> vector<4x8x96xf32>
    "tpu.trace_stop"() : () -> ()
    %c0_14 = arith.constant 0 : index
    %c0_15 = arith.constant 0 : index
    %c0_16 = arith.constant 0 : index
    %14 = vector.load %arg6[%c0_14, %c0_15, %c0_16] : memref<4x1x96xf32, #tpu.memory_space<vmem>>, vector<4x1x96xf32>
    %15 = vector.broadcast %14 : vector<4x1x96xf32> to vector<4x8x96xf32>
    %16 = arith.addf %13, %15 : vector<4x8x96xf32>
    %17 = vector.extract_strided_slice %16 {offsets = [0, 0, 0], sizes = [4, 8, 32], strides = [1, 1, 1]} : vector<4x8x96xf32> to vector<4x8x32xf32>
    %18 = vector.extract_strided_slice %16 {offsets = [0, 0, 32], sizes = [4, 8, 32], strides = [1, 1, 1]} : vector<4x8x96xf32> to vector<4x8x32xf32>
    %19 = vector.extract_strided_slice %16 {offsets = [0, 0, 64], sizes = [4, 8, 32], strides = [1, 1, 1]} : vector<4x8x96xf32> to vector<4x8x32xf32>
    %c0_17 = arith.constant 0 : index
    %c0_18 = arith.constant 0 : index
    %c0_19 = arith.constant 0 : index
    %20 = vector.load %arg7[%c0_17, %c0_18, %c0_19] : memref<4x32x128xbf16, #tpu.memory_space<vmem>>, vector<4x32x128xbf16>
    %c0_20 = arith.constant 0 : index
    %c0_21 = arith.constant 0 : index
    %21 = vector.load %arg8[%c0_20, %c0_21] : memref<1x128xf32, #tpu.memory_space<vmem>>, vector<1x128xf32>
    %22 = arith.truncf %17 : vector<4x8x32xf32> to vector<4x8x32xbf16>
    %23 = arith.truncf %18 : vector<4x8x32xf32> to vector<4x8x32xbf16>
    "tpu.trace_start"() <{level = 10 : i32, message = "hqd,hkd->hqk"}> : () -> ()
    %cst_22 = arith.constant dense<0.000000e+00> : vector<4x8x8xf32>
    %24 = tpu.matmul %22, %23, %cst_22 {dimension_numbers = #tpu.dot_dimension_numbers<[2], [2], [1], [1], [0, 0, 0, 1, 1, 1], [0], [0]>} : vector<4x8x32xbf16>, vector<4x8x32xbf16>, vector<4x8x8xf32> -> vector<4x8x8xf32>
    %cst_23 = arith.constant 0.000000e+00 : f32
    "tpu.trace_stop"() : () -> ()
    %25 = vector.broadcast %cst_23 : f32 to vector<8x8xf32>
    %26 = arith.cmpf oeq, %5, %25 : vector<8x8xf32>
    %27 = vector.shape_cast %26 : vector<8x8xi1> to vector<1x8x8xi1>
    %cst_24 = arith.constant -1.000000e+09 : f32
    %28 = vector.shape_cast %27 : vector<1x8x8xi1> to vector<1x8x8xi1>
    %29 = vector.broadcast %28 : vector<1x8x8xi1> to vector<4x8x8xi1>
    %30 = vector.broadcast %cst_24 : f32 to vector<4x8x8xf32>
    %31 = arith.select %29, %30, %24 : vector<4x8x8xi1>, vector<4x8x8xf32>
    %cst_25 = arith.constant dense<0xFF800000> : vector<4x8xf32>
    %32 = vector.multi_reduction <maximumf>, %31, %cst_25 [2] : vector<4x8x8xf32> to vector<4x8xf32>
    %33 = vector.shape_cast %32 : vector<4x8xf32> to vector<4x8x1xf32>
    %34 = vector.broadcast %33 : vector<4x8x1xf32> to vector<4x8x8xf32>
    %35 = arith.subf %31, %34 : vector<4x8x8xf32>
    %36 = math.exp %35 : vector<4x8x8xf32>
    %cst_26 = arith.constant dense<0.000000e+00> : vector<4x8xf32>
    %37 = vector.multi_reduction <add>, %36, %cst_26 [2] : vector<4x8x8xf32> to vector<4x8xf32>
    %38 = vector.shape_cast %37 : vector<4x8xf32> to vector<4x8x1xf32>
    %39 = tpu.reciprocal %38 {approx = true} : vector<4x8x1xf32> -> vector<4x8x1xf32>
    %40 = vector.broadcast %39 : vector<4x8x1xf32> to vector<4x8x8xf32>
    %41 = arith.mulf %36, %40 : vector<4x8x8xf32>
    %42 = arith.truncf %41 : vector<4x8x8xf32> to vector<4x8x8xbf16>
    %43 = arith.truncf %19 : vector<4x8x32xf32> to vector<4x8x32xbf16>
    "tpu.trace_start"() <{level = 10 : i32, message = "hqk,hkd->hqd"}> : () -> ()
    %cst_27 = arith.constant dense<0.000000e+00> : vector<4x8x32xf32>
    %44 = tpu.matmul %42, %43, %cst_27 {dimension_numbers = #tpu.dot_dimension_numbers<[2], [1], [1], [2], [0, 0, 0, 1, 1, 2], [0], [0]>} : vector<4x8x8xbf16>, vector<4x8x32xbf16>, vector<4x8x32xf32> -> vector<4x8x32xf32>
    "tpu.trace_stop"() : () -> ()
    %45 = arith.truncf %44 : vector<4x8x32xf32> to vector<4x8x32xbf16>
    "tpu.trace_start"() <{level = 10 : i32, message = "hqd,hdf->hqf"}> : () -> ()
    %cst_28 = arith.constant dense<0.000000e+00> : vector<4x8x128xf32>
    %46 = tpu.matmul %45, %20, %cst_28 {dimension_numbers = #tpu.dot_dimension_numbers<[2], [1], [1], [2], [0, 0, 0, 1, 1, 2], [0], [0]>} : vector<4x8x32xbf16>, vector<4x32x128xbf16>, vector<4x8x128xf32> -> vector<4x8x128xf32>
    "tpu.trace_stop"() : () -> ()
    %cst_29 = arith.constant dense<0.000000e+00> : vector<8x128xf32>
    %47 = vector.multi_reduction <add>, %46, %cst_29 [0] : vector<4x8x128xf32> to vector<8x128xf32>
    %48 = vector.broadcast %21 : vector<1x128xf32> to vector<8x128xf32>
    %49 = arith.addf %47, %48 : vector<8x128xf32>
    %50 = arith.addf %1, %49 : vector<8x128xf32>
    %c0_30 = arith.constant 0 : index
    %c0_31 = arith.constant 0 : index
    %51 = vector.load %arg19[%c0_30, %c0_31] : memref<1x128xf32, #tpu.memory_space<vmem>>, vector<1x128xf32>
    %c0_32 = arith.constant 0 : index
    %c0_33 = arith.constant 0 : index
    %52 = vector.load %arg20[%c0_32, %c0_33] : memref<1x128xf32, #tpu.memory_space<vmem>>, vector<1x128xf32>
    %cst_34 = arith.constant dense<0.000000e+00> : vector<8xf32>
    %53 = vector.multi_reduction <add>, %50, %cst_34 [1] : vector<8x128xf32> to vector<8xf32>
    %54 = vector.shape_cast %53 : vector<8xf32> to vector<8x1xf32>
    %cst_35 = arith.constant 1.280000e+02 : f32
    %55 = vector.broadcast %cst_35 : f32 to vector<8x1xf32>
    %56 = arith.divf %54, %55 : vector<8x1xf32>
    %57 = vector.broadcast %56 : vector<8x1xf32> to vector<8x128xf32>
    %58 = arith.subf %50, %57 : vector<8x128xf32>
    %59 = arith.mulf %58, %58 : vector<8x128xf32>
    %cst_36 = arith.constant dense<0.000000e+00> : vector<8xf32>
    %60 = vector.multi_reduction <add>, %59, %cst_36 [1] : vector<8x128xf32> to vector<8xf32>
    %61 = vector.shape_cast %60 : vector<8xf32> to vector<8x1xf32>
    %cst_37 = arith.constant 1.280000e+02 : f32
    %62 = vector.broadcast %cst_37 : f32 to vector<8x1xf32>
    %63 = arith.divf %61, %62 : vector<8x1xf32>
    %64 = vector.broadcast %56 : vector<8x1xf32> to vector<8x128xf32>
    %65 = arith.subf %50, %64 : vector<8x128xf32>
    %cst_38 = arith.constant 9.99999974E-6 : f32
    %66 = vector.broadcast %cst_38 : f32 to vector<8x1xf32>
    %67 = arith.addf %63, %66 : vector<8x1xf32>
    %68 = math.rsqrt %67 : vector<8x1xf32>
    %69 = vector.broadcast %68 : vector<8x1xf32> to vector<8x128xf32>
    %70 = arith.mulf %65, %69 : vector<8x128xf32>
    %71 = vector.broadcast %51 : vector<1x128xf32> to vector<8x128xf32>
    %72 = arith.mulf %70, %71 : vector<8x128xf32>
    %73 = vector.broadcast %52 : vector<1x128xf32> to vector<8x128xf32>
    %74 = arith.addf %72, %73 : vector<8x128xf32>
    %75 = arith.truncf %74 : vector<8x128xf32> to vector<8x128xbf16>
    %76 = vector.shape_cast %75 : vector<8x128xbf16> to vector<1x8x128xbf16>
    %77 = vector.shape_cast %76 : vector<1x8x128xbf16> to vector<1x8x128xbf16>
    %78 = vector.broadcast %77 : vector<1x8x128xbf16> to vector<4x8x128xbf16>
    %c0_39 = arith.constant 0 : index
    %c0_40 = arith.constant 0 : index
    %c0_41 = arith.constant 0 : index
    %79 = vector.load %arg9[%c0_39, %c0_40, %c0_41] : memref<4x128x32xbf16, #tpu.memory_space<vmem>>, vector<4x128x32xbf16>
    "tpu.trace_start"() <{level = 10 : i32, message = "hsd,hdk->hsk"}> : () -> ()
    %cst_42 = arith.constant dense<0.000000e+00> : vector<4x8x32xf32>
    %80 = tpu.matmul %78, %79, %cst_42 {dimension_numbers = #tpu.dot_dimension_numbers<[2], [1], [1], [2], [0, 0, 0, 1, 1, 2], [0], [0]>} : vector<4x8x128xbf16>, vector<4x128x32xbf16>, vector<4x8x32xf32> -> vector<4x8x32xf32>
    "tpu.trace_stop"() : () -> ()
    %c0_43 = arith.constant 0 : index
    %c0_44 = arith.constant 0 : index
    %c0_45 = arith.constant 0 : index
    %81 = vector.load %arg10[%c0_43, %c0_44, %c0_45] : memref<4x1x32xf32, #tpu.memory_space<vmem>>, vector<4x1x32xf32>
    %82 = vector.broadcast %81 : vector<4x1x32xf32> to vector<4x8x32xf32>
    %83 = arith.addf %80, %82 : vector<4x8x32xf32>
    %84 = arith.truncf %3 : vector<8x128xf32> to vector<8x128xbf16>
    %85 = vector.shape_cast %84 : vector<8x128xbf16> to vector<1x8x128xbf16>
    %86 = vector.shape_cast %85 : vector<1x8x128xbf16> to vector<1x8x128xbf16>
    %87 = vector.broadcast %86 : vector<1x8x128xbf16> to vector<4x8x128xbf16>
    %c0_46 = arith.constant 0 : index
    %c0_47 = arith.constant 0 : index
    %c0_48 = arith.constant 0 : index
    %88 = vector.load %arg11[%c0_46, %c0_47, %c0_48] : memref<4x128x64xbf16, #tpu.memory_space<vmem>>, vector<4x128x64xbf16>
    "tpu.trace_start"() <{level = 10 : i32, message = "hsd,hde->hse"}> : () -> ()
    %cst_49 = arith.constant dense<0.000000e+00> : vector<4x8x64xf32>
    %89 = tpu.matmul %87, %88, %cst_49 {dimension_numbers = #tpu.dot_dimension_numbers<[2], [1], [1], [2], [0, 0, 0, 1, 1, 2], [0], [0]>} : vector<4x8x128xbf16>, vector<4x128x64xbf16>, vector<4x8x64xf32> -> vector<4x8x64xf32>
    "tpu.trace_stop"() : () -> ()
    %c0_50 = arith.constant 0 : index
    %c0_51 = arith.constant 0 : index
    %c0_52 = arith.constant 0 : index
    %90 = vector.load %arg12[%c0_50, %c0_51, %c0_52] : memref<4x1x64xf32, #tpu.memory_space<vmem>>, vector<4x1x64xf32>
    %91 = vector.broadcast %90 : vector<4x1x64xf32> to vector<4x8x64xf32>
    %92 = arith.addf %89, %91 : vector<4x8x64xf32>
    %93 = vector.extract_strided_slice %92 {offsets = [0, 0, 0], sizes = [4, 8, 32], strides = [1, 1, 1]} : vector<4x8x64xf32> to vector<4x8x32xf32>
    %94 = vector.extract_strided_slice %92 {offsets = [0, 0, 32], sizes = [4, 8, 32], strides = [1, 1, 1]} : vector<4x8x64xf32> to vector<4x8x32xf32>
    %c0_53 = arith.constant 0 : index
    %c0_54 = arith.constant 0 : index
    %c0_55 = arith.constant 0 : index
    %95 = vector.load %arg13[%c0_53, %c0_54, %c0_55] : memref<4x32x128xbf16, #tpu.memory_space<vmem>>, vector<4x32x128xbf16>
    %c0_56 = arith.constant 0 : index
    %c0_57 = arith.constant 0 : index
    %96 = vector.load %arg14[%c0_56, %c0_57] : memref<1x128xf32, #tpu.memory_space<vmem>>, vector<1x128xf32>
    %97 = arith.truncf %83 : vector<4x8x32xf32> to vector<4x8x32xbf16>
    %98 = arith.truncf %93 : vector<4x8x32xf32> to vector<4x8x32xbf16>
    "tpu.trace_start"() <{level = 10 : i32, message = "hqd,hkd->hqk"}> : () -> ()
    %cst_58 = arith.constant dense<0.000000e+00> : vector<4x8x8xf32>
    %99 = tpu.matmul %97, %98, %cst_58 {dimension_numbers = #tpu.dot_dimension_numbers<[2], [2], [1], [1], [0, 0, 0, 1, 1, 1], [0], [0]>} : vector<4x8x32xbf16>, vector<4x8x32xbf16>, vector<4x8x8xf32> -> vector<4x8x8xf32>
    %cst_59 = arith.constant 0.000000e+00 : f32
    "tpu.trace_stop"() : () -> ()
    %100 = vector.broadcast %cst_59 : f32 to vector<1x8xf32>
    %101 = arith.cmpf oeq, %7, %100 : vector<1x8xf32>
    %102 = vector.shape_cast %101 : vector<1x8xi1> to vector<1x1x8xi1>
    %cst_60 = arith.constant -1.000000e+09 : f32
    %103 = vector.shape_cast %102 : vector<1x1x8xi1> to vector<1x1x8xi1>
    %104 = vector.broadcast %103 : vector<1x1x8xi1> to vector<4x8x8xi1>
    %105 = vector.broadcast %cst_60 : f32 to vector<4x8x8xf32>
    %106 = arith.select %104, %105, %99 : vector<4x8x8xi1>, vector<4x8x8xf32>
    %cst_61 = arith.constant dense<0xFF800000> : vector<4x8xf32>
    %107 = vector.multi_reduction <maximumf>, %106, %cst_61 [2] : vector<4x8x8xf32> to vector<4x8xf32>
    %108 = vector.shape_cast %107 : vector<4x8xf32> to vector<4x8x1xf32>
    %109 = vector.broadcast %108 : vector<4x8x1xf32> to vector<4x8x8xf32>
    %110 = arith.subf %106, %109 : vector<4x8x8xf32>
    %111 = math.exp %110 : vector<4x8x8xf32>
    %cst_62 = arith.constant dense<0.000000e+00> : vector<4x8xf32>
    %112 = vector.multi_reduction <add>, %111, %cst_62 [2] : vector<4x8x8xf32> to vector<4x8xf32>
    %113 = vector.shape_cast %112 : vector<4x8xf32> to vector<4x8x1xf32>
    %114 = tpu.reciprocal %113 {approx = true} : vector<4x8x1xf32> -> vector<4x8x1xf32>
    %115 = vector.broadcast %114 : vector<4x8x1xf32> to vector<4x8x8xf32>
    %116 = arith.mulf %111, %115 : vector<4x8x8xf32>
    %117 = arith.truncf %116 : vector<4x8x8xf32> to vector<4x8x8xbf16>
    %118 = arith.truncf %94 : vector<4x8x32xf32> to vector<4x8x32xbf16>
    "tpu.trace_start"() <{level = 10 : i32, message = "hqk,hkd->hqd"}> : () -> ()
    %cst_63 = arith.constant dense<0.000000e+00> : vector<4x8x32xf32>
    %119 = tpu.matmul %117, %118, %cst_63 {dimension_numbers = #tpu.dot_dimension_numbers<[2], [1], [1], [2], [0, 0, 0, 1, 1, 2], [0], [0]>} : vector<4x8x8xbf16>, vector<4x8x32xbf16>, vector<4x8x32xf32> -> vector<4x8x32xf32>
    "tpu.trace_stop"() : () -> ()
    %120 = arith.truncf %119 : vector<4x8x32xf32> to vector<4x8x32xbf16>
    "tpu.trace_start"() <{level = 10 : i32, message = "hqd,hdf->hqf"}> : () -> ()
    %cst_64 = arith.constant dense<0.000000e+00> : vector<4x8x128xf32>
    %121 = tpu.matmul %120, %95, %cst_64 {dimension_numbers = #tpu.dot_dimension_numbers<[2], [1], [1], [2], [0, 0, 0, 1, 1, 2], [0], [0]>} : vector<4x8x32xbf16>, vector<4x32x128xbf16>, vector<4x8x128xf32> -> vector<4x8x128xf32>
    "tpu.trace_stop"() : () -> ()
    %cst_65 = arith.constant dense<0.000000e+00> : vector<8x128xf32>
    %122 = vector.multi_reduction <add>, %121, %cst_65 [0] : vector<4x8x128xf32> to vector<8x128xf32>
    %123 = vector.broadcast %96 : vector<1x128xf32> to vector<8x128xf32>
    %124 = arith.addf %122, %123 : vector<8x128xf32>
    %125 = arith.addf %74, %124 : vector<8x128xf32>
    %c0_66 = arith.constant 0 : index
    %c0_67 = arith.constant 0 : index
    %126 = vector.load %arg21[%c0_66, %c0_67] : memref<1x128xf32, #tpu.memory_space<vmem>>, vector<1x128xf32>
    %c0_68 = arith.constant 0 : index
    %c0_69 = arith.constant 0 : index
    %127 = vector.load %arg22[%c0_68, %c0_69] : memref<1x128xf32, #tpu.memory_space<vmem>>, vector<1x128xf32>
    %cst_70 = arith.constant dense<0.000000e+00> : vector<8xf32>
    %128 = vector.multi_reduction <add>, %125, %cst_70 [1] : vector<8x128xf32> to vector<8xf32>
    %129 = vector.shape_cast %128 : vector<8xf32> to vector<8x1xf32>
    %cst_71 = arith.constant 1.280000e+02 : f32
    %130 = vector.broadcast %cst_71 : f32 to vector<8x1xf32>
    %131 = arith.divf %129, %130 : vector<8x1xf32>
    %132 = vector.broadcast %131 : vector<8x1xf32> to vector<8x128xf32>
    %133 = arith.subf %125, %132 : vector<8x128xf32>
    %134 = arith.mulf %133, %133 : vector<8x128xf32>
    %cst_72 = arith.constant dense<0.000000e+00> : vector<8xf32>
    %135 = vector.multi_reduction <add>, %134, %cst_72 [1] : vector<8x128xf32> to vector<8xf32>
    %136 = vector.shape_cast %135 : vector<8xf32> to vector<8x1xf32>
    %cst_73 = arith.constant 1.280000e+02 : f32
    %137 = vector.broadcast %cst_73 : f32 to vector<8x1xf32>
    %138 = arith.divf %136, %137 : vector<8x1xf32>
    %139 = vector.broadcast %131 : vector<8x1xf32> to vector<8x128xf32>
    %140 = arith.subf %125, %139 : vector<8x128xf32>
    %cst_74 = arith.constant 9.99999974E-6 : f32
    %141 = vector.broadcast %cst_74 : f32 to vector<8x1xf32>
    %142 = arith.addf %138, %141 : vector<8x1xf32>
    %143 = math.rsqrt %142 : vector<8x1xf32>
    %144 = vector.broadcast %143 : vector<8x1xf32> to vector<8x128xf32>
    %145 = arith.mulf %140, %144 : vector<8x128xf32>
    %146 = vector.broadcast %126 : vector<1x128xf32> to vector<8x128xf32>
    %147 = arith.mulf %145, %146 : vector<8x128xf32>
    %148 = vector.broadcast %127 : vector<1x128xf32> to vector<8x128xf32>
    %149 = arith.addf %147, %148 : vector<8x128xf32>
    %150 = arith.truncf %149 : vector<8x128xf32> to vector<8x128xbf16>
    %c0_75 = arith.constant 0 : index
    %c0_76 = arith.constant 0 : index
    %151 = vector.load %arg15[%c0_75, %c0_76] : memref<128x256xbf16, #tpu.memory_space<vmem>>, vector<128x256xbf16>
    %cst_77 = arith.constant dense<0.000000e+00> : vector<8x256xf32>
    %152 = tpu.matmul %150, %151, %cst_77 {dimension_numbers = #tpu.dot_dimension_numbers<[1], [0], [0], [1], [0, 0, 1, 1], [], []>} : vector<8x128xbf16>, vector<128x256xbf16>, vector<8x256xf32> -> vector<8x256xf32>
    %c0_78 = arith.constant 0 : index
    %c0_79 = arith.constant 0 : index
    %153 = vector.load %arg16[%c0_78, %c0_79] : memref<1x256xf32, #tpu.memory_space<vmem>>, vector<1x256xf32>
    %154 = vector.broadcast %153 : vector<1x256xf32> to vector<8x256xf32>
    %155 = arith.addf %152, %154 : vector<8x256xf32>
    %cst_80 = arith.constant 0.000000e+00 : f32
    %156 = vector.broadcast %cst_80 : f32 to vector<8x256xf32>
    %157 = arith.maximumf %155, %156 : vector<8x256xf32>
    %158 = arith.truncf %157 : vector<8x256xf32> to vector<8x256xbf16>
    %c0_81 = arith.constant 0 : index
    %c0_82 = arith.constant 0 : index
    %159 = vector.load %arg17[%c0_81, %c0_82] : memref<256x128xbf16, #tpu.memory_space<vmem>>, vector<256x128xbf16>
    %cst_83 = arith.constant dense<0.000000e+00> : vector<8x128xf32>
    %160 = tpu.matmul %158, %159, %cst_83 {dimension_numbers = #tpu.dot_dimension_numbers<[1], [0], [0], [1], [0, 0, 1, 1], [], []>} : vector<8x256xbf16>, vector<256x128xbf16>, vector<8x128xf32> -> vector<8x128xf32>
    %c0_84 = arith.constant 0 : index
    %c0_85 = arith.constant 0 : index
    %161 = vector.load %arg18[%c0_84, %c0_85] : memref<1x128xf32, #tpu.memory_space<vmem>>, vector<1x128xf32>
    %162 = vector.broadcast %161 : vector<1x128xf32> to vector<8x128xf32>
    %163 = arith.addf %160, %162 : vector<8x128xf32>
    %164 = arith.addf %149, %163 : vector<8x128xf32>
    %c0_86 = arith.constant 0 : index
    %c0_87 = arith.constant 0 : index
    %165 = vector.load %arg23[%c0_86, %c0_87] : memref<1x128xf32, #tpu.memory_space<vmem>>, vector<1x128xf32>
    %c0_88 = arith.constant 0 : index
    %c0_89 = arith.constant 0 : index
    %166 = vector.load %arg24[%c0_88, %c0_89] : memref<1x128xf32, #tpu.memory_space<vmem>>, vector<1x128xf32>
    %cst_90 = arith.constant dense<0.000000e+00> : vector<8xf32>
    %167 = vector.multi_reduction <add>, %164, %cst_90 [1] : vector<8x128xf32> to vector<8xf32>
    %168 = vector.shape_cast %167 : vector<8xf32> to vector<8x1xf32>
    %cst_91 = arith.constant 1.280000e+02 : f32
    %169 = vector.broadcast %cst_91 : f32 to vector<8x1xf32>
    %170 = arith.divf %168, %169 : vector<8x1xf32>
    %171 = vector.broadcast %170 : vector<8x1xf32> to vector<8x128xf32>
    %172 = arith.subf %164, %171 : vector<8x128xf32>
    %173 = arith.mulf %172, %172 : vector<8x128xf32>
    %cst_92 = arith.constant dense<0.000000e+00> : vector<8xf32>
    %174 = vector.multi_reduction <add>, %173, %cst_92 [1] : vector<8x128xf32> to vector<8xf32>
    %175 = vector.shape_cast %174 : vector<8xf32> to vector<8x1xf32>
    %cst_93 = arith.constant 1.280000e+02 : f32
    %176 = vector.broadcast %cst_93 : f32 to vector<8x1xf32>
    %177 = arith.divf %175, %176 : vector<8x1xf32>
    %178 = vector.broadcast %170 : vector<8x1xf32> to vector<8x128xf32>
    %179 = arith.subf %164, %178 : vector<8x128xf32>
    %cst_94 = arith.constant 9.99999974E-6 : f32
    %180 = vector.broadcast %cst_94 : f32 to vector<8x1xf32>
    %181 = arith.addf %177, %180 : vector<8x1xf32>
    %182 = math.rsqrt %181 : vector<8x1xf32>
    %183 = vector.broadcast %182 : vector<8x1xf32> to vector<8x128xf32>
    %184 = arith.mulf %179, %183 : vector<8x128xf32>
    %185 = vector.broadcast %165 : vector<1x128xf32> to vector<8x128xf32>
    %186 = arith.mulf %184, %185 : vector<8x128xf32>
    %187 = vector.broadcast %166 : vector<1x128xf32> to vector<8x128xf32>
    %188 = arith.addf %186, %187 : vector<8x128xf32>
    %c0_95 = arith.constant 0 : index
    %c0_96 = arith.constant 0 : index
    %c0_97 = arith.constant 0 : index
    %189 = vector.load %arg25[%c0_95, %c0_96, %c0_97] : memref<1x8x128xf32, #tpu.memory_space<vmem>>, vector<1x8x128xf32>
    %190 = vector.shape_cast %189 : vector<1x8x128xf32> to vector<8x128xf32>
    %191 = vector.shape_cast %188 : vector<8x128xf32> to vector<1x8x128xf32>
    tpu.vector_store %arg25[%c0_95, %c0_96, %c0_97], %191 {strides = array<i32>} : memref<1x8x128xf32, #tpu.memory_space<vmem>>, vector<1x8x128xf32>,
    return
  }
  func.func @transform_0(%arg0: i32) -> (i32, i32, i32) {
    %c0_i32 = arith.constant 0 : i32
    %c0_i32_0 = arith.constant 0 : i32
    %c0_i32_1 = arith.constant 0 : i32
    return %arg0, %c0_i32, %c0_i32_0 : i32, i32, i32
  }
  func.func @transform_1(%arg0: i32) -> (i32, i32, i32) {
    %c0_i32 = arith.constant 0 : i32
    %c0_i32_0 = arith.constant 0 : i32
    %c0_i32_1 = arith.constant 0 : i32
    return %arg0, %c0_i32, %c0_i32_0 : i32, i32, i32
  }
  func.func @transform_2(%arg0: i32) -> (i32, i32, i32) {
    %c0_i32 = arith.constant 0 : i32
    %c0_i32_0 = arith.constant 0 : i32
    %c0_i32_1 = arith.constant 0 : i32
    return %arg0, %c0_i32, %c0_i32_0 : i32, i32, i32
  }
  func.func @transform_3(%arg0: i32) -> (i32, i32, i32) {
    %c0_i32 = arith.constant 0 : i32
    %c0_i32_0 = arith.constant 0 : i32
    %c0_i32_1 = arith.constant 0 : i32
    return %arg0, %c0_i32, %c0_i32_0 : i32, i32, i32
  }
  func.func @transform_4(%arg0: i32) -> (i32, i32, i32) {
    %c0_i32 = arith.constant 0 : i32
    %c0_i32_0 = arith.constant 0 : i32
    %c0_i32_1 = arith.constant 0 : i32
    %c0_i32_2 = arith.constant 0 : i32
    return %c0_i32, %c0_i32_0, %c0_i32_1 : i32, i32, i32
  }
  func.func @transform_5(%arg0: i32) -> (i32, i32, i32) {
    %c0_i32 = arith.constant 0 : i32
    %c0_i32_0 = arith.constant 0 : i32
    %c0_i32_1 = arith.constant 0 : i32
    %c0_i32_2 = arith.constant 0 : i32
    return %c0_i32, %c0_i32_0, %c0_i32_1 : i32, i32, i32
  }
  func.func @transform_6(%arg0: i32) -> (i32, i32, i32) {
    %c0_i32 = arith.constant 0 : i32
    %c0_i32_0 = arith.constant 0 : i32
    %c0_i32_1 = arith.constant 0 : i32
    %c0_i32_2 = arith.constant 0 : i32
    return %c0_i32, %c0_i32_0, %c0_i32_1 : i32, i32, i32
  }
  func.func @transform_7(%arg0: i32) -> (i32, i32) {
    %c0_i32 = arith.constant 0 : i32
    %c0_i32_0 = arith.constant 0 : i32
    %c0_i32_1 = arith.constant 0 : i32
    return %c0_i32, %c0_i32_0 : i32, i32
  }
  func.func @transform_8(%arg0: i32) -> (i32, i32, i32) {
    %c0_i32 = arith.constant 0 : i32
    %c0_i32_0 = arith.constant 0 : i32
    %c0_i32_1 = arith.constant 0 : i32
    %c0_i32_2 = arith.constant 0 : i32
    return %c0_i32, %c0_i32_0, %c0_i32_1 : i32, i32, i32
  }
  func.func @transform_9(%arg0: i32) -> (i32, i32, i32) {
    %c0_i32 = arith.constant 0 : i32
    %c0_i32_0 = arith.constant 0 : i32
    %c0_i32_1 = arith.constant 0 : i32
    %c0_i32_2 = arith.constant 0 : i32
    return %c0_i32, %c0_i32_0, %c0_i32_1 : i32, i32, i32
  }
  func.func @transform_10(%arg0: i32) -> (i32, i32, i32) {
    %c0_i32 = arith.constant 0 : i32
    %c0_i32_0 = arith.constant 0 : i32
    %c0_i32_1 = arith.constant 0 : i32
    %c0_i32_2 = arith.constant 0 : i32
    return %c0_i32, %c0_i32_0, %c0_i32_1 : i32, i32, i32
  }
  func.func @transform_11(%arg0: i32) -> (i32, i32, i32) {
    %c0_i32 = arith.constant 0 : i32
    %c0_i32_0 = arith.constant 0 : i32
    %c0_i32_1 = arith.constant 0 : i32
    %c0_i32_2 = arith.constant 0 : i32
    return %c0_i32, %c0_i32_0, %c0_i32_1 : i32, i32, i32
  }
  func.func @transform_12(%arg0: i32) -> (i32, i32, i32) {
    %c0_i32 = arith.constant 0 : i32
    %c0_i32_0 = arith.constant 0 : i32
    %c0_i32_1 = arith.constant 0 : i32
    %c0_i32_2 = arith.constant 0 : i32
    return %c0_i32, %c0_i32_0, %c0_i32_1 : i32, i32, i32
  }
  func.func @transform_13(%arg0: i32) -> (i32, i32) {
    %c0_i32 = arith.constant 0 : i32
    %c0_i32_0 = arith.constant 0 : i32
    %c0_i32_1 = arith.constant 0 : i32
    return %c0_i32, %c0_i32_0 : i32, i32
  }
  func.func @transform_14(%arg0: i32) -> (i32, i32) {
    %c0_i32 = arith.constant 0 : i32
    %c0_i32_0 = arith.constant 0 : i32
    %c0_i32_1 = arith.constant 0 : i32
    return %c0_i32, %c0_i32_0 : i32, i32
  }
  func.func @transform_15(%arg0: i32) -> (i32, i32) {
    %c0_i32 = arith.constant 0 : i32
    %c0_i32_0 = arith.constant 0 : i32
    %c0_i32_1 = arith.constant 0 : i32
    return %c0_i32, %c0_i32_0 : i32, i32
  }
  func.func @transform_16(%arg0: i32) -> (i32, i32) {
    %c0_i32 = arith.constant 0 : i32
    %c0_i32_0 = arith.constant 0 : i32
    %c0_i32_1 = arith.constant 0 : i32
    return %c0_i32, %c0_i32_0 : i32, i32
  }
  func.func @transform_17(%arg0: i32) -> (i32, i32) {
    %c0_i32 = arith.constant 0 : i32
    %c0_i32_0 = arith.constant 0 : i32
    %c0_i32_1 = arith.constant 0 : i32
    return %c0_i32, %c0_i32_0 : i32, i32
  }
  func.func @transform_18(%arg0: i32) -> (i32, i32) {
    %c0_i32 = arith.constant 0 : i32
    %c0_i32_0 = arith.constant 0 : i32
    %c0_i32_1 = arith.constant 0 : i32
    return %c0_i32, %c0_i32_0 : i32, i32
  }
  func.func @transform_19(%arg0: i32) -> (i32, i32) {
    %c0_i32 = arith.constant 0 : i32
    %c0_i32_0 = arith.constant 0 : i32
    %c0_i32_1 = arith.constant 0 : i32
    return %c0_i32, %c0_i32_0 : i32, i32
  }
  func.func @transform_20(%arg0: i32) -> (i32, i32) {
    %c0_i32 = arith.constant 0 : i32
    %c0_i32_0 = arith.constant 0 : i32
    %c0_i32_1 = arith.constant 0 : i32
    return %c0_i32, %c0_i32_0 : i32, i32
  }
  func.func @transform_21(%arg0: i32) -> (i32, i32) {
    %c0_i32 = arith.constant 0 : i32
    %c0_i32_0 = arith.constant 0 : i32
    %c0_i32_1 = arith.constant 0 : i32
    return %c0_i32, %c0_i32_0 : i32, i32
  }
  func.func @transform_22(%arg0: i32) -> (i32, i32) {
    %c0_i32 = arith.constant 0 : i32
    %c0_i32_0 = arith.constant 0 : i32
    %c0_i32_1 = arith.constant 0 : i32
    return %c0_i32, %c0_i32_0 : i32, i32
  }
  func.func @transform_23(%arg0: i32) -> (i32, i32) {
    %c0_i32 = arith.constant 0 : i32
    %c0_i32_0 = arith.constant 0 : i32
    %c0_i32_1 = arith.constant 0 : i32
    return %c0_i32, %c0_i32_0 : i32, i32
  }
  func.func @transform_24(%arg0: i32) -> (i32, i32, i32) {
    %c0_i32 = arith.constant 0 : i32
    %c0_i32_0 = arith.constant 0 : i32
    %c0_i32_1 = arith.constant 0 : i32
    return %arg0, %c0_i32, %c0_i32_0 : i32, i32, i32
  }
}

</mosaic_0001>

<llo_original>
// kernel: tpu_custom_call.1
$region0: #{tpu_custom_call.1}
  #allocation0 [shape = 'u32[]', space=smem, size = 0x4, offset = 0x4, fixed_abs, tag = 'smem constant byte address 0x4 - core index']
  #allocation1 [shape = 'u32[144,128]{1,0:T(1,128)}', space=vmem, size = 0x12000, scoped, tag = 'internal scratch']
  %s0 = inlined_call_operand.vmem [shape: f32[2,8,128], index: 0, kind: input, shape index: {}]
  %s1 = inlined_call_operand.vmem [shape: f32[2,8,128], index: 1, kind: input, shape index: {}]
  %s2 = inlined_call_operand.vmem [shape: f32[2,8,8], index: 2, kind: input, shape index: {}]
  %s3 = inlined_call_operand.vmem [shape: f32[2,1,8], index: 3, kind: input, shape index: {}]
  %s4 = inlined_call_operand.vmem [shape: bf16[4,128,96], index: 4, kind: input, shape index: {}]
  %s5 = inlined_call_operand.vmem [shape: f32[4,1,96], index: 5, kind: input, shape index: {}]
  %s6 = inlined_call_operand.vmem [shape: bf16[4,32,128], index: 6, kind: input, shape index: {}]
  %s7 = inlined_call_operand.vmem [shape: f32[1,128], index: 7, kind: input, shape index: {}]
  %s8 = inlined_call_operand.vmem [shape: bf16[4,128,32], index: 8, kind: input, shape index: {}]
  %s9 = inlined_call_operand.vmem [shape: f32[4,1,32], index: 9, kind: input, shape index: {}]
  %s10 = inlined_call_operand.vmem [shape: bf16[4,128,64], index: 10, kind: input, shape index: {}]
  %s11 = inlined_call_operand.vmem [shape: f32[4,1,64], index: 11, kind: input, shape index: {}]
  %s12 = inlined_call_operand.vmem [shape: bf16[4,32,128], index: 12, kind: input, shape index: {}]
  %s13 = inlined_call_operand.vmem [shape: f32[1,128], index: 13, kind: input, shape index: {}]
  %s14 = inlined_call_operand.vmem [shape: bf16[128,256], index: 14, kind: input, shape index: {}]
  %s15 = inlined_call_operand.vmem [shape: f32[1,256], index: 15, kind: input, shape index: {}]
  %s16 = inlined_call_operand.vmem [shape: bf16[256,128], index: 16, kind: input, shape index: {}]
  %s17 = inlined_call_operand.vmem [shape: f32[1,128], index: 17, kind: input, shape index: {}]
  %s18 = inlined_call_operand.vmem [shape: f32[1,128], index: 18, kind: input, shape index: {}]
  %s19 = inlined_call_operand.vmem [shape: f32[1,128], index: 19, kind: input, shape index: {}]
  %s20 = inlined_call_operand.vmem [shape: f32[1,128], index: 20, kind: input, shape index: {}]
  %s21 = inlined_call_operand.vmem [shape: f32[1,128], index: 21, kind: input, shape index: {}]
  %s22 = inlined_call_operand.vmem [shape: f32[1,128], index: 22, kind: input, shape index: {}]
  %s23 = inlined_call_operand.vmem [shape: f32[1,128], index: 23, kind: input, shape index: {}]
  %s24 = inlined_call_operand.hbm [shape: f32[2,8,128], index: 24, kind: output, shape index: {}]
  %s25 = sld [smem:[#allocation0]]
  $region129: #{tpu_custom_call.1} parent=0
    _
  %s27 = ssub.s32 1, %s25
  %s28 = scalar_select 0, %s27, %s25
  $region1: #{tpu_custom_call.1} parent=0
    #allocation2 [shape = 'u8[8192]{0}', space=vmem, size = 0x2000, scoped, tag = 'output window, operand 0']
    #allocation3 [shape = 's32[2]{0}', space=sflag, size = 0x8, scoped, tag = 'scoped memory for tpu_custom_call.1']
    %29 = vsyncpa [#allocation3], 0
    %s30 = scalar_lea.sflag [#allocation3], 1
    %31 = vsyncpa %s30, 0
    loop: start=0, step=1, limit=4
    $region2: #{tpu_custom_call.1} parent=1 // loop_pre_header
      _
    $region3: #{tpu_custom_call.1} parent=1 // loop_header
      %s33 = sphi 0, %s37
      %p34 = scmp.ge.s32.totalorder %s33, 4
      %s43 = sphi 0, %s45
      %s46 = sphi 0, %s43
      %s47 = sphi 0, %s46
      %s63 = sphi 0, %s47
      %s69 = sphi 0, %s71
      %s72 = sphi 0, %s69
      %s73 = sphi 0, %s72
      %s89 = sphi 0, %s73
      %s95 = sphi 0, %s97
      %s98 = sphi 0, %s95
      %s99 = sphi 0, %s98
      %s115 = sphi 0, %s99
      %s121 = sphi 0, %s123
      %s124 = sphi 0, %s121
      %s125 = sphi 0, %s124
      %s141 = sphi 0, %s125
      %s145 = sphi 0, %s145
      %s147 = sphi 0, %s145
      %s148 = sphi 0, %s147
      %s162 = sphi 0, %s148
      %s166 = sphi 0, %s166
      %s168 = sphi 0, %s166
      %s169 = sphi 0, %s168
      %s183 = sphi 0, %s169
      %s187 = sphi 0, %s187
      %s189 = sphi 0, %s187
      %s190 = sphi 0, %s189
      %s204 = sphi 0, %s190
      %s208 = sphi 0, %s208
      %s210 = sphi 0, %s208
      %s211 = sphi 0, %s210
      %s225 = sphi 0, %s211
      %s229 = sphi 0, %s229
      %s231 = sphi 0, %s229
      %s232 = sphi 0, %s231
      %s246 = sphi 0, %s232
      %s250 = sphi 0, %s250
      %s252 = sphi 0, %s250
      %s253 = sphi 0, %s252
      %s267 = sphi 0, %s253
      %s271 = sphi 0, %s271
      %s273 = sphi 0, %s271
      %s274 = sphi 0, %s273
      %s288 = sphi 0, %s274
      %s292 = sphi 0, %s292
      %s294 = sphi 0, %s292
      %s295 = sphi 0, %s294
      %s309 = sphi 0, %s295
      %s313 = sphi 0, %s313
      %s315 = sphi 0, %s313
      %s316 = sphi 0, %s315
      %s330 = sphi 0, %s316
      %s334 = sphi 0, %s334
      %s336 = sphi 0, %s334
      %s337 = sphi 0, %s336
      %s351 = sphi 0, %s337
      %s355 = sphi 0, %s355
      %s357 = sphi 0, %s355
      %s358 = sphi 0, %s357
      %s372 = sphi 0, %s358
      %s376 = sphi 0, %s376
      %s378 = sphi 0, %s376
      %s379 = sphi 0, %s378
      %s393 = sphi 0, %s379
      %s397 = sphi 0, %s397
      %s399 = sphi 0, %s397
      %s400 = sphi 0, %s399
      %s414 = sphi 0, %s400
      %s418 = sphi 0, %s418
      %s420 = sphi 0, %s418
      %s421 = sphi 0, %s420
      %s435 = sphi 0, %s421
      %s439 = sphi 0, %s439
      %s441 = sphi 0, %s439
      %s442 = sphi 0, %s441
      %s456 = sphi 0, %s442
      %s460 = sphi 0, %s460
      %s462 = sphi 0, %s460
      %s463 = sphi 0, %s462
      %s477 = sphi 0, %s463
      %s481 = sphi 0, %s481
      %s483 = sphi 0, %s481
      %s484 = sphi 0, %s483
      %s498 = sphi 0, %s484
      %s502 = sphi 0, %s502
      %s504 = sphi 0, %s502
      %s505 = sphi 0, %s504
      %s519 = sphi 0, %s505
      %s523 = sphi 0, %s523
      %s525 = sphi 0, %s523
      %s526 = sphi 0, %s525
      %s540 = sphi 0, %s526
      %s544 = sphi 0, %s544
      %s546 = sphi 0, %s544
      %s547 = sphi 0, %s546
      %s561 = sphi 0, %s547
      %s567 = sphi 0, %s569
      %s570 = sphi 0, %s567
      %s571 = sphi 0, %s570
      %s587 = sphi 0, %s571
    $region4: #{tpu_custom_call.1} parent=1 // loop_header_branch
      %36 = sbr.rel (%p34) target = $region8
    $region5: #{tpu_custom_call.1} parent=1 // loop_body
      %s38 = ssub.s32 %s33, 1
      %s39 = ssub.s32 %s33, 2
      %s40 = sadd.s32 %s33, 1
      %s41 = ssub.s32 %s33, %s40
      %p42 = scmp.eq.s32.totalorder %s41, 0
      %s44 = sadd.s32 %s43, 1
      %s45 = scalar_select %p42, %s43, %s44
      %p48 = pneg %p42
      %p49 = scmp.eq.s32.totalorder %s33, 1
      %p50 = por %p48, %p49
      %p51 = scmp.ne.s32.totalorder %s43, %s46
      %p52 = scmp.eq.s32.totalorder %s33, 0
      %p53 = por %p51, %p52
      %p54 = scmp.ne.s32.totalorder %s43, %s46
      %p55 = scmp.eq.s32.totalorder %s38, 1
      %p56 = por %p54, %p55
      %p57 = scmp.ne.s32.totalorder %s46, %s47
      %p58 = scmp.eq.s32.totalorder %s38, 0
      %p59 = por %p57, %p58
      %p60 = scmp.ne.s32.totalorder %s46, %s47
      %p61 = scmp.eq.s32.totalorder %s39, 1
      %p62 = por %p60, %p61
      %p64 = scmp.ne.s32.totalorder %s47, %s63
      %p65 = scmp.eq.s32.totalorder %s39, 0
      %p66 = por %p64, %p65
      %s67 = ssub.s32 %s33, %s40
      %p68 = scmp.eq.s32.totalorder %s67, 0
      %s70 = sadd.s32 %s69, 1
      %s71 = scalar_select %p68, %s69, %s70
      %p74 = pneg %p68
      %p75 = scmp.eq.s32.totalorder %s33, 1
      %p76 = por %p74, %p75
      %p77 = scmp.ne.s32.totalorder %s69, %s72
      %p78 = scmp.eq.s32.totalorder %s33, 0
      %p79 = por %p77, %p78
      %p80 = scmp.ne.s32.totalorder %s69, %s72
      %p81 = scmp.eq.s32.totalorder %s38, 1
      %p82 = por %p80, %p81
      %p83 = scmp.ne.s32.totalorder %s72, %s73
      %p84 = scmp.eq.s32.totalorder %s38, 0
      %p85 = por %p83, %p84
      %p86 = scmp.ne.s32.totalorder %s72, %s73
      %p87 = scmp.eq.s32.totalorder %s39, 1
      %p88 = por %p86, %p87
      %p90 = scmp.ne.s32.totalorder %s73, %s89
      %p91 = scmp.eq.s32.totalorder %s39, 0
      %p92 = por %p90, %p91
      %s93 = ssub.s32 %s33, %s40
      %p94 = scmp.eq.s32.totalorder %s93, 0
      %s96 = sadd.s32 %s95, 1
      %s97 = scalar_select %p94, %s95, %s96
      %p100 = pneg %p94
      %p101 = scmp.eq.s32.totalorder %s33, 1
      %p102 = por %p100, %p101
      %p103 = scmp.ne.s32.totalorder %s95, %s98
      %p104 = scmp.eq.s32.totalorder %s33, 0
      %p105 = por %p103, %p104
      %p106 = scmp.ne.s32.totalorder %s95, %s98
      %p107 = scmp.eq.s32.totalorder %s38, 1
      %p108 = por %p106, %p107
      %p109 = scmp.ne.s32.totalorder %s98, %s99
      %p110 = scmp.eq.s32.totalorder %s38, 0
      %p111 = por %p109, %p110
      %p112 = scmp.ne.s32.totalorder %s98, %s99
      %p113 = scmp.eq.s32.totalorder %s39, 1
      %p114 = por %p112, %p113
      %p116 = scmp.ne.s32.totalorder %s99, %s115
      %p117 = scmp.eq.s32.totalorder %s39, 0
      %p118 = por %p116, %p117
      %s119 = ssub.s32 %s33, %s40
      %p120 = scmp.eq.s32.totalorder %s119, 0
      %s122 = sadd.s32 %s121, 1
      %s123 = scalar_select %p120, %s121, %s122
      %p126 = pneg %p120
      %p127 = scmp.eq.s32.totalorder %s33, 1
      %p128 = por %p126, %p127
      %p129 = scmp.ne.s32.totalorder %s121, %s124
      %p130 = scmp.eq.s32.totalorder %s33, 0
      %p131 = por %p129, %p130
      %p132 = scmp.ne.s32.totalorder %s121, %s124
      %p133 = scmp.eq.s32.totalorder %s38, 1
      %p134 = por %p132, %p133
      %p135 = scmp.ne.s32.totalorder %s124, %s125
      %p136 = scmp.eq.s32.totalorder %s38, 0
      %p137 = por %p135, %p136
      %p138 = scmp.ne.s32.totalorder %s124, %s125
      %p139 = scmp.eq.s32.totalorder %s39, 1
      %p140 = por %p138, %p139
      %p142 = scmp.ne.s32.totalorder %s125, %s141
      %p143 = scmp.eq.s32.totalorder %s39, 0
      %p144 = por %p142, %p143
      %s146 = sadd.s32 %s145, 1
      %p149 = scmp.eq.s32.totalorder %s33, 1
      %p150 = scmp.ne.s32.totalorder %s145, %s147
      %p151 = scmp.eq.s32.totalorder %s33, 0
      %p152 = por %p150, %p151
      %p153 = scmp.ne.s32.totalorder %s145, %s147
      %p154 = scmp.eq.s32.totalorder %s38, 1
      %p155 = por %p153, %p154
      %p156 = scmp.ne.s32.totalorder %s147, %s148
      %p157 = scmp.eq.s32.totalorder %s38, 0
      %p158 = por %p156, %p157
      %p159 = scmp.ne.s32.totalorder %s147, %s148
      %p160 = scmp.eq.s32.totalorder %s39, 1
      %p161 = por %p159, %p160
      %p163 = scmp.ne.s32.totalorder %s148, %s162
      %p164 = scmp.eq.s32.totalorder %s39, 0
      %p165 = por %p163, %p164
      %s167 = sadd.s32 %s166, 1
      %p170 = scmp.eq.s32.totalorder %s33, 1
      %p171 = scmp.ne.s32.totalorder %s166, %s168
      %p172 = scmp.eq.s32.totalorder %s33, 0
      %p173 = por %p171, %p172
      %p174 = scmp.ne.s32.totalorder %s166, %s168
      %p175 = scmp.eq.s32.totalorder %s38, 1
      %p176 = por %p174, %p175
      %p177 = scmp.ne.s32.totalorder %s168, %s169
      %p178 = scmp.eq.s32.totalorder %s38, 0
      %p179 = por %p177, %p178
      %p180 = scmp.ne.s32.totalorder %s168, %s169
      %p181 = scmp.eq.s32.totalorder %s39, 1
      %p182 = por %p180, %p181
      %p184 = scmp.ne.s32.totalorder %s169, %s183
      %p185 = scmp.eq.s32.totalorder %s39, 0
      %p186 = por %p184, %p185
      %s188 = sadd.s32 %s187, 1
      %p191 = scmp.eq.s32.totalorder %s33, 1
      %p192 = scmp.ne.s32.totalorder %s187, %s189
      %p193 = scmp.eq.s32.totalorder %s33, 0
      %p194 = por %p192, %p193
      %p195 = scmp.ne.s32.totalorder %s187, %s189
      %p196 = scmp.eq.s32.totalorder %s38, 1
      %p197 = por %p195, %p196
      %p198 = scmp.ne.s32.totalorder %s189, %s190
      %p199 = scmp.eq.s32.totalorder %s38, 0
      %p200 = por %p198, %p199
      %p201 = scmp.ne.s32.totalorder %s189, %s190
      %p202 = scmp.eq.s32.totalorder %s39, 1
      %p203 = por %p201, %p202
      %p205 = scmp.ne.s32.totalorder %s190, %s204
      %p206 = scmp.eq.s32.totalorder %s39, 0
      %p207 = por %p205, %p206
      %s209 = sadd.s32 %s208, 1
      %p212 = scmp.eq.s32.totalorder %s33, 1
      %p213 = scmp.ne.s32.totalorder %s208, %s210
      %p214 = scmp.eq.s32.totalorder %s33, 0
      %p215 = por %p213, %p214
      %p216 = scmp.ne.s32.totalorder %s208, %s210
      %p217 = scmp.eq.s32.totalorder %s38, 1
      %p218 = por %p216, %p217
      %p219 = scmp.ne.s32.totalorder %s210, %s211
      %p220 = scmp.eq.s32.totalorder %s38, 0
      %p221 = por %p219, %p220
      %p222 = scmp.ne.s32.totalorder %s210, %s211
      %p223 = scmp.eq.s32.totalorder %s39, 1
      %p224 = por %p222, %p223
      %p226 = scmp.ne.s32.totalorder %s211, %s225
      %p227 = scmp.eq.s32.totalorder %s39, 0
      %p228 = por %p226, %p227
      %s230 = sadd.s32 %s229, 1
      %p233 = scmp.eq.s32.totalorder %s33, 1
      %p234 = scmp.ne.s32.totalorder %s229, %s231
      %p235 = scmp.eq.s32.totalorder %s33, 0
      %p236 = por %p234, %p235
      %p237 = scmp.ne.s32.totalorder %s229, %s231
      %p238 = scmp.eq.s32.totalorder %s38, 1
      %p239 = por %p237, %p238
      %p240 = scmp.ne.s32.totalorder %s231, %s232
      %p241 = scmp.eq.s32.totalorder %s38, 0
      %p242 = por %p240, %p241
      %p243 = scmp.ne.s32.totalorder %s231, %s232
      %p244 = scmp.eq.s32.totalorder %s39, 1
      %p245 = por %p243, %p244
      %p247 = scmp.ne.s32.totalorder %s232, %s246
      %p248 = scmp.eq.s32.totalorder %s39, 0
      %p249 = por %p247, %p248
      %s251 = sadd.s32 %s250, 1
      %p254 = scmp.eq.s32.totalorder %s33, 1
      %p255 = scmp.ne.s32.totalorder %s250, %s252
      %p256 = scmp.eq.s32.totalorder %s33, 0
      %p257 = por %p255, %p256
      %p258 = scmp.ne.s32.totalorder %s250, %s252
      %p259 = scmp.eq.s32.totalorder %s38, 1
      %p260 = por %p258, %p259
      %p261 = scmp.ne.s32.totalorder %s252, %s253
      %p262 = scmp.eq.s32.totalorder %s38, 0
      %p263 = por %p261, %p262
      %p264 = scmp.ne.s32.totalorder %s252, %s253
      %p265 = scmp.eq.s32.totalorder %s39, 1
      %p266 = por %p264, %p265
      %p268 = scmp.ne.s32.totalorder %s253, %s267
      %p269 = scmp.eq.s32.totalorder %s39, 0
      %p270 = por %p268, %p269
      %s272 = sadd.s32 %s271, 1
      %p275 = scmp.eq.s32.totalorder %s33, 1
      %p276 = scmp.ne.s32.totalorder %s271, %s273
      %p277 = scmp.eq.s32.totalorder %s33, 0
      %p278 = por %p276, %p277
      %p279 = scmp.ne.s32.totalorder %s271, %s273
      %p280 = scmp.eq.s32.totalorder %s38, 1
      %p281 = por %p279, %p280
      %p282 = scmp.ne.s32.totalorder %s273, %s274
      %p283 = scmp.eq.s32.totalorder %s38, 0
      %p284 = por %p282, %p283
      %p285 = scmp.ne.s32.totalorder %s273, %s274
      %p286 = scmp.eq.s32.totalorder %s39, 1
      %p287 = por %p285, %p286
      %p289 = scmp.ne.s32.totalorder %s274, %s288
      %p290 = scmp.eq.s32.totalorder %s39, 0
      %p291 = por %p289, %p290
      %s293 = sadd.s32 %s292, 1
      %p296 = scmp.eq.s32.totalorder %s33, 1
      %p297 = scmp.ne.s32.totalorder %s292, %s294
      %p298 = scmp.eq.s32.totalorder %s33, 0
      %p299 = por %p297, %p298
      %p300 = scmp.ne.s32.totalorder %s292, %s294
      %p301 = scmp.eq.s32.totalorder %s38, 1
      %p302 = por %p300, %p301
      %p303 = scmp.ne.s32.totalorder %s294, %s295
      %p304 = scmp.eq.s32.totalorder %s38, 0
      %p305 = por %p303, %p304
      %p306 = scmp.ne.s32.totalorder %s294, %s295
      %p307 = scmp.eq.s32.totalorder %s39, 1
      %p308 = por %p306, %p307
      %p310 = scmp.ne.s32.totalorder %s295, %s309
      %p311 = scmp.eq.s32.totalorder %s39, 0
      %p312 = por %p310, %p311
      %s314 = sadd.s32 %s313, 1
      %p317 = scmp.eq.s32.totalorder %s33, 1
      %p318 = scmp.ne.s32.totalorder %s313, %s315
      %p319 = scmp.eq.s32.totalorder %s33, 0
      %p320 = por %p318, %p319
      %p321 = scmp.ne.s32.totalorder %s313, %s315
      %p322 = scmp.eq.s32.totalorder %s38, 1
      %p323 = por %p321, %p322
      %p324 = scmp.ne.s32.totalorder %s315, %s316
      %p325 = scmp.eq.s32.totalorder %s38, 0
      %p326 = por %p324, %p325
      %p327 = scmp.ne.s32.totalorder %s315, %s316
      %p328 = scmp.eq.s32.totalorder %s39, 1
      %p329 = por %p327, %p328
      %p331 = scmp.ne.s32.totalorder %s316, %s330
      %p332 = scmp.eq.s32.totalorder %s39, 0
      %p333 = por %p331, %p332
      %s335 = sadd.s32 %s334, 1
      %p338 = scmp.eq.s32.totalorder %s33, 1
      %p339 = scmp.ne.s32.totalorder %s334, %s336
      %p340 = scmp.eq.s32.totalorder %s33, 0
      %p341 = por %p339, %p340
      %p342 = scmp.ne.s32.totalorder %s334, %s336
      %p343 = scmp.eq.s32.totalorder %s38, 1
      %p344 = por %p342, %p343
      %p345 = scmp.ne.s32.totalorder %s336, %s337
      %p346 = scmp.eq.s32.totalorder %s38, 0
      %p347 = por %p345, %p346
      %p348 = scmp.ne.s32.totalorder %s336, %s337
      %p349 = scmp.eq.s32.totalorder %s39, 1
      %p350 = por %p348, %p349
      %p352 = scmp.ne.s32.totalorder %s337, %s351
      %p353 = scmp.eq.s32.totalorder %s39, 0
      %p354 = por %p352, %p353
      %s356 = sadd.s32 %s355, 1
      %p359 = scmp.eq.s32.totalorder %s33, 1
      %p360 = scmp.ne.s32.totalorder %s355, %s357
      %p361 = scmp.eq.s32.totalorder %s33, 0
      %p362 = por %p360, %p361
      %p363 = scmp.ne.s32.totalorder %s355, %s357
      %p364 = scmp.eq.s32.totalorder %s38, 1
      %p365 = por %p363, %p364
      %p366 = scmp.ne.s32.totalorder %s357, %s358
      %p367 = scmp.eq.s32.totalorder %s38, 0
      %p368 = por %p366, %p367
      %p369 = scmp.ne.s32.totalorder %s357, %s358
      %p370 = scmp.eq.s32.totalorder %s39, 1
      %p371 = por %p369, %p370
      %p373 = scmp.ne.s32.totalorder %s358, %s372
      %p374 = scmp.eq.s32.totalorder %s39, 0
      %p375 = por %p373, %p374
      %s377 = sadd.s32 %s376, 1
      %p380 = scmp.eq.s32.totalorder %s33, 1
      %p381 = scmp.ne.s32.totalorder %s376, %s378
      %p382 = scmp.eq.s32.totalorder %s33, 0
      %p383 = por %p381, %p382
      %p384 = scmp.ne.s32.totalorder %s376, %s378
      %p385 = scmp.eq.s32.totalorder %s38, 1
      %p386 = por %p384, %p385
      %p387 = scmp.ne.s32.totalorder %s378, %s379
      %p388 = scmp.eq.s32.totalorder %s38, 0
      %p389 = por %p387, %p388
      %p390 = scmp.ne.s32.totalorder %s378, %s379
      %p391 = scmp.eq.s32.totalorder %s39, 1
      %p392 = por %p390, %p391
      %p394 = scmp.ne.s32.totalorder %s379, %s393
      %p395 = scmp.eq.s32.totalorder %s39, 0
      %p396 = por %p394, %p395
      %s398 = sadd.s32 %s397, 1
      %p401 = scmp.eq.s32.totalorder %s33, 1
      %p402 = scmp.ne.s32.totalorder %s397, %s399
      %p403 = scmp.eq.s32.totalorder %s33, 0
      %p404 = por %p402, %p403
      %p405 = scmp.ne.s32.totalorder %s397, %s399
      %p406 = scmp.eq.s32.totalorder %s38, 1
      %p407 = por %p405, %p406
      %p408 = scmp.ne.s32.totalorder %s399, %s400
      %p409 = scmp.eq.s32.totalorder %s38, 0
      %p410 = por %p408, %p409
      %p411 = scmp.ne.s32.totalorder %s399, %s400
      %p412 = scmp.eq.s32.totalorder %s39, 1
      %p413 = por %p411, %p412
      %p415 = scmp.ne.s32.totalorder %s400, %s414
      %p416 = scmp.eq.s32.totalorder %s39, 0
      %p417 = por %p415, %p416
      %s419 = sadd.s32 %s418, 1
      %p422 = scmp.eq.s32.totalorder %s33, 1
      %p423 = scmp.ne.s32.totalorder %s418, %s420
      %p424 = scmp.eq.s32.totalorder %s33, 0
      %p425 = por %p423, %p424
      %p426 = scmp.ne.s32.totalorder %s418, %s420
      %p427 = scmp.eq.s32.totalorder %s38, 1
      %p428 = por %p426, %p427
      %p429 = scmp.ne.s32.totalorder %s420, %s421
      %p430 = scmp.eq.s32.totalorder %s38, 0
      %p431 = por %p429, %p430
      %p432 = scmp.ne.s32.totalorder %s420, %s421
      %p433 = scmp.eq.s32.totalorder %s39, 1
      %p434 = por %p432, %p433
      %p436 = scmp.ne.s32.totalorder %s421, %s435
      %p437 = scmp.eq.s32.totalorder %s39, 0
      %p438 = por %p436, %p437
      %s440 = sadd.s32 %s439, 1
      %p443 = scmp.eq.s32.totalorder %s33, 1
      %p444 = scmp.ne.s32.totalorder %s439, %s441
      %p445 = scmp.eq.s32.totalorder %s33, 0
      %p446 = por %p444, %p445
      %p447 = scmp.ne.s32.totalorder %s439, %s441
      %p448 = scmp.eq.s32.totalorder %s38, 1
      %p449 = por %p447, %p448
      %p450 = scmp.ne.s32.totalorder %s441, %s442
      %p451 = scmp.eq.s32.totalorder %s38, 0
      %p452 = por %p450, %p451
      %p453 = scmp.ne.s32.totalorder %s441, %s442
      %p454 = scmp.eq.s32.totalorder %s39, 1
      %p455 = por %p453, %p454
      %p457 = scmp.ne.s32.totalorder %s442, %s456
      %p458 = scmp.eq.s32.totalorder %s39, 0
      %p459 = por %p457, %p458
      %s461 = sadd.s32 %s460, 1
      %p464 = scmp.eq.s32.totalorder %s33, 1
      %p465 = scmp.ne.s32.totalorder %s460, %s462
      %p466 = scmp.eq.s32.totalorder %s33, 0
      %p467 = por %p465, %p466
      %p468 = scmp.ne.s32.totalorder %s460, %s462
      %p469 = scmp.eq.s32.totalorder %s38, 1
      %p470 = por %p468, %p469
      %p471 = scmp.ne.s32.totalorder %s462, %s463
      %p472 = scmp.eq.s32.totalorder %s38, 0
      %p473 = por %p471, %p472
      %p474 = scmp.ne.s32.totalorder %s462, %s463
      %p475 = scmp.eq.s32.totalorder %s39, 1
      %p476 = por %p474, %p475
      %p478 = scmp.ne.s32.totalorder %s463, %s477
      %p479 = scmp.eq.s32.totalorder %s39, 0
      %p480 = por %p478, %p479
      %s482 = sadd.s32 %s481, 1
      %p485 = scmp.eq.s32.totalorder %s33, 1
      %p486 = scmp.ne.s32.totalorder %s481, %s483
      %p487 = scmp.eq.s32.totalorder %s33, 0
      %p488 = por %p486, %p487
      %p489 = scmp.ne.s32.totalorder %s481, %s483
      %p490 = scmp.eq.s32.totalorder %s38, 1
      %p491 = por %p489, %p490
      %p492 = scmp.ne.s32.totalorder %s483, %s484
      %p493 = scmp.eq.s32.totalorder %s38, 0
      %p494 = por %p492, %p493
      %p495 = scmp.ne.s32.totalorder %s483, %s484
      %p496 = scmp.eq.s32.totalorder %s39, 1
      %p497 = por %p495, %p496
      %p499 = scmp.ne.s32.totalorder %s484, %s498
      %p500 = scmp.eq.s32.totalorder %s39, 0
      %p501 = por %p499, %p500
      %s503 = sadd.s32 %s502, 1
      %p506 = scmp.eq.s32.totalorder %s33, 1
      %p507 = scmp.ne.s32.totalorder %s502, %s504
      %p508 = scmp.eq.s32.totalorder %s33, 0
      %p509 = por %p507, %p508
      %p510 = scmp.ne.s32.totalorder %s502, %s504
      %p511 = scmp.eq.s32.totalorder %s38, 1
      %p512 = por %p510, %p511
      %p513 = scmp.ne.s32.totalorder %s504, %s505
      %p514 = scmp.eq.s32.totalorder %s38, 0
      %p515 = por %p513, %p514
      %p516 = scmp.ne.s32.totalorder %s504, %s505
      %p517 = scmp.eq.s32.totalorder %s39, 1
      %p518 = por %p516, %p517
      %p520 = scmp.ne.s32.totalorder %s505, %s519
      %p521 = scmp.eq.s32.totalorder %s39, 0
      %p522 = por %p520, %p521
      %s524 = sadd.s32 %s523, 1
      %p527 = scmp.eq.s32.totalorder %s33, 1
      %p528 = scmp.ne.s32.totalorder %s523, %s525
      %p529 = scmp.eq.s32.totalorder %s33, 0
      %p530 = por %p528, %p529
      %p531 = scmp.ne.s32.totalorder %s523, %s525
      %p532 = scmp.eq.s32.totalorder %s38, 1
      %p533 = por %p531, %p532
      %p534 = scmp.ne.s32.totalorder %s525, %s526
      %p535 = scmp.eq.s32.totalorder %s38, 0
      %p536 = por %p534, %p535
      %p537 = scmp.ne.s32.totalorder %s525, %s526
      %p538 = scmp.eq.s32.totalorder %s39, 1
      %p539 = por %p537, %p538
      %p541 = scmp.ne.s32.totalorder %s526, %s540
      %p542 = scmp.eq.s32.totalorder %s39, 0
      %p543 = por %p541, %p542
      %s545 = sadd.s32 %s544, 1
      %p548 = scmp.eq.s32.totalorder %s33, 1
      %p549 = scmp.ne.s32.totalorder %s544, %s546
      %p550 = scmp.eq.s32.totalorder %s33, 0
      %p551 = por %p549, %p550
      %p552 = scmp.ne.s32.totalorder %s544, %s546
      %p553 = scmp.eq.s32.totalorder %s38, 1
      %p554 = por %p552, %p553
      %p555 = scmp.ne.s32.totalorder %s546, %s547
      %p556 = scmp.eq.s32.totalorder %s38, 0
      %p557 = por %p555, %p556
      %p558 = scmp.ne.s32.totalorder %s546, %s547
      %p559 = scmp.eq.s32.totalorder %s39, 1
      %p560 = por %p558, %p559
      %p562 = scmp.ne.s32.totalorder %s547, %s561
      %p563 = scmp.eq.s32.totalorder %s39, 0
      %p564 = por %p562, %p563
      %s565 = ssub.s32 %s33, %s40
      %p566 = scmp.eq.s32.totalorder %s565, 0
      %s568 = sadd.s32 %s567, 1
      %s569 = scalar_select %p566, %s567, %s568
      %p572 = pneg %p566
      %p573 = scmp.eq.s32.totalorder %s33, 1
      %p574 = por %p572, %p573
      %p575 = scmp.ne.s32.totalorder %s567, %s570
      %p576 = scmp.eq.s32.totalorder %s33, 0
      %p577 = por %p575, %p576
      %p578 = scmp.ne.s32.totalorder %s567, %s570
      %p579 = scmp.eq.s32.totalorder %s38, 1
      %p580 = por %p578, %p579
      %p581 = scmp.ne.s32.totalorder %s570, %s571
      %p582 = scmp.eq.s32.totalorder %s38, 0
      %p583 = por %p581, %p582
      %p584 = scmp.ne.s32.totalorder %s570, %s571
      %p585 = scmp.eq.s32.totalorder %s39, 1
      %p586 = por %p584, %p585
      %p588 = scmp.ne.s32.totalorder %s571, %s587
      %p589 = scmp.eq.s32.totalorder %s39, 0
      %p590 = por %p588, %p589
      %p591 = scmp.le.s32.totalorder 1, %s33
      %p592 = scmp.lt.s32.totalorder %s33, 3
      %p593 = pnand %p591, %p592
      %p594 = pneg %p593
      // Predicated region
      $region9: #{tpu_custom_call.1} parent=5 // pred_check
        _
      $region10: #{tpu_custom_call.1} parent=5 // pred_check_branch
        %596 = sbr.rel (%p593) target = $region12
      $region11: #{tpu_custom_call.1} parent=5 // pred_region
        %s597 = ssub.s32 %s33, 1
        // Predicated region
        $region13: #{tpu_custom_call.1} parent=11 // pred_check
          %p598 = pneg %p158
        $region14: #{tpu_custom_call.1} parent=11 // pred_check_branch
          %600 = sbr.rel (%p598) target = $region16
        $region15: #{tpu_custom_call.1} parent=11 // pred_region
          _
        $region16: #{tpu_custom_call.1} parent=11 // pred_fallthru
          _
        // Predicated region
        $region17: #{tpu_custom_call.1} parent=11 // pred_check
          %p601 = pneg %p179
        $region18: #{tpu_custom_call.1} parent=11 // pred_check_branch
          %603 = sbr.rel (%p601) target = $region20
        $region19: #{tpu_custom_call.1} parent=11 // pred_region
          _
        $region20: #{tpu_custom_call.1} parent=11 // pred_fallthru
          _
        // Predicated region
        $region21: #{tpu_custom_call.1} parent=11 // pred_check
          %p604 = pneg %p200
        $region22: #{tpu_custom_call.1} parent=11 // pred_check_branch
          %606 = sbr.rel (%p604) target = $region24
        $region23: #{tpu_custom_call.1} parent=11 // pred_region
          _
        $region24: #{tpu_custom_call.1} parent=11 // pred_fallthru
          _
        // Predicated region
        $region25: #{tpu_custom_call.1} parent=11 // pred_check
          %p607 = pneg %p221
        $region26: #{tpu_custom_call.1} parent=11 // pred_check_branch
          %609 = sbr.rel (%p607) target = $region28
        $region27: #{tpu_custom_call.1} parent=11 // pred_region
          _
        $region28: #{tpu_custom_call.1} parent=11 // pred_fallthru
          _
        // Predicated region
        $region29: #{tpu_custom_call.1} parent=11 // pred_check
          %p610 = pneg %p242
        $region30: #{tpu_custom_call.1} parent=11 // pred_check_branch
          %612 = sbr.rel (%p610) target = $region32
        $region31: #{tpu_custom_call.1} parent=11 // pred_region
          _
        $region32: #{tpu_custom_call.1} parent=11 // pred_fallthru
          _
        // Predicated region
        $region33: #{tpu_custom_call.1} parent=11 // pred_check
          %p613 = pneg %p263
        $region34: #{tpu_custom_call.1} parent=11 // pred_check_branch
          %615 = sbr.rel (%p613) target = $region36
        $region35: #{tpu_custom_call.1} parent=11 // pred_region
          _
        $region36: #{tpu_custom_call.1} parent=11 // pred_fallthru
          _
        // Predicated region
        $region37: #{tpu_custom_call.1} parent=11 // pred_check
          %p616 = pneg %p284
        $region38: #{tpu_custom_call.1} parent=11 // pred_check_branch
          %618 = sbr.rel (%p616) target = $region40
        $region39: #{tpu_custom_call.1} parent=11 // pred_region
          _
        $region40: #{tpu_custom_call.1} parent=11 // pred_fallthru
          _
        // Predicated region
        $region41: #{tpu_custom_call.1} parent=11 // pred_check
          %p619 = pneg %p305
        $region42: #{tpu_custom_call.1} parent=11 // pred_check_branch
          %621 = sbr.rel (%p619) target = $region44
        $region43: #{tpu_custom_call.1} parent=11 // pred_region
          _
        $region44: #{tpu_custom_call.1} parent=11 // pred_fallthru
          _
        // Predicated region
        $region45: #{tpu_custom_call.1} parent=11 // pred_check
          %p622 = pneg %p326
        $region46: #{tpu_custom_call.1} parent=11 // pred_check_branch
          %624 = sbr.rel (%p622) target = $region48
        $region47: #{tpu_custom_call.1} parent=11 // pred_region
          _
        $region48: #{tpu_custom_call.1} parent=11 // pred_fallthru
          _
        // Predicated region
        $region49: #{tpu_custom_call.1} parent=11 // pred_check
          %p625 = pneg %p347
        $region50: #{tpu_custom_call.1} parent=11 // pred_check_branch
          %627 = sbr.rel (%p625) target = $region52
        $region51: #{tpu_custom_call.1} parent=11 // pred_region
          _
        $region52: #{tpu_custom_call.1} parent=11 // pred_fallthru
          _
        // Predicated region
        $region53: #{tpu_custom_call.1} parent=11 // pred_check
          %p628 = pneg %p368
        $region54: #{tpu_custom_call.1} parent=11 // pred_check_branch
          %630 = sbr.rel (%p628) target = $region56
        $region55: #{tpu_custom_call.1} parent=11 // pred_region
          _
        $region56: #{tpu_custom_call.1} parent=11 // pred_fallthru
          _
        // Predicated region
        $region57: #{tpu_custom_call.1} parent=11 // pred_check
          %p631 = pneg %p389
        $region58: #{tpu_custom_call.1} parent=11 // pred_check_branch
          %633 = sbr.rel (%p631) target = $region60
        $region59: #{tpu_custom_call.1} parent=11 // pred_region
          _
        $region60: #{tpu_custom_call.1} parent=11 // pred_fallthru
          _
        // Predicated region
        $region61: #{tpu_custom_call.1} parent=11 // pred_check
          %p634 = pneg %p410
        $region62: #{tpu_custom_call.1} parent=11 // pred_check_branch
          %636 = sbr.rel (%p634) target = $region64
        $region63: #{tpu_custom_call.1} parent=11 // pred_region
          _
        $region64: #{tpu_custom_call.1} parent=11 // pred_fallthru
          _
        // Predicated region
        $region65: #{tpu_custom_call.1} parent=11 // pred_check
          %p637 = pneg %p431
        $region66: #{tpu_custom_call.1} parent=11 // pred_check_branch
          %639 = sbr.rel (%p637) target = $region68
        $region67: #{tpu_custom_call.1} parent=11 // pred_region
          _
        $region68: #{tpu_custom_call.1} parent=11 // pred_fallthru
          _
        // Predicated region
        $region69: #{tpu_custom_call.1} parent=11 // pred_check
          %p640 = pneg %p452
        $region70: #{tpu_custom_call.1} parent=11 // pred_check_branch
          %642 = sbr.rel (%p640) target = $region72
        $region71: #{tpu_custom_call.1} parent=11 // pred_region
          _
        $region72: #{tpu_custom_call.1} parent=11 // pred_fallthru
          _
        // Predicated region
        $region73: #{tpu_custom_call.1} parent=11 // pred_check
          %p643 = pneg %p473
        $region74: #{tpu_custom_call.1} parent=11 // pred_check_branch
          %645 = sbr.rel (%p643) target = $region76
        $region75: #{tpu_custom_call.1} parent=11 // pred_region
          _
        $region76: #{tpu_custom_call.1} parent=11 // pred_fallthru
          _
        // Predicated region
        $region77: #{tpu_custom_call.1} parent=11 // pred_check
          %p646 = pneg %p494
        $region78: #{tpu_custom_call.1} parent=11 // pred_check_branch
          %648 = sbr.rel (%p646) target = $region80
        $region79: #{tpu_custom_call.1} parent=11 // pred_region
          _
        $region80: #{tpu_custom_call.1} parent=11 // pred_fallthru
          _
        // Predicated region
        $region81: #{tpu_custom_call.1} parent=11 // pred_check
          %p649 = pneg %p515
        $region82: #{tpu_custom_call.1} parent=11 // pred_check_branch
          %651 = sbr.rel (%p649) target = $region84
        $region83: #{tpu_custom_call.1} parent=11 // pred_region
          _
        $region84: #{tpu_custom_call.1} parent=11 // pred_fallthru
          _
        // Predicated region
        $region85: #{tpu_custom_call.1} parent=11 // pred_check
          %p652 = pneg %p536
        $region86: #{tpu_custom_call.1} parent=11 // pred_check_branch
          %654 = sbr.rel (%p652) target = $region88
        $region87: #{tpu_custom_call.1} parent=11 // pred_region
          _
        $region88: #{tpu_custom_call.1} parent=11 // pred_fallthru
          _
        // Predicated region
        $region89: #{tpu_custom_call.1} parent=11 // pred_check
          %p655 = pneg %p557
        $region90: #{tpu_custom_call.1} parent=11 // pred_check_branch
          %657 = sbr.rel (%p655) target = $region92
        $region91: #{tpu_custom_call.1} parent=11 // pred_region
          _
        $region92: #{tpu_custom_call.1} parent=11 // pred_fallthru
          _
      $region12: #{tpu_custom_call.1} parent=5 // pred_fallthru
        _
      %p658 = scmp.lt.s32.totalorder %s33, 2
      // Predicated region
      $region93: #{tpu_custom_call.1} parent=5 // pred_check
        %p659 = pneg %p658
      $region94: #{tpu_custom_call.1} parent=5 // pred_check_branch
        %661 = sbr.rel (%p659) target = $region96
      $region95: #{tpu_custom_call.1} parent=5 // pred_region
        // Predicated region
        $region97: #{tpu_custom_call.1} parent=95 // pred_check
          %p662 = pneg %p53
        $region98: #{tpu_custom_call.1} parent=95 // pred_check_branch
          %664 = sbr.rel (%p662) target = $region100
        $region99: #{tpu_custom_call.1} parent=95 // pred_region
          %p665 = scmp.lt.s32.totalorder %s33, 1
          %s666 = scalar_select %p665, %s33, 1
          %s667 = smul.addr %s666, 8
          %s668 = scalar_lea.vmem %s0, %s667
        $region100: #{tpu_custom_call.1} parent=95 // pred_fallthru
          _
        // Predicated region
        $region101: #{tpu_custom_call.1} parent=95 // pred_check
          %p669 = pneg %p79
        $region102: #{tpu_custom_call.1} parent=95 // pred_check_branch
          %671 = sbr.rel (%p669) target = $region104
        $region103: #{tpu_custom_call.1} parent=95 // pred_region
          %p672 = scmp.lt.s32.totalorder %s33, 1
          %s673 = scalar_select %p672, %s33, 1
          %s674 = smul.addr %s673, 8
          %s675 = scalar_lea.vmem %s1, %s674
        $region104: #{tpu_custom_call.1} parent=95 // pred_fallthru
          _
        // Predicated region
        $region105: #{tpu_custom_call.1} parent=95 // pred_check
          %p676 = pneg %p105
        $region106: #{tpu_custom_call.1} parent=95 // pred_check_branch
          %678 = sbr.rel (%p676) target = $region108
        $region107: #{tpu_custom_call.1} parent=95 // pred_region
          %p679 = scmp.lt.s32.totalorder %s33, 1
          %s680 = scalar_select %p679, %s33, 1
          %s681 = smul.addr %s680, 8
          %s682 = scalar_lea.vmem %s2, %s681
        $region108: #{tpu_custom_call.1} parent=95 // pred_fallthru
          _
        // Predicated region
        $region109: #{tpu_custom_call.1} parent=95 // pred_check
          %p683 = pneg %p131
        $region110: #{tpu_custom_call.1} parent=95 // pred_check_branch
          %685 = sbr.rel (%p683) target = $region112
        $region111: #{tpu_custom_call.1} parent=95 // pred_region
          %p686 = scmp.lt.s32.totalorder %s33, 1
          %s687 = scalar_select %p686, %s33, 1
          %s688 = scalar_lea.vmem %s3, %s687
        $region112: #{tpu_custom_call.1} parent=95 // pred_fallthru
          _
      $region96: #{tpu_custom_call.1} parent=5 // pred_fallthru
        _
      %p689 = scmp.le.s32.totalorder 1, %s33
      %p690 = scmp.lt.s32.totalorder %s33, 3
      %p691 = pnand %p689, %p690
      %p692 = pneg %p691
      // Predicated region
      $region113: #{tpu_custom_call.1} parent=5 // pred_check
        _
      $region114: #{tpu_custom_call.1} parent=5 // pred_check_branch
        %694 = sbr.rel (%p691) target = $region116
      $region115: #{tpu_custom_call.1} parent=5 // pred_region
        %s695 = ssub.s32 %s33, 1
        %p696 = scmp.lt.s32.totalorder %s38, 1
        %s697 = scalar_select %p696, %s38, 1
        %s698 = smul.addr %s697, 8
        %s699 = scalar_lea.vmem %s0, %s698
        %p700 = pneg %p59
        %p701 = pneg %p56
        %p702 = scmp.lt.s32.totalorder %s38, 1
        %s703 = scalar_select %p702, %s38, 1
        %s704 = smul.addr %s703, 8
        %s705 = scalar_lea.vmem %s1, %s704
        %p706 = pneg %p85
        %p707 = pneg %p82
        %p708 = scmp.lt.s32.totalorder %s38, 1
        %s709 = scalar_select %p708, %s38, 1
        %s710 = smul.addr %s709, 8
        %s711 = scalar_lea.vmem %s2, %s710
        %p712 = pneg %p111
        %p713 = pneg %p108
        %p714 = scmp.lt.s32.totalorder %s38, 1
        %s715 = scalar_select %p714, %s38, 1
        %s716 = scalar_lea.vmem %s3, %s715
        %p717 = pneg %p137
        %p718 = pneg %p134
        %p719 = pneg %p158
        %p720 = pneg %p155
        %p721 = pneg %p179
        %p722 = pneg %p176
        %p723 = pneg %p200
        %p724 = pneg %p197
        %p725 = pneg %p221
        %p726 = pneg %p218
        %p727 = pneg %p242
        %p728 = pneg %p239
        %p729 = pneg %p263
        %p730 = pneg %p260
        %p731 = pneg %p284
        %p732 = pneg %p281
        %p733 = pneg %p305
        %p734 = pneg %p302
        %p735 = pneg %p326
        %p736 = pneg %p323
        %p737 = pneg %p347
        %p738 = pneg %p344
        %p739 = pneg %p368
        %p740 = pneg %p365
        %p741 = pneg %p389
        %p742 = pneg %p386
        %p743 = pneg %p410
        %p744 = pneg %p407
        %p745 = pneg %p431
        %p746 = pneg %p428
        %p747 = pneg %p452
        %p748 = pneg %p449
        %p749 = pneg %p473
        %p750 = pneg %p470
        %p751 = pneg %p494
        %p752 = pneg %p491
        %p753 = pneg %p515
        %p754 = pneg %p512
        %p755 = pneg %p536
        %p756 = pneg %p533
        %p757 = pneg %p557
        %p758 = pneg %p554
        %p759 = pneg %p583
        %p760 = pneg %p580
        %s761 = sand.u32 %s570, 1
        %s762 = scalar_lea.sflag [#allocation3], %s761
        %s763 = sand.u32 %s570, 1
        %s764 = smul.addr %s763, 8
        %s765 = scalar_lea.vmem [#allocation2], %s764
        %p766 = scmp.lt.s32.totalorder %s38, 1
        %s767 = scalar_select %p766, %s38, 1
        %s768 = smul.addr %s767, 8
        %s769 = scalar_lea.vmem %s0, %s768
        %p770 = scmp.lt.s32.totalorder %s38, 1
        %s771 = scalar_select %p770, %s38, 1
        %s772 = smul.addr %s771, 8
        %s773 = scalar_lea.vmem %s1, %s772
        %p774 = scmp.lt.s32.totalorder %s38, 1
        %s775 = scalar_select %p774, %s38, 1
        %s776 = smul.addr %s775, 8
        %s777 = scalar_lea.vmem %s2, %s776
        %p778 = scmp.lt.s32.totalorder %s38, 1
        %s779 = scalar_select %p778, %s38, 1
        %s780 = scalar_lea.vmem %s3, %s779
        %v782 = vld [vmem:[%s769] sm:$0xff]
        %v783 = vld [vmem:[%s773] sm:$0xff]
        %v784 = vld [vmem:[%s777] sm:$0xff]
        %v785 = vld [vmem:[%s780] sm:$0x1]
        %v786 = vpack.c.bf16 %v782, %v782
        %v787 = vld [vmem:[%s4] sm:$0xf]
        %v788 = vld [vmem:[%s4 + $0x4] sm:$0xf]
        %v789 = vld [vmem:[%s4 + $0x8] sm:$0xf]
        %v790 = vld [vmem:[%s4 + $0xc] sm:$0xf]
        %v791 = vld [vmem:[%s4 + $0x10] sm:$0xf]
        %v792 = vld [vmem:[%s4 + $0x14] sm:$0xf]
        %v793 = vld [vmem:[%s4 + $0x18] sm:$0xf]
        %v794 = vld [vmem:[%s4 + $0x1c] sm:$0xf]
        %v795 = vld [vmem:[%s4 + $0x20] sm:$0xf]
        %v796 = vld [vmem:[%s4 + $0x24] sm:$0xf]
        %v797 = vld [vmem:[%s4 + $0x28] sm:$0xf]
        %v798 = vld [vmem:[%s4 + $0x2c] sm:$0xf]
        %v799 = vld [vmem:[%s4 + $0x30] sm:$0xf]
        %v800 = vld [vmem:[%s4 + $0x34] sm:$0xf]
        %v801 = vld [vmem:[%s4 + $0x38] sm:$0xf]
        %v802 = vld [vmem:[%s4 + $0x3c] sm:$0xf]
        %v803 = vld [vmem:[%s4 + $0x40] sm:$0xf]
        %v804 = vld [vmem:[%s4 + $0x44] sm:$0xf]
        %v805 = vld [vmem:[%s4 + $0x48] sm:$0xf]
        %v806 = vld [vmem:[%s4 + $0x4c] sm:$0xf]
        %v807 = vld [vmem:[%s4 + $0x50] sm:$0xf]
        %v808 = vld [vmem:[%s4 + $0x54] sm:$0xf]
        %v809 = vld [vmem:[%s4 + $0x58] sm:$0xf]
        %v810 = vld [vmem:[%s4 + $0x5c] sm:$0xf]
        %v811 = vld [vmem:[%s4 + $0x60] sm:$0xf]
        %v812 = vld [vmem:[%s4 + $0x64] sm:$0xf]
        %v813 = vld [vmem:[%s4 + $0x68] sm:$0xf]
        %v814 = vld [vmem:[%s4 + $0x6c] sm:$0xf]
        %v815 = vld [vmem:[%s4 + $0x70] sm:$0xf]
        %v816 = vld [vmem:[%s4 + $0x74] sm:$0xf]
        %v817 = vld [vmem:[%s4 + $0x78] sm:$0xf]
        %v818 = vld [vmem:[%s4 + $0x7c] sm:$0xf]
        %v819 = vld [vmem:[%s4 + $0x80] sm:$0xf]
        %v820 = vld [vmem:[%s4 + $0x84] sm:$0xf]
        %v821 = vld [vmem:[%s4 + $0x88] sm:$0xf]
        %v822 = vld [vmem:[%s4 + $0x8c] sm:$0xf]
        %v823 = vld [vmem:[%s4 + $0x90] sm:$0xf]
        %v824 = vld [vmem:[%s4 + $0x94] sm:$0xf]
        %v825 = vld [vmem:[%s4 + $0x98] sm:$0xf]
        %v826 = vld [vmem:[%s4 + $0x9c] sm:$0xf]
        %v827 = vld [vmem:[%s4 + $0xa0] sm:$0xf]
        %v828 = vld [vmem:[%s4 + $0xa4] sm:$0xf]
        %v829 = vld [vmem:[%s4 + $0xa8] sm:$0xf]
        %v830 = vld [vmem:[%s4 + $0xac] sm:$0xf]
        %v831 = vld [vmem:[%s4 + $0xb0] sm:$0xf]
        %v832 = vld [vmem:[%s4 + $0xb4] sm:$0xf]
        %v833 = vld [vmem:[%s4 + $0xb8] sm:$0xf]
        %v834 = vld [vmem:[%s4 + $0xbc] sm:$0xf]
        %v835 = vld [vmem:[%s4 + $0xc0] sm:$0xf]
        %v836 = vld [vmem:[%s4 + $0xc4] sm:$0xf]
        %v837 = vld [vmem:[%s4 + $0xc8] sm:$0xf]
        %v838 = vld [vmem:[%s4 + $0xcc] sm:$0xf]
        %v839 = vld [vmem:[%s4 + $0xd0] sm:$0xf]
        %v840 = vld [vmem:[%s4 + $0xd4] sm:$0xf]
        %v841 = vld [vmem:[%s4 + $0xd8] sm:$0xf]
        %v842 = vld [vmem:[%s4 + $0xdc] sm:$0xf]
        %v843 = vld [vmem:[%s4 + $0xe0] sm:$0xf]
        %v844 = vld [vmem:[%s4 + $0xe4] sm:$0xf]
        %v845 = vld [vmem:[%s4 + $0xe8] sm:$0xf]
        %v846 = vld [vmem:[%s4 + $0xec] sm:$0xf]
        %v847 = vld [vmem:[%s4 + $0xf0] sm:$0xf]
        %v848 = vld [vmem:[%s4 + $0xf4] sm:$0xf]
        %v849 = vld [vmem:[%s4 + $0xf8] sm:$0xf]
        %v850 = vld [vmem:[%s4 + $0xfc] sm:$0xf]
        %v851 = vld [vmem:[%s5] sm:$0x1]
        %v852 = vld [vmem:[%s5 + $0x1] sm:$0x1]
        %v853 = vld [vmem:[%s5 + $0x2] sm:$0x1]
        %v854 = vld [vmem:[%s5 + $0x3] sm:$0x1]
        %v859 = vlaneseq
        %v860 = vshrl.u32 %v859, 7
        %v861 = vsub.s32 0, %v860
        %v862 = vrot.slane %v851, %v861
        %v863 = vlaneseq
        %v864 = vshrl.u32 %v863, 7
        %v865 = vsub.s32 0, %v864
        %v866 = vrot.slane %v852, %v865
        %v867 = vlaneseq
        %v868 = vshrl.u32 %v867, 7
        %v869 = vsub.s32 0, %v868
        %v870 = vrot.slane %v853, %v869
        %v871 = vlaneseq
        %v872 = vshrl.u32 %v871, 7
        %v873 = vsub.s32 0, %v872
        %v874 = vrot.slane %v854, %v873
        %v895 = vunpack.c.l.b16 %v787
        %v896 = vunpack.c.l.b16 %v788
        %v897 = vunpack.c.l.b16 %v789
        %v898 = vunpack.c.l.b16 %v790
        %v899 = vunpack.c.l.b16 %v791
        %v900 = vunpack.c.l.b16 %v792
        %v901 = vunpack.c.l.b16 %v793
        %v902 = vunpack.c.l.b16 %v794
        %v903 = vunpack.c.l.b16 %v795
        %v904 = vunpack.c.l.b16 %v796
        %v905 = vunpack.c.l.b16 %v797
        %v906 = vunpack.c.l.b16 %v798
        %v907 = vunpack.c.l.b16 %v799
        %v908 = vunpack.c.l.b16 %v800
        %v909 = vunpack.c.l.b16 %v801
        %v910 = vunpack.c.l.b16 %v802
        %v911 = vpack.c.b16 %v896, %v895
        %v912 = vpack.c.b16 %v898, %v897
        %v913 = vpack.c.b16 %v900, %v899
        %v914 = vpack.c.b16 %v902, %v901
        %v915 = vpack.c.b16 %v904, %v903
        %v916 = vpack.c.b16 %v906, %v905
        %v917 = vpack.c.b16 %v908, %v907
        %v918 = vpack.c.b16 %v910, %v909
        %927 = vmatprep.subr.bf16.mxu0 0
        %928 = vmatpush1.bf16.msra.mxu0 %v911
        %929 = vmatprep.subr.bf16.mxu0 0
        %930 = vmatpush1.bf16.msra.mxu0 %v912
        %931 = vmatprep.subr.bf16.mxu0 0
        %932 = vmatpush1.bf16.msra.mxu0 %v913
        %933 = vmatprep.subr.bf16.mxu0 0
        %934 = vmatpush1.bf16.msra.mxu0 %v914
        %935 = vmatprep.subr.bf16.mxu0 0
        %936 = vmatpush1.bf16.msra.mxu0 %v915
        %937 = vmatprep.subr.bf16.mxu0 0
        %938 = vmatpush1.bf16.msra.mxu0 %v916
        %939 = vmatprep.subr.bf16.mxu0 0
        %940 = vmatpush1.bf16.msra.mxu0 %v917
        %941 = vmatprep.subr.bf16.mxu0 0
        %942 = vmatpush1.bf16.msra.mxu0 %v918
        %943 = vmatprep.subr.bf16.mxu0 0
        %944 = vmatpush1.bf16.msra.mxu0 0
        %945 = vmatprep.subr.bf16.mxu0 0
        %946 = vmatpush1.bf16.msra.mxu0 0
        %947 = vmatprep.subr.bf16.mxu0 0
        %948 = vmatpush1.bf16.msra.mxu0 0
        %949 = vmatprep.subr.bf16.mxu0 0
        %950 = vmatpush1.bf16.msra.mxu0 0
        %951 = vmatprep.subr.bf16.mxu0 0
        %952 = vmatpush1.bf16.msra.mxu0 0
        %953 = vmatprep.subr.bf16.mxu0 0
        %954 = vmatpush1.bf16.msra.mxu0 0
        %955 = vmatprep.subr.bf16.mxu0 0
        %956 = vmatpush1.bf16.msra.mxu0 0
        %957 = vmatprep.subr.bf16.mxu0 0
        %958 = vmatpush1.bf16.msra.mxu0 0
        %959 = vmatprep.mubr.bf16.mxu0 0
        %960 = vmatmul.mubr.bf16.gmra.mrb[0].mxu0 %v786
        %v961 = vpop.f32.mrb[0].mxu0
        %v962 = vadd.f32 %v862, %v961
        %v963 = vpop.f32.mrb[0].mxu0
        %v964 = vpop.f32.mrb[0].mxu0
        %v965 = vpop.f32.mrb[0].mxu0
        %966 = vdwg.mxu0
        %v983 = vunpack.c.l.b16 %v803
        %v984 = vunpack.c.l.b16 %v804
        %v985 = vunpack.c.l.b16 %v805
        %v986 = vunpack.c.l.b16 %v806
        %v987 = vunpack.c.l.b16 %v807
        %v988 = vunpack.c.l.b16 %v808
        %v989 = vunpack.c.l.b16 %v809
        %v990 = vunpack.c.l.b16 %v810
        %v991 = vunpack.c.l.b16 %v811
        %v992 = vunpack.c.l.b16 %v812
        %v993 = vunpack.c.l.b16 %v813
        %v994 = vunpack.c.l.b16 %v814
        %v995 = vunpack.c.l.b16 %v815
        %v996 = vunpack.c.l.b16 %v816
        %v997 = vunpack.c.l.b16 %v817
        %v998 = vunpack.c.l.b16 %v818
        %v999 = vpack.c.b16 %v984, %v983
        %v1000 = vpack.c.b16 %v986, %v985
        %v1001 = vpack.c.b16 %v988, %v987
        %v1002 = vpack.c.b16 %v990, %v989
        %v1003 = vpack.c.b16 %v992, %v991
        %v1004 = vpack.c.b16 %v994, %v993
        %v1005 = vpack.c.b16 %v996, %v995
        %v1006 = vpack.c.b16 %v998, %v997
        %1015 = vmatprep.subr.bf16.mxu0 0
        %1016 = vmatpush1.bf16.msra.mxu0 %v999
        %1017 = vmatprep.subr.bf16.mxu0 0
        %1018 = vmatpush1.bf16.msra.mxu0 %v1000
        %1019 = vmatprep.subr.bf16.mxu0 0
        %1020 = vmatpush1.bf16.msra.mxu0 %v1001
        %1021 = vmatprep.subr.bf16.mxu0 0
        %1022 = vmatpush1.bf16.msra.mxu0 %v1002
        %1023 = vmatprep.subr.bf16.mxu0 0
        %1024 = vmatpush1.bf16.msra.mxu0 %v1003
        %1025 = vmatprep.subr.bf16.mxu0 0
        %1026 = vmatpush1.bf16.msra.mxu0 %v1004
        %1027 = vmatprep.subr.bf16.mxu0 0
        %1028 = vmatpush1.bf16.msra.mxu0 %v1005
        %1029 = vmatprep.subr.bf16.mxu0 0
        %1030 = vmatpush1.bf16.msra.mxu0 %v1006
        %1031 = vmatprep.subr.bf16.mxu0 0
        %1032 = vmatpush1.bf16.msra.mxu0 0
        %1033 = vmatprep.subr.bf16.mxu0 0
        %1034 = vmatpush1.bf16.msra.mxu0 0
        %1035 = vmatprep.subr.bf16.mxu0 0
        %1036 = vmatpush1.bf16.msra.mxu0 0
        %1037 = vmatprep.subr.bf16.mxu0 0
        %1038 = vmatpush1.bf16.msra.mxu0 0
        %1039 = vmatprep.subr.bf16.mxu0 0
        %1040 = vmatpush1.bf16.msra.mxu0 0
        %1041 = vmatprep.subr.bf16.mxu0 0
        %1042 = vmatpush1.bf16.msra.mxu0 0
        %1043 = vmatprep.subr.bf16.mxu0 0
        %1044 = vmatpush1.bf16.msra.mxu0 0
        %1045 = vmatprep.subr.bf16.mxu0 0
        %1046 = vmatpush1.bf16.msra.mxu0 0
        %1047 = vmatprep.mubr.bf16.mxu0 0
        %1048 = vmatmul.mubr.bf16.gmra.mrb[0].mxu0 %v786
        %v1049 = vpop.f32.mrb[0].mxu0
        %v1050 = vadd.f32 %v866, %v1049
        %v1051 = vpop.f32.mrb[0].mxu0
        %v1052 = vpop.f32.mrb[0].mxu0
        %v1053 = vpop.f32.mrb[0].mxu0
        %1054 = vdwg.mxu0
        %v1071 = vunpack.c.l.b16 %v819
        %v1072 = vunpack.c.l.b16 %v820
        %v1073 = vunpack.c.l.b16 %v821
        %v1074 = vunpack.c.l.b16 %v822
        %v1075 = vunpack.c.l.b16 %v823
        %v1076 = vunpack.c.l.b16 %v824
        %v1077 = vunpack.c.l.b16 %v825
        %v1078 = vunpack.c.l.b16 %v826
        %v1079 = vunpack.c.l.b16 %v827
        %v1080 = vunpack.c.l.b16 %v828
        %v1081 = vunpack.c.l.b16 %v829
        %v1082 = vunpack.c.l.b16 %v830
        %v1083 = vunpack.c.l.b16 %v831
        %v1084 = vunpack.c.l.b16 %v832
        %v1085 = vunpack.c.l.b16 %v833
        %v1086 = vunpack.c.l.b16 %v834
        %v1087 = vpack.c.b16 %v1072, %v1071
        %v1088 = vpack.c.b16 %v1074, %v1073
        %v1089 = vpack.c.b16 %v1076, %v1075
        %v1090 = vpack.c.b16 %v1078, %v1077
        %v1091 = vpack.c.b16 %v1080, %v1079
        %v1092 = vpack.c.b16 %v1082, %v1081
        %v1093 = vpack.c.b16 %v1084, %v1083
        %v1094 = vpack.c.b16 %v1086, %v1085
        %1103 = vmatprep.subr.bf16.mxu0 0
        %1104 = vmatpush1.bf16.msra.mxu0 %v1087
        %1105 = vmatprep.subr.bf16.mxu0 0
        %1106 = vmatpush1.bf16.msra.mxu0 %v1088
        %1107 = vmatprep.subr.bf16.mxu0 0
        %1108 = vmatpush1.bf16.msra.mxu0 %v1089
        %1109 = vmatprep.subr.bf16.mxu0 0
        %1110 = vmatpush1.bf16.msra.mxu0 %v1090
        %1111 = vmatprep.subr.bf16.mxu0 0
        %1112 = vmatpush1.bf16.msra.mxu0 %v1091
        %1113 = vmatprep.subr.bf16.mxu0 0
        %1114 = vmatpush1.bf16.msra.mxu0 %v1092
        %1115 = vmatprep.subr.bf16.mxu0 0
        %1116 = vmatpush1.bf16.msra.mxu0 %v1093
        %1117 = vmatprep.subr.bf16.mxu0 0
        %1118 = vmatpush1.bf16.msra.mxu0 %v1094
        %1119 = vmatprep.subr.bf16.mxu0 0
        %1120 = vmatpush1.bf16.msra.mxu0 0
        %1121 = vmatprep.subr.bf16.mxu0 0
        %1122 = vmatpush1.bf16.msra.mxu0 0
        %1123 = vmatprep.subr.bf16.mxu0 0
        %1124 = vmatpush1.bf16.msra.mxu0 0
        %1125 = vmatprep.subr.bf16.mxu0 0
        %1126 = vmatpush1.bf16.msra.mxu0 0
        %1127 = vmatprep.subr.bf16.mxu0 0
        %1128 = vmatpush1.bf16.msra.mxu0 0
        %1129 = vmatprep.subr.bf16.mxu0 0
        %1130 = vmatpush1.bf16.msra.mxu0 0
        %1131 = vmatprep.subr.bf16.mxu0 0
        %1132 = vmatpush1.bf16.msra.mxu0 0
        %1133 = vmatprep.subr.bf16.mxu0 0
        %1134 = vmatpush1.bf16.msra.mxu0 0
        %1135 = vmatprep.mubr.bf16.mxu0 0
        %1136 = vmatmul.mubr.bf16.gmra.mrb[0].mxu0 %v786
        %v1137 = vpop.f32.mrb[0].mxu0
        %v1138 = vadd.f32 %v870, %v1137
        %v1139 = vpop.f32.mrb[0].mxu0
        %v1140 = vpop.f32.mrb[0].mxu0
        %v1141 = vpop.f32.mrb[0].mxu0
        %1142 = vdwg.mxu0
        %v1159 = vunpack.c.l.b16 %v835
        %v1160 = vunpack.c.l.b16 %v836
        %v1161 = vunpack.c.l.b16 %v837
        %v1162 = vunpack.c.l.b16 %v838
        %v1163 = vunpack.c.l.b16 %v839
        %v1164 = vunpack.c.l.b16 %v840
        %v1165 = vunpack.c.l.b16 %v841
        %v1166 = vunpack.c.l.b16 %v842
        %v1167 = vunpack.c.l.b16 %v843
        %v1168 = vunpack.c.l.b16 %v844
        %v1169 = vunpack.c.l.b16 %v845
        %v1170 = vunpack.c.l.b16 %v846
        %v1171 = vunpack.c.l.b16 %v847
        %v1172 = vunpack.c.l.b16 %v848
        %v1173 = vunpack.c.l.b16 %v849
        %v1174 = vunpack.c.l.b16 %v850
        %v1175 = vpack.c.b16 %v1160, %v1159
        %v1176 = vpack.c.b16 %v1162, %v1161
        %v1177 = vpack.c.b16 %v1164, %v1163
        %v1178 = vpack.c.b16 %v1166, %v1165
        %v1179 = vpack.c.b16 %v1168, %v1167
        %v1180 = vpack.c.b16 %v1170, %v1169
        %v1181 = vpack.c.b16 %v1172, %v1171
        %v1182 = vpack.c.b16 %v1174, %v1173
        %1191 = vmatprep.subr.bf16.mxu0 0
        %1192 = vmatpush1.bf16.msra.mxu0 %v1175
        %1193 = vmatprep.subr.bf16.mxu0 0
        %1194 = vmatpush1.bf16.msra.mxu0 %v1176
        %1195 = vmatprep.subr.bf16.mxu0 0
        %1196 = vmatpush1.bf16.msra.mxu0 %v1177
        %1197 = vmatprep.subr.bf16.mxu0 0
        %1198 = vmatpush1.bf16.msra.mxu0 %v1178
        %1199 = vmatprep.subr.bf16.mxu0 0
        %1200 = vmatpush1.bf16.msra.mxu0 %v1179
        %1201 = vmatprep.subr.bf16.mxu0 0
        %1202 = vmatpush1.bf16.msra.mxu0 %v1180
        %1203 = vmatprep.subr.bf16.mxu0 0
        %1204 = vmatpush1.bf16.msra.mxu0 %v1181
        %1205 = vmatprep.subr.bf16.mxu0 0
        %1206 = vmatpush1.bf16.msra.mxu0 %v1182
        %1207 = vmatprep.subr.bf16.mxu0 0
        %1208 = vmatpush1.bf16.msra.mxu0 0
        %1209 = vmatprep.subr.bf16.mxu0 0
        %1210 = vmatpush1.bf16.msra.mxu0 0
        %1211 = vmatprep.subr.bf16.mxu0 0
        %1212 = vmatpush1.bf16.msra.mxu0 0
        %1213 = vmatprep.subr.bf16.mxu0 0
        %1214 = vmatpush1.bf16.msra.mxu0 0
        %1215 = vmatprep.subr.bf16.mxu0 0
        %1216 = vmatpush1.bf16.msra.mxu0 0
        %1217 = vmatprep.subr.bf16.mxu0 0
        %1218 = vmatpush1.bf16.msra.mxu0 0
        %1219 = vmatprep.subr.bf16.mxu0 0
        %1220 = vmatpush1.bf16.msra.mxu0 0
        %1221 = vmatprep.subr.bf16.mxu0 0
        %1222 = vmatpush1.bf16.msra.mxu0 0
        %1223 = vmatprep.mubr.bf16.mxu0 0
        %1224 = vmatmul.mubr.bf16.gmra.mrb[0].mxu0 %v786
        %v1225 = vpop.f32.mrb[0].mxu0
        %v1226 = vadd.f32 %v874, %v1225
        %v1227 = vpop.f32.mrb[0].mxu0
        %v1228 = vpop.f32.mrb[0].mxu0
        %v1229 = vpop.f32.mrb[0].mxu0
        %1230 = vdwg.mxu0
        %v1231 = vld [vmem:[%s6] sm:$0xf]
        %v1232 = vld [vmem:[%s6 + $0x4] sm:$0xf]
        %v1233 = vld [vmem:[%s6 + $0x8] sm:$0xf]
        %v1234 = vld [vmem:[%s6 + $0xc] sm:$0xf]
        %v1235 = vld [vmem:[%s6 + $0x10] sm:$0xf]
        %v1236 = vld [vmem:[%s6 + $0x14] sm:$0xf]
        %v1237 = vld [vmem:[%s6 + $0x18] sm:$0xf]
        %v1238 = vld [vmem:[%s6 + $0x1c] sm:$0xf]
        %v1239 = vld [vmem:[%s6 + $0x20] sm:$0xf]
        %v1240 = vld [vmem:[%s6 + $0x24] sm:$0xf]
        %v1241 = vld [vmem:[%s6 + $0x28] sm:$0xf]
        %v1242 = vld [vmem:[%s6 + $0x2c] sm:$0xf]
        %v1243 = vld [vmem:[%s6 + $0x30] sm:$0xf]
        %v1244 = vld [vmem:[%s6 + $0x34] sm:$0xf]
        %v1245 = vld [vmem:[%s6 + $0x38] sm:$0xf]
        %v1246 = vld [vmem:[%s6 + $0x3c] sm:$0xf]
        %v1247 = vld [vmem:[%s7] sm:$0x1]
        %v1248 = vpack.c.bf16 %v962, %v962
        %v1249 = vpack.c.bf16 %v1050, %v1050
        %v1250 = vpack.c.bf16 %v1138, %v1138
        %v1251 = vpack.c.bf16 %v1226, %v1226
        %1253 = vrot.lane.b32.xlu0 %v1248, 96
        %v1254 = vpop.permute.xlu0 %1253
        %vm1255 = vcmask 261120
        %v1257 = vsel %vm1255, %v1248, 0
        %v1260 = vsel %vm1255, %v1254, 0
        %1262 = vmatprep.subr.bf16.mxu0 0
        %1263 = vmatpush1.bf16.xpose.msra.mxu0 %v1260
        %1264 = vmatprep.subr.bf16.mxu0 0
        %1265 = vmatpush1.bf16.xpose.msra.mxu0 0
        %1266 = vmatprep.subr.bf16.mxu0 0
        %1267 = vmatpush1.bf16.xpose.msra.mxu0 0
        %1268 = vmatprep.subr.bf16.mxu0 0
        %1269 = vmatpush1.bf16.xpose.msra.mxu0 0
        %1270 = vmatprep.subr.bf16.mxu0 0
        %1271 = vmatpush1.bf16.xpose.msra.mxu0 0
        %1272 = vmatprep.subr.bf16.mxu0 0
        %1273 = vmatpush1.bf16.xpose.msra.mxu0 0
        %1274 = vmatprep.subr.bf16.mxu0 0
        %1275 = vmatpush1.bf16.xpose.msra.mxu0 0
        %1276 = vmatprep.subr.bf16.mxu0 0
        %1277 = vmatpush1.bf16.xpose.msra.mxu0 0
        %1278 = vmatprep.subr.bf16.mxu0 0
        %1279 = vmatpush1.bf16.xpose.msra.mxu0 0
        %1280 = vmatprep.subr.bf16.mxu0 0
        %1281 = vmatpush1.bf16.xpose.msra.mxu0 0
        %1282 = vmatprep.subr.bf16.mxu0 0
        %1283 = vmatpush1.bf16.xpose.msra.mxu0 0
        %1284 = vmatprep.subr.bf16.mxu0 0
        %1285 = vmatpush1.bf16.xpose.msra.mxu0 0
        %1286 = vmatprep.subr.bf16.mxu0 0
        %1287 = vmatpush1.bf16.xpose.msra.mxu0 0
        %1288 = vmatprep.subr.bf16.mxu0 0
        %1289 = vmatpush1.bf16.xpose.msra.mxu0 0
        %1290 = vmatprep.subr.bf16.mxu0 0
        %1291 = vmatpush1.bf16.xpose.msra.mxu0 0
        %1292 = vmatprep.subr.bf16.mxu0 0
        %1293 = vmatpush1.bf16.xpose.msra.mxu0 0
        %1294 = vmatprep.mubr.bf16.mxu0 0
        %1295 = vmatmul.mubr.bf16.gmra.mrb[0].mxu0 %v1257
        %v1296 = vpop.f32.mrb[0].mxu0
        %v1297 = vadd.f32 0.0, %v1296
        %v1298 = vpop.f32.mrb[0].mxu0
        %v1299 = vpop.f32.mrb[0].mxu0
        %v1300 = vpop.f32.mrb[0].mxu0
        %1301 = vdwg.mxu0
        %1303 = vrot.lane.b32.xlu0 %v1249, 96
        %v1304 = vpop.permute.xlu0 %1303
        %v1306 = vsel %vm1255, %v1249, 0
        %v1309 = vsel %vm1255, %v1304, 0
        %1311 = vmatprep.subr.bf16.mxu0 0
        %1312 = vmatpush1.bf16.xpose.msra.mxu0 %v1309
        %1313 = vmatprep.subr.bf16.mxu0 0
        %1314 = vmatpush1.bf16.xpose.msra.mxu0 0
        %1315 = vmatprep.subr.bf16.mxu0 0
        %1316 = vmatpush1.bf16.xpose.msra.mxu0 0
        %1317 = vmatprep.subr.bf16.mxu0 0
        %1318 = vmatpush1.bf16.xpose.msra.mxu0 0
        %1319 = vmatprep.subr.bf16.mxu0 0
        %1320 = vmatpush1.bf16.xpose.msra.mxu0 0
        %1321 = vmatprep.subr.bf16.mxu0 0
        %1322 = vmatpush1.bf16.xpose.msra.mxu0 0
        %1323 = vmatprep.subr.bf16.mxu0 0
        %1324 = vmatpush1.bf16.xpose.msra.mxu0 0
        %1325 = vmatprep.subr.bf16.mxu0 0
        %1326 = vmatpush1.bf16.xpose.msra.mxu0 0
        %1327 = vmatprep.subr.bf16.mxu0 0
        %1328 = vmatpush1.bf16.xpose.msra.mxu0 0
        %1329 = vmatprep.subr.bf16.mxu0 0
        %1330 = vmatpush1.bf16.xpose.msra.mxu0 0
        %1331 = vmatprep.subr.bf16.mxu0 0
        %1332 = vmatpush1.bf16.xpose.msra.mxu0 0
        %1333 = vmatprep.subr.bf16.mxu0 0
        %1334 = vmatpush1.bf16.xpose.msra.mxu0 0
        %1335 = vmatprep.subr.bf16.mxu0 0
        %1336 = vmatpush1.bf16.xpose.msra.mxu0 0
        %1337 = vmatprep.subr.bf16.mxu0 0
        %1338 = vmatpush1.bf16.xpose.msra.mxu0 0
        %1339 = vmatprep.subr.bf16.mxu0 0
        %1340 = vmatpush1.bf16.xpose.msra.mxu0 0
        %1341 = vmatprep.subr.bf16.mxu0 0
        %1342 = vmatpush1.bf16.xpose.msra.mxu0 0
        %1343 = vmatprep.mubr.bf16.mxu0 0
        %1344 = vmatmul.mubr.bf16.gmra.mrb[0].mxu0 %v1306
        %v1345 = vpop.f32.mrb[0].mxu0
        %v1346 = vadd.f32 0.0, %v1345
        %v1347 = vpop.f32.mrb[0].mxu0
        %v1348 = vpop.f32.mrb[0].mxu0
        %v1349 = vpop.f32.mrb[0].mxu0
        %1350 = vdwg.mxu0
        %1352 = vrot.lane.b32.xlu0 %v1250, 96
        %v1353 = vpop.permute.xlu0 %1352
        %v1355 = vsel %vm1255, %v1250, 0
        %v1358 = vsel %vm1255, %v1353, 0
        %1360 = vmatprep.subr.bf16.mxu0 0
        %1361 = vmatpush1.bf16.xpose.msra.mxu0 %v1358
        %1362 = vmatprep.subr.bf16.mxu0 0
        %1363 = vmatpush1.bf16.xpose.msra.mxu0 0
        %1364 = vmatprep.subr.bf16.mxu0 0
        %1365 = vmatpush1.bf16.xpose.msra.mxu0 0
        %1366 = vmatprep.subr.bf16.mxu0 0
        %1367 = vmatpush1.bf16.xpose.msra.mxu0 0
        %1368 = vmatprep.subr.bf16.mxu0 0
        %1369 = vmatpush1.bf16.xpose.msra.mxu0 0
        %1370 = vmatprep.subr.bf16.mxu0 0
        %1371 = vmatpush1.bf16.xpose.msra.mxu0 0
        %1372 = vmatprep.subr.bf16.mxu0 0
        %1373 = vmatpush1.bf16.xpose.msra.mxu0 0
        %1374 = vmatprep.subr.bf16.mxu0 0
        %1375 = vmatpush1.bf16.xpose.msra.mxu0 0
        %1376 = vmatprep.subr.bf16.mxu0 0
        %1377 = vmatpush1.bf16.xpose.msra.mxu0 0
        %1378 = vmatprep.subr.bf16.mxu0 0
        %1379 = vmatpush1.bf16.xpose.msra.mxu0 0
        %1380 = vmatprep.subr.bf16.mxu0 0
        %1381 = vmatpush1.bf16.xpose.msra.mxu0 0
        %1382 = vmatprep.subr.bf16.mxu0 0
        %1383 = vmatpush1.bf16.xpose.msra.mxu0 0
        %1384 = vmatprep.subr.bf16.mxu0 0
        %1385 = vmatpush1.bf16.xpose.msra.mxu0 0
        %1386 = vmatprep.subr.bf16.mxu0 0
        %1387 = vmatpush1.bf16.xpose.msra.mxu0 0
        %1388 = vmatprep.subr.bf16.mxu0 0
        %1389 = vmatpush1.bf16.xpose.msra.mxu0 0
        %1390 = vmatprep.subr.bf16.mxu0 0
        %1391 = vmatpush1.bf16.xpose.msra.mxu0 0
        %1392 = vmatprep.mubr.bf16.mxu0 0
        %1393 = vmatmul.mubr.bf16.gmra.mrb[0].mxu0 %v1355
        %v1394 = vpop.f32.mrb[0].mxu0
        %v1395 = vadd.f32 0.0, %v1394
        %v1396 = vpop.f32.mrb[0].mxu0
        %v1397 = vpop.f32.mrb[0].mxu0
        %v1398 = vpop.f32.mrb[0].mxu0
        %1399 = vdwg.mxu0
        %1401 = vrot.lane.b32.xlu0 %v1251, 96
        %v1402 = vpop.permute.xlu0 %1401
        %v1404 = vsel %vm1255, %v1251, 0
        %v1407 = vsel %vm1255, %v1402, 0
        %1409 = vmatprep.subr.bf16.mxu0 0
        %1410 = vmatpush1.bf16.xpose.msra.mxu0 %v1407
        %1411 = vmatprep.subr.bf16.mxu0 0
        %1412 = vmatpush1.bf16.xpose.msra.mxu0 0
        %1413 = vmatprep.subr.bf16.mxu0 0
        %1414 = vmatpush1.bf16.xpose.msra.mxu0 0
        %1415 = vmatprep.subr.bf16.mxu0 0
        %1416 = vmatpush1.bf16.xpose.msra.mxu0 0
        %1417 = vmatprep.subr.bf16.mxu0 0
        %1418 = vmatpush1.bf16.xpose.msra.mxu0 0
        %1419 = vmatprep.subr.bf16.mxu0 0
        %1420 = vmatpush1.bf16.xpose.msra.mxu0 0
        %1421 = vmatprep.subr.bf16.mxu0 0
        %1422 = vmatpush1.bf16.xpose.msra.mxu0 0
        %1423 = vmatprep.subr.bf16.mxu0 0
        %1424 = vmatpush1.bf16.xpose.msra.mxu0 0
        %1425 = vmatprep.subr.bf16.mxu0 0
        %1426 = vmatpush1.bf16.xpose.msra.mxu0 0
        %1427 = vmatprep.subr.bf16.mxu0 0
        %1428 = vmatpush1.bf16.xpose.msra.mxu0 0
        %1429 = vmatprep.subr.bf16.mxu0 0
        %1430 = vmatpush1.bf16.xpose.msra.mxu0 0
        %1431 = vmatprep.subr.bf16.mxu0 0
        %1432 = vmatpush1.bf16.xpose.msra.mxu0 0
        %1433 = vmatprep.subr.bf16.mxu0 0
        %1434 = vmatpush1.bf16.xpose.msra.mxu0 0
        %1435 = vmatprep.subr.bf16.mxu0 0
        %1436 = vmatpush1.bf16.xpose.msra.mxu0 0
        %1437 = vmatprep.subr.bf16.mxu0 0
        %1438 = vmatpush1.bf16.xpose.msra.mxu0 0
        %1439 = vmatprep.subr.bf16.mxu0 0
        %1440 = vmatpush1.bf16.xpose.msra.mxu0 0
        %1441 = vmatprep.mubr.bf16.mxu0 0
        %1442 = vmatmul.mubr.bf16.gmra.mrb[0].mxu0 %v1404
        %v1443 = vpop.f32.mrb[0].mxu0
        %v1444 = vadd.f32 0.0, %v1443
        %v1445 = vpop.f32.mrb[0].mxu0
        %v1446 = vpop.f32.mrb[0].mxu0
        %v1447 = vpop.f32.mrb[0].mxu0
        %1448 = vdwg.mxu0
        %vm1449 = vcmp.eq.f32.partialorder %v784, 0.0
        %v1450 = vsel %vm1449, 1, 0
        %vm1451 = vcmp.eq.s32.totalorder %v1450, 1
        %v1452 = vsel %vm1451, -1e+09, %v1297
        %v1453 = vsel %vm1451, -1e+09, %v1346
        %v1454 = vsel %vm1451, -1e+09, %v1395
        %v1455 = vsel %vm1451, -1e+09, %v1444
        %vm1456 = vcmask 64512
        %v1457 = vsel %vm1456, %v1452, -inf
        %1458 = vmax.xlane.f32.xlu0 %v1457
        %v1459 = vpop.xlane.xlu0 %1458
        %v1460 = vsel %vm1456, %v1453, -inf
        %1461 = vmax.xlane.f32.xlu0 %v1460
        %v1462 = vpop.xlane.xlu0 %1461
        %v1463 = vsel %vm1456, %v1454, -inf
        %1464 = vmax.xlane.f32.xlu0 %v1463
        %v1465 = vpop.xlane.xlu0 %1464
        %v1466 = vsel %vm1456, %v1455, -inf
        %1467 = vmax.xlane.f32.xlu0 %v1466
        %v1468 = vpop.xlane.xlu0 %1467
        %v1469 = vsub.f32 %v1452, %v1459
        %v1470 = vsub.f32 %v1453, %v1462
        %v1471 = vsub.f32 %v1454, %v1465
        %v1472 = vsub.f32 %v1455, %v1468
        %v1473 = vmul.f32 %v1469, 1.442695
        %v1474 = vpow.pop %v1473
        %v1475 = vmul.f32 %v1470, 1.442695
        %v1476 = vpow.pop %v1475
        %v1477 = vmul.f32 %v1471, 1.442695
        %v1478 = vpow.pop %v1477
        %v1479 = vmul.f32 %v1472, 1.442695
        %v1480 = vpow.pop %v1479
        %v1481 = vsel %vm1456, %v1474, 0.0
        %1482 = vadd.xlane.f32.xlu0 %v1481
        %v1483 = vpop.xlane.xlu0 %1482
        %v1484 = vsel %vm1456, %v1476, 0.0
        %1485 = vadd.xlane.f32.xlu0 %v1484
        %v1486 = vpop.xlane.xlu0 %1485
        %v1487 = vsel %vm1456, %v1478, 0.0
        %1488 = vadd.xlane.f32.xlu0 %v1487
        %v1489 = vpop.xlane.xlu0 %1488
        %v1490 = vsel %vm1456, %v1480, 0.0
        %1491 = vadd.xlane.f32.xlu0 %v1490
        %v1492 = vpop.xlane.xlu0 %1491
        %v1493 = vrcp.pop %v1483
        %v1494 = vrcp.pop %v1486
        %v1495 = vrcp.pop %v1489
        %v1496 = vrcp.pop %v1492
        %v1497 = vmul.f32 %v1474, %v1493
        %v1498 = vmul.f32 %v1476, %v1494
        %v1499 = vmul.f32 %v1478, %v1495
        %v1500 = vmul.f32 %v1480, %v1496
        %v1501 = vpack.c.bf16 %v1497, %v1497
        %v1502 = vpack.c.bf16 %v1498, %v1498
        %v1503 = vpack.c.bf16 %v1499, %v1499
        %v1504 = vpack.c.bf16 %v1500, %v1500
        %1505 = vrot.lane.b32.xlu0 %v1248, 64
        %v1506 = vpop.permute.xlu0 %1505
        %v1508 = vsel %vm1456, %v1501, 0
        %vm1510 = vcmask 1043456
        %v1512 = vsel %vm1510, %v1506, 0
        %1514 = vmatprep.subr.bf16.mxu0 0
        %1515 = vmatpush1.bf16.msra.mxu0 %v1512
        %1516 = vmatprep.subr.bf16.mxu0 0
        %1517 = vmatpush1.bf16.msra.mxu0 0
        %1518 = vmatprep.subr.bf16.mxu0 0
        %1519 = vmatpush1.bf16.msra.mxu0 0
        %1520 = vmatprep.subr.bf16.mxu0 0
        %1521 = vmatpush1.bf16.msra.mxu0 0
        %1522 = vmatprep.subr.bf16.mxu0 0
        %1523 = vmatpush1.bf16.msra.mxu0 0
        %1524 = vmatprep.subr.bf16.mxu0 0
        %1525 = vmatpush1.bf16.msra.mxu0 0
        %1526 = vmatprep.subr.bf16.mxu0 0
        %1527 = vmatpush1.bf16.msra.mxu0 0
        %1528 = vmatprep.subr.bf16.mxu0 0
        %1529 = vmatpush1.bf16.msra.mxu0 0
        %1530 = vmatprep.subr.bf16.mxu0 0
        %1531 = vmatpush1.bf16.msra.mxu0 0
        %1532 = vmatprep.subr.bf16.mxu0 0
        %1533 = vmatpush1.bf16.msra.mxu0 0
        %1534 = vmatprep.subr.bf16.mxu0 0
        %1535 = vmatpush1.bf16.msra.mxu0 0
        %1536 = vmatprep.subr.bf16.mxu0 0
        %1537 = vmatpush1.bf16.msra.mxu0 0
        %1538 = vmatprep.subr.bf16.mxu0 0
        %1539 = vmatpush1.bf16.msra.mxu0 0
        %1540 = vmatprep.subr.bf16.mxu0 0
        %1541 = vmatpush1.bf16.msra.mxu0 0
        %1542 = vmatprep.subr.bf16.mxu0 0
        %1543 = vmatpush1.bf16.msra.mxu0 0
        %1544 = vmatprep.subr.bf16.mxu0 0
        %1545 = vmatpush1.bf16.msra.mxu0 0
        %1546 = vmatprep.mubr.bf16.mxu0 0
        %1547 = vmatmul.mubr.bf16.gmra.mrb[0].mxu0 %v1508
        %v1548 = vpop.f32.mrb[0].mxu0
        %v1549 = vadd.f32 0.0, %v1548
        %v1550 = vpop.f32.mrb[0].mxu0
        %v1551 = vpop.f32.mrb[0].mxu0
        %v1552 = vpop.f32.mrb[0].mxu0
        %1553 = vdwg.mxu0
        %1554 = vrot.lane.b32.xlu0 %v1249, 64
        %v1555 = vpop.permute.xlu0 %1554
        %v1557 = vsel %vm1456, %v1502, 0
        %v1560 = vsel %vm1510, %v1555, 0
        %1562 = vmatprep.subr.bf16.mxu0 0
        %1563 = vmatpush1.bf16.msra.mxu0 %v1560
        %1564 = vmatprep.subr.bf16.mxu0 0
        %1565 = vmatpush1.bf16.msra.mxu0 0
        %1566 = vmatprep.subr.bf16.mxu0 0
        %1567 = vmatpush1.bf16.msra.mxu0 0
        %1568 = vmatprep.subr.bf16.mxu0 0
        %1569 = vmatpush1.bf16.msra.mxu0 0
        %1570 = vmatprep.subr.bf16.mxu0 0
        %1571 = vmatpush1.bf16.msra.mxu0 0
        %1572 = vmatprep.subr.bf16.mxu0 0
        %1573 = vmatpush1.bf16.msra.mxu0 0
        %1574 = vmatprep.subr.bf16.mxu0 0
        %1575 = vmatpush1.bf16.msra.mxu0 0
        %1576 = vmatprep.subr.bf16.mxu0 0
        %1577 = vmatpush1.bf16.msra.mxu0 0
        %1578 = vmatprep.subr.bf16.mxu0 0
        %1579 = vmatpush1.bf16.msra.mxu0 0
        %1580 = vmatprep.subr.bf16.mxu0 0
        %1581 = vmatpush1.bf16.msra.mxu0 0
        %1582 = vmatprep.subr.bf16.mxu0 0
        %1583 = vmatpush1.bf16.msra.mxu0 0
        %1584 = vmatprep.subr.bf16.mxu0 0
        %1585 = vmatpush1.bf16.msra.mxu0 0
        %1586 = vmatprep.subr.bf16.mxu0 0
        %1587 = vmatpush1.bf16.msra.mxu0 0
        %1588 = vmatprep.subr.bf16.mxu0 0
        %1589 = vmatpush1.bf16.msra.mxu0 0
        %1590 = vmatprep.subr.bf16.mxu0 0
        %1591 = vmatpush1.bf16.msra.mxu0 0
        %1592 = vmatprep.subr.bf16.mxu0 0
        %1593 = vmatpush1.bf16.msra.mxu0 0
        %1594 = vmatprep.mubr.bf16.mxu0 0
        %1595 = vmatmul.mubr.bf16.gmra.mrb[0].mxu0 %v1557
        %v1596 = vpop.f32.mrb[0].mxu0
        %v1597 = vadd.f32 0.0, %v1596
        %v1598 = vpop.f32.mrb[0].mxu0
        %v1599 = vpop.f32.mrb[0].mxu0
        %v1600 = vpop.f32.mrb[0].mxu0
        %1601 = vdwg.mxu0
        %1602 = vrot.lane.b32.xlu0 %v1250, 64
        %v1603 = vpop.permute.xlu0 %1602
        %v1605 = vsel %vm1456, %v1503, 0
        %v1608 = vsel %vm1510, %v1603, 0
        %1610 = vmatprep.subr.bf16.mxu0 0
        %1611 = vmatpush1.bf16.msra.mxu0 %v1608
        %1612 = vmatprep.subr.bf16.mxu0 0
        %1613 = vmatpush1.bf16.msra.mxu0 0
        %1614 = vmatprep.subr.bf16.mxu0 0
        %1615 = vmatpush1.bf16.msra.mxu0 0
        %1616 = vmatprep.subr.bf16.mxu0 0
        %1617 = vmatpush1.bf16.msra.mxu0 0
        %1618 = vmatprep.subr.bf16.mxu0 0
        %1619 = vmatpush1.bf16.msra.mxu0 0
        %1620 = vmatprep.subr.bf16.mxu0 0
        %1621 = vmatpush1.bf16.msra.mxu0 0
        %1622 = vmatprep.subr.bf16.mxu0 0
        %1623 = vmatpush1.bf16.msra.mxu0 0
        %1624 = vmatprep.subr.bf16.mxu0 0
        %1625 = vmatpush1.bf16.msra.mxu0 0
        %1626 = vmatprep.subr.bf16.mxu0 0
        %1627 = vmatpush1.bf16.msra.mxu0 0
        %1628 = vmatprep.subr.bf16.mxu0 0
        %1629 = vmatpush1.bf16.msra.mxu0 0
        %1630 = vmatprep.subr.bf16.mxu0 0
        %1631 = vmatpush1.bf16.msra.mxu0 0
        %1632 = vmatprep.subr.bf16.mxu0 0
        %1633 = vmatpush1.bf16.msra.mxu0 0
        %1634 = vmatprep.subr.bf16.mxu0 0
        %1635 = vmatpush1.bf16.msra.mxu0 0
        %1636 = vmatprep.subr.bf16.mxu0 0
        %1637 = vmatpush1.bf16.msra.mxu0 0
        %1638 = vmatprep.subr.bf16.mxu0 0
        %1639 = vmatpush1.bf16.msra.mxu0 0
        %1640 = vmatprep.subr.bf16.mxu0 0
        %1641 = vmatpush1.bf16.msra.mxu0 0
        %1642 = vmatprep.mubr.bf16.mxu0 0
        %1643 = vmatmul.mubr.bf16.gmra.mrb[0].mxu0 %v1605
        %v1644 = vpop.f32.mrb[0].mxu0
        %v1645 = vadd.f32 0.0, %v1644
        %v1646 = vpop.f32.mrb[0].mxu0
        %v1647 = vpop.f32.mrb[0].mxu0
        %v1648 = vpop.f32.mrb[0].mxu0
        %1649 = vdwg.mxu0
        %1650 = vrot.lane.b32.xlu0 %v1251, 64
        %v1651 = vpop.permute.xlu0 %1650
        %v1653 = vsel %vm1456, %v1504, 0
        %v1656 = vsel %vm1510, %v1651, 0
        %1658 = vmatprep.subr.bf16.mxu0 0
        %1659 = vmatpush1.bf16.msra.mxu0 %v1656
        %1660 = vmatprep.subr.bf16.mxu0 0
        %1661 = vmatpush1.bf16.msra.mxu0 0
        %1662 = vmatprep.subr.bf16.mxu0 0
        %1663 = vmatpush1.bf16.msra.mxu0 0
        %1664 = vmatprep.subr.bf16.mxu0 0
        %1665 = vmatpush1.bf16.msra.mxu0 0
        %1666 = vmatprep.subr.bf16.mxu0 0
        %1667 = vmatpush1.bf16.msra.mxu0 0
        %1668 = vmatprep.subr.bf16.mxu0 0
        %1669 = vmatpush1.bf16.msra.mxu0 0
        %1670 = vmatprep.subr.bf16.mxu0 0
        %1671 = vmatpush1.bf16.msra.mxu0 0
        %1672 = vmatprep.subr.bf16.mxu0 0
        %1673 = vmatpush1.bf16.msra.mxu0 0
        %1674 = vmatprep.subr.bf16.mxu0 0
        %1675 = vmatpush1.bf16.msra.mxu0 0
        %1676 = vmatprep.subr.bf16.mxu0 0
        %1677 = vmatpush1.bf16.msra.mxu0 0
        %1678 = vmatprep.subr.bf16.mxu0 0
        %1679 = vmatpush1.bf16.msra.mxu0 0
        %1680 = vmatprep.subr.bf16.mxu0 0
        %1681 = vmatpush1.bf16.msra.mxu0 0
        %1682 = vmatprep.subr.bf16.mxu0 0
        %1683 = vmatpush1.bf16.msra.mxu0 0
        %1684 = vmatprep.subr.bf16.mxu0 0
        %1685 = vmatpush1.bf16.msra.mxu0 0
        %1686 = vmatprep.subr.bf16.mxu0 0
        %1687 = vmatpush1.bf16.msra.mxu0 0
        %1688 = vmatprep.subr.bf16.mxu0 0
        %1689 = vmatpush1.bf16.msra.mxu0 0
        %1690 = vmatprep.mubr.bf16.mxu0 0
        %1691 = vmatmul.mubr.bf16.gmra.mrb[0].mxu0 %v1653
        %v1692 = vpop.f32.mrb[0].mxu0
        %v1693 = vadd.f32 0.0, %v1692
        %v1694 = vpop.f32.mrb[0].mxu0
        %v1695 = vpop.f32.mrb[0].mxu0
        %v1696 = vpop.f32.mrb[0].mxu0
        %1697 = vdwg.mxu0
        %v1698 = vpack.c.bf16 %v1549, %v1549
        %v1699 = vpack.c.bf16 %v1597, %v1597
        %v1700 = vpack.c.bf16 %v1645, %v1645
        %v1701 = vpack.c.bf16 %v1693, %v1693
        %v1706 = vunpack.c.l.b16 %v1231
        %v1707 = vunpack.c.l.b16 %v1232
        %v1708 = vunpack.c.l.b16 %v1233
        %v1709 = vunpack.c.l.b16 %v1234
        %v1710 = vpack.c.b16 %v1707, %v1706
        %v1711 = vpack.c.b16 %v1709, %v1708
        %v1715 = vsel %vm1255, %v1698, 0
        %1717 = vmatprep.subr.bf16.mxu0 0
        %1718 = vmatpush1.bf16.msra.mxu0 %v1710
        %1719 = vmatprep.subr.bf16.mxu0 0
        %1720 = vmatpush1.bf16.msra.mxu0 %v1711
        %1721 = vmatprep.subr.bf16.mxu0 0
        %1722 = vmatpush1.bf16.msra.mxu0 0
        %1723 = vmatprep.subr.bf16.mxu0 0
        %1724 = vmatpush1.bf16.msra.mxu0 0
        %1725 = vmatprep.subr.bf16.mxu0 0
        %1726 = vmatpush1.bf16.msra.mxu0 0
        %1727 = vmatprep.subr.bf16.mxu0 0
        %1728 = vmatpush1.bf16.msra.mxu0 0
        %1729 = vmatprep.subr.bf16.mxu0 0
        %1730 = vmatpush1.bf16.msra.mxu0 0
        %1731 = vmatprep.subr.bf16.mxu0 0
        %1732 = vmatpush1.bf16.msra.mxu0 0
        %1733 = vmatprep.subr.bf16.mxu0 0
        %1734 = vmatpush1.bf16.msra.mxu0 0
        %1735 = vmatprep.subr.bf16.mxu0 0
        %1736 = vmatpush1.bf16.msra.mxu0 0
        %1737 = vmatprep.subr.bf16.mxu0 0
        %1738 = vmatpush1.bf16.msra.mxu0 0
        %1739 = vmatprep.subr.bf16.mxu0 0
        %1740 = vmatpush1.bf16.msra.mxu0 0
        %1741 = vmatprep.subr.bf16.mxu0 0
        %1742 = vmatpush1.bf16.msra.mxu0 0
        %1743 = vmatprep.subr.bf16.mxu0 0
        %1744 = vmatpush1.bf16.msra.mxu0 0
        %1745 = vmatprep.subr.bf16.mxu0 0
        %1746 = vmatpush1.bf16.msra.mxu0 0
        %1747 = vmatprep.subr.bf16.mxu0 0
        %1748 = vmatpush1.bf16.msra.mxu0 0
        %1749 = vmatprep.mubr.bf16.mxu0 0
        %1750 = vmatmul.mubr.bf16.gmra.mrb[0].mxu0 %v1715
        %v1751 = vpop.f32.mrb[0].mxu0
        %v1752 = vadd.f32 0.0, %v1751
        %v1753 = vpop.f32.mrb[0].mxu0
        %v1754 = vpop.f32.mrb[0].mxu0
        %v1755 = vpop.f32.mrb[0].mxu0
        %1756 = vdwg.mxu0
        %v1761 = vunpack.c.l.b16 %v1235
        %v1762 = vunpack.c.l.b16 %v1236
        %v1763 = vunpack.c.l.b16 %v1237
        %v1764 = vunpack.c.l.b16 %v1238
        %v1765 = vpack.c.b16 %v1762, %v1761
        %v1766 = vpack.c.b16 %v1764, %v1763
        %v1770 = vsel %vm1255, %v1699, 0
        %1772 = vmatprep.subr.bf16.mxu0 0
        %1773 = vmatpush1.bf16.msra.mxu0 %v1765
        %1774 = vmatprep.subr.bf16.mxu0 0
        %1775 = vmatpush1.bf16.msra.mxu0 %v1766
        %1776 = vmatprep.subr.bf16.mxu0 0
        %1777 = vmatpush1.bf16.msra.mxu0 0
        %1778 = vmatprep.subr.bf16.mxu0 0
        %1779 = vmatpush1.bf16.msra.mxu0 0
        %1780 = vmatprep.subr.bf16.mxu0 0
        %1781 = vmatpush1.bf16.msra.mxu0 0
        %1782 = vmatprep.subr.bf16.mxu0 0
        %1783 = vmatpush1.bf16.msra.mxu0 0
        %1784 = vmatprep.subr.bf16.mxu0 0
        %1785 = vmatpush1.bf16.msra.mxu0 0
        %1786 = vmatprep.subr.bf16.mxu0 0
        %1787 = vmatpush1.bf16.msra.mxu0 0
        %1788 = vmatprep.subr.bf16.mxu0 0
        %1789 = vmatpush1.bf16.msra.mxu0 0
        %1790 = vmatprep.subr.bf16.mxu0 0
        %1791 = vmatpush1.bf16.msra.mxu0 0
        %1792 = vmatprep.subr.bf16.mxu0 0
        %1793 = vmatpush1.bf16.msra.mxu0 0
        %1794 = vmatprep.subr.bf16.mxu0 0
        %1795 = vmatpush1.bf16.msra.mxu0 0
        %1796 = vmatprep.subr.bf16.mxu0 0
        %1797 = vmatpush1.bf16.msra.mxu0 0
        %1798 = vmatprep.subr.bf16.mxu0 0
        %1799 = vmatpush1.bf16.msra.mxu0 0
        %1800 = vmatprep.subr.bf16.mxu0 0
        %1801 = vmatpush1.bf16.msra.mxu0 0
        %1802 = vmatprep.subr.bf16.mxu0 0
        %1803 = vmatpush1.bf16.msra.mxu0 0
        %1804 = vmatprep.mubr.bf16.mxu0 0
        %1805 = vmatmul.mubr.bf16.gmra.mrb[0].mxu0 %v1770
        %v1806 = vpop.f32.mrb[0].mxu0
        %v1807 = vadd.f32 0.0, %v1806
        %v1808 = vpop.f32.mrb[0].mxu0
        %v1809 = vpop.f32.mrb[0].mxu0
        %v1810 = vpop.f32.mrb[0].mxu0
        %1811 = vdwg.mxu0
        %v1816 = vunpack.c.l.b16 %v1239
        %v1817 = vunpack.c.l.b16 %v1240
        %v1818 = vunpack.c.l.b16 %v1241
        %v1819 = vunpack.c.l.b16 %v1242
        %v1820 = vpack.c.b16 %v1817, %v1816
        %v1821 = vpack.c.b16 %v1819, %v1818
        %v1825 = vsel %vm1255, %v1700, 0
        %1827 = vmatprep.subr.bf16.mxu0 0
        %1828 = vmatpush1.bf16.msra.mxu0 %v1820
        %1829 = vmatprep.subr.bf16.mxu0 0
        %1830 = vmatpush1.bf16.msra.mxu0 %v1821
        %1831 = vmatprep.subr.bf16.mxu0 0
        %1832 = vmatpush1.bf16.msra.mxu0 0
        %1833 = vmatprep.subr.bf16.mxu0 0
        %1834 = vmatpush1.bf16.msra.mxu0 0
        %1835 = vmatprep.subr.bf16.mxu0 0
        %1836 = vmatpush1.bf16.msra.mxu0 0
        %1837 = vmatprep.subr.bf16.mxu0 0
        %1838 = vmatpush1.bf16.msra.mxu0 0
        %1839 = vmatprep.subr.bf16.mxu0 0
        %1840 = vmatpush1.bf16.msra.mxu0 0
        %1841 = vmatprep.subr.bf16.mxu0 0
        %1842 = vmatpush1.bf16.msra.mxu0 0
        %1843 = vmatprep.subr.bf16.mxu0 0
        %1844 = vmatpush1.bf16.msra.mxu0 0
        %1845 = vmatprep.subr.bf16.mxu0 0
        %1846 = vmatpush1.bf16.msra.mxu0 0
        %1847 = vmatprep.subr.bf16.mxu0 0
        %1848 = vmatpush1.bf16.msra.mxu0 0
        %1849 = vmatprep.subr.bf16.mxu0 0
        %1850 = vmatpush1.bf16.msra.mxu0 0
        %1851 = vmatprep.subr.bf16.mxu0 0
        %1852 = vmatpush1.bf16.msra.mxu0 0
        %1853 = vmatprep.subr.bf16.mxu0 0
        %1854 = vmatpush1.bf16.msra.mxu0 0
        %1855 = vmatprep.subr.bf16.mxu0 0
        %1856 = vmatpush1.bf16.msra.mxu0 0
        %1857 = vmatprep.subr.bf16.mxu0 0
        %1858 = vmatpush1.bf16.msra.mxu0 0
        %1859 = vmatprep.mubr.bf16.mxu0 0
        %1860 = vmatmul.mubr.bf16.gmra.mrb[0].mxu0 %v1825
        %v1861 = vpop.f32.mrb[0].mxu0
        %v1862 = vadd.f32 0.0, %v1861
        %v1863 = vpop.f32.mrb[0].mxu0
        %v1864 = vpop.f32.mrb[0].mxu0
        %v1865 = vpop.f32.mrb[0].mxu0
        %1866 = vdwg.mxu0
        %v1871 = vunpack.c.l.b16 %v1243
        %v1872 = vunpack.c.l.b16 %v1244
        %v1873 = vunpack.c.l.b16 %v1245
        %v1874 = vunpack.c.l.b16 %v1246
        %v1875 = vpack.c.b16 %v1872, %v1871
        %v1876 = vpack.c.b16 %v1874, %v1873
        %v1880 = vsel %vm1255, %v1701, 0
        %1882 = vmatprep.subr.bf16.mxu0 0
        %1883 = vmatpush1.bf16.msra.mxu0 %v1875
        %1884 = vmatprep.subr.bf16.mxu0 0
        %1885 = vmatpush1.bf16.msra.mxu0 %v1876
        %1886 = vmatprep.subr.bf16.mxu0 0
        %1887 = vmatpush1.bf16.msra.mxu0 0
        %1888 = vmatprep.subr.bf16.mxu0 0
        %1889 = vmatpush1.bf16.msra.mxu0 0
        %1890 = vmatprep.subr.bf16.mxu0 0
        %1891 = vmatpush1.bf16.msra.mxu0 0
        %1892 = vmatprep.subr.bf16.mxu0 0
        %1893 = vmatpush1.bf16.msra.mxu0 0
        %1894 = vmatprep.subr.bf16.mxu0 0
        %1895 = vmatpush1.bf16.msra.mxu0 0
        %1896 = vmatprep.subr.bf16.mxu0 0
        %1897 = vmatpush1.bf16.msra.mxu0 0
        %1898 = vmatprep.subr.bf16.mxu0 0
        %1899 = vmatpush1.bf16.msra.mxu0 0
        %1900 = vmatprep.subr.bf16.mxu0 0
        %1901 = vmatpush1.bf16.msra.mxu0 0
        %1902 = vmatprep.subr.bf16.mxu0 0
        %1903 = vmatpush1.bf16.msra.mxu0 0
        %1904 = vmatprep.subr.bf16.mxu0 0
        %1905 = vmatpush1.bf16.msra.mxu0 0
        %1906 = vmatprep.subr.bf16.mxu0 0
        %1907 = vmatpush1.bf16.msra.mxu0 0
        %1908 = vmatprep.subr.bf16.mxu0 0
        %1909 = vmatpush1.bf16.msra.mxu0 0
        %1910 = vmatprep.subr.bf16.mxu0 0
        %1911 = vmatpush1.bf16.msra.mxu0 0
        %1912 = vmatprep.subr.bf16.mxu0 0
        %1913 = vmatpush1.bf16.msra.mxu0 0
        %1914 = vmatprep.mubr.bf16.mxu0 0
        %1915 = vmatmul.mubr.bf16.gmra.mrb[0].mxu0 %v1880
        %v1916 = vpop.f32.mrb[0].mxu0
        %v1917 = vadd.f32 0.0, %v1916
        %v1918 = vpop.f32.mrb[0].mxu0
        %v1919 = vpop.f32.mrb[0].mxu0
        %v1920 = vpop.f32.mrb[0].mxu0
        %1921 = vdwg.mxu0
        %v1922 = vadd.f32 %v1752, %v1807
        %v1923 = vadd.f32 %v1922, %v1862
        %v1924 = vadd.f32 %v1923, %v1917
        %v1926 = vlaneseq
        %v1927 = vshrl.u32 %v1926, 7
        %v1928 = vsub.s32 0, %v1927
        %v1929 = vrot.slane %v1247, %v1928
        %v1931 = vadd.f32 %v1924, %v1929
        %v1932 = vadd.f32 %v782, %v1931
        %v1933 = vld [vmem:[%s18] sm:$0x1]
        %v1934 = vld [vmem:[%s19] sm:$0x1]
        %1935 = vadd.xlane.f32.xlu0 %v1932
        %v1936 = vpop.xlane.xlu0 %1935
        %v1937 = vrcp.pop 128.0
        %v1938 = vmul.f32 %v1936, %v1937
        %v1939 = vsub.f32 %v1932, %v1938
        %v1940 = vmul.f32 %v1939, %v1939
        %1941 = vadd.xlane.f32.xlu0 %v1940
        %v1942 = vpop.xlane.xlu0 %1941
        %v1943 = vmul.f32 %v1942, %v1937
        %v1944 = vadd.f32 %v1943, 1e-05
        %v1945 = vrsqrt.pop %v1944
        %v1946 = vmul.f32 %v1939, %v1945
        %v1948 = vlaneseq
        %v1949 = vshrl.u32 %v1948, 7
        %v1950 = vsub.s32 0, %v1949
        %v1951 = vrot.slane %v1933, %v1950
        %v1953 = vmul.f32 %v1946, %v1951
        %v1955 = vlaneseq
        %v1956 = vshrl.u32 %v1955, 7
        %v1957 = vsub.s32 0, %v1956
        %v1958 = vrot.slane %v1934, %v1957
        %v1960 = vadd.f32 %v1953, %v1958
        %v1961 = vpack.c.bf16 %v1960, %v1960
        %v1962 = vld [vmem:[%s8] sm:$0xf]
        %v1963 = vld [vmem:[%s8 + $0x4] sm:$0xf]
        %v1964 = vld [vmem:[%s8 + $0x8] sm:$0xf]
        %v1965 = vld [vmem:[%s8 + $0xc] sm:$0xf]
        %v1966 = vld [vmem:[%s8 + $0x10] sm:$0xf]
        %v1967 = vld [vmem:[%s8 + $0x14] sm:$0xf]
        %v1968 = vld [vmem:[%s8 + $0x18] sm:$0xf]
        %v1969 = vld [vmem:[%s8 + $0x1c] sm:$0xf]
        %v1970 = vld [vmem:[%s8 + $0x20] sm:$0xf]
        %v1971 = vld [vmem:[%s8 + $0x24] sm:$0xf]
        %v1972 = vld [vmem:[%s8 + $0x28] sm:$0xf]
        %v1973 = vld [vmem:[%s8 + $0x2c] sm:$0xf]
        %v1974 = vld [vmem:[%s8 + $0x30] sm:$0xf]
        %v1975 = vld [vmem:[%s8 + $0x34] sm:$0xf]
        %v1976 = vld [vmem:[%s8 + $0x38] sm:$0xf]
        %v1977 = vld [vmem:[%s8 + $0x3c] sm:$0xf]
        %v1978 = vld [vmem:[%s8 + $0x40] sm:$0xf]
        %v1979 = vld [vmem:[%s8 + $0x44] sm:$0xf]
        %v1980 = vld [vmem:[%s8 + $0x48] sm:$0xf]
        %v1981 = vld [vmem:[%s8 + $0x4c] sm:$0xf]
        %v1982 = vld [vmem:[%s8 + $0x50] sm:$0xf]
        %v1983 = vld [vmem:[%s8 + $0x54] sm:$0xf]
        %v1984 = vld [vmem:[%s8 + $0x58] sm:$0xf]
        %v1985 = vld [vmem:[%s8 + $0x5c] sm:$0xf]
        %v1986 = vld [vmem:[%s8 + $0x60] sm:$0xf]
        %v1987 = vld [vmem:[%s8 + $0x64] sm:$0xf]
        %v1988 = vld [vmem:[%s8 + $0x68] sm:$0xf]
        %v1989 = vld [vmem:[%s8 + $0x6c] sm:$0xf]
        %v1990 = vld [vmem:[%s8 + $0x70] sm:$0xf]
        %v1991 = vld [vmem:[%s8 + $0x74] sm:$0xf]
        %v1992 = vld [vmem:[%s8 + $0x78] sm:$0xf]
        %v1993 = vld [vmem:[%s8 + $0x7c] sm:$0xf]
        %v1994 = vld [vmem:[%s8 + $0x80] sm:$0xf]
        %v1995 = vld [vmem:[%s8 + $0x84] sm:$0xf]
        %v1996 = vld [vmem:[%s8 + $0x88] sm:$0xf]
        %v1997 = vld [vmem:[%s8 + $0x8c] sm:$0xf]
        %v1998 = vld [vmem:[%s8 + $0x90] sm:$0xf]
        %v1999 = vld [vmem:[%s8 + $0x94] sm:$0xf]
        %v2000 = vld [vmem:[%s8 + $0x98] sm:$0xf]
        %v2001 = vld [vmem:[%s8 + $0x9c] sm:$0xf]
        %v2002 = vld [vmem:[%s8 + $0xa0] sm:$0xf]
        %v2003 = vld [vmem:[%s8 + $0xa4] sm:$0xf]
        %v2004 = vld [vmem:[%s8 + $0xa8] sm:$0xf]
        %v2005 = vld [vmem:[%s8 + $0xac] sm:$0xf]
        %v2006 = vld [vmem:[%s8 + $0xb0] sm:$0xf]
        %v2007 = vld [vmem:[%s8 + $0xb4] sm:$0xf]
        %v2008 = vld [vmem:[%s8 + $0xb8] sm:$0xf]
        %v2009 = vld [vmem:[%s8 + $0xbc] sm:$0xf]
        %v2010 = vld [vmem:[%s8 + $0xc0] sm:$0xf]
        %v2011 = vld [vmem:[%s8 + $0xc4] sm:$0xf]
        %v2012 = vld [vmem:[%s8 + $0xc8] sm:$0xf]
        %v2013 = vld [vmem:[%s8 + $0xcc] sm:$0xf]
        %v2014 = vld [vmem:[%s8 + $0xd0] sm:$0xf]
        %v2015 = vld [vmem:[%s8 + $0xd4] sm:$0xf]
        %v2016 = vld [vmem:[%s8 + $0xd8] sm:$0xf]
        %v2017 = vld [vmem:[%s8 + $0xdc] sm:$0xf]
        %v2018 = vld [vmem:[%s8 + $0xe0] sm:$0xf]
        %v2019 = vld [vmem:[%s8 + $0xe4] sm:$0xf]
        %v2020 = vld [vmem:[%s8 + $0xe8] sm:$0xf]
        %v2021 = vld [vmem:[%s8 + $0xec] sm:$0xf]
        %v2022 = vld [vmem:[%s8 + $0xf0] sm:$0xf]
        %v2023 = vld [vmem:[%s8 + $0xf4] sm:$0xf]
        %v2024 = vld [vmem:[%s8 + $0xf8] sm:$0xf]
        %v2025 = vld [vmem:[%s8 + $0xfc] sm:$0xf]
        %v2026 = vld [vmem:[%s9] sm:$0x1]
        %v2027 = vld [vmem:[%s9 + $0x1] sm:$0x1]
        %v2028 = vld [vmem:[%s9 + $0x2] sm:$0x1]
        %v2029 = vld [vmem:[%s9 + $0x3] sm:$0x1]
        %v2034 = vlaneseq
        %v2035 = vshrl.u32 %v2034, 7
        %v2036 = vsub.s32 0, %v2035
        %v2037 = vrot.slane %v2026, %v2036
        %v2038 = vlaneseq
        %v2039 = vshrl.u32 %v2038, 7
        %v2040 = vsub.s32 0, %v2039
        %v2041 = vrot.slane %v2027, %v2040
        %v2042 = vlaneseq
        %v2043 = vshrl.u32 %v2042, 7
        %v2044 = vsub.s32 0, %v2043
        %v2045 = vrot.slane %v2028, %v2044
        %v2046 = vlaneseq
        %v2047 = vshrl.u32 %v2046, 7
        %v2048 = vsub.s32 0, %v2047
        %v2049 = vrot.slane %v2029, %v2048
        %v2070 = vunpack.c.l.b16 %v1962
        %v2071 = vunpack.c.l.b16 %v1963
        %v2072 = vunpack.c.l.b16 %v1964
        %v2073 = vunpack.c.l.b16 %v1965
        %v2074 = vunpack.c.l.b16 %v1966
        %v2075 = vunpack.c.l.b16 %v1967
        %v2076 = vunpack.c.l.b16 %v1968
        %v2077 = vunpack.c.l.b16 %v1969
        %v2078 = vunpack.c.l.b16 %v1970
        %v2079 = vunpack.c.l.b16 %v1971
        %v2080 = vunpack.c.l.b16 %v1972
        %v2081 = vunpack.c.l.b16 %v1973
        %v2082 = vunpack.c.l.b16 %v1974
        %v2083 = vunpack.c.l.b16 %v1975
        %v2084 = vunpack.c.l.b16 %v1976
        %v2085 = vunpack.c.l.b16 %v1977
        %v2086 = vpack.c.b16 %v2071, %v2070
        %v2087 = vpack.c.b16 %v2073, %v2072
        %v2088 = vpack.c.b16 %v2075, %v2074
        %v2089 = vpack.c.b16 %v2077, %v2076
        %v2090 = vpack.c.b16 %v2079, %v2078
        %v2091 = vpack.c.b16 %v2081, %v2080
        %v2092 = vpack.c.b16 %v2083, %v2082
        %v2093 = vpack.c.b16 %v2085, %v2084
        %2102 = vmatprep.subr.bf16.mxu0 0
        %2103 = vmatpush1.bf16.msra.mxu0 %v2086
        %2104 = vmatprep.subr.bf16.mxu0 0
        %2105 = vmatpush1.bf16.msra.mxu0 %v2087
        %2106 = vmatprep.subr.bf16.mxu0 0
        %2107 = vmatpush1.bf16.msra.mxu0 %v2088
        %2108 = vmatprep.subr.bf16.mxu0 0
        %2109 = vmatpush1.bf16.msra.mxu0 %v2089
        %2110 = vmatprep.subr.bf16.mxu0 0
        %2111 = vmatpush1.bf16.msra.mxu0 %v2090
        %2112 = vmatprep.subr.bf16.mxu0 0
        %2113 = vmatpush1.bf16.msra.mxu0 %v2091
        %2114 = vmatprep.subr.bf16.mxu0 0
        %2115 = vmatpush1.bf16.msra.mxu0 %v2092
        %2116 = vmatprep.subr.bf16.mxu0 0
        %2117 = vmatpush1.bf16.msra.mxu0 %v2093
        %2118 = vmatprep.subr.bf16.mxu0 0
        %2119 = vmatpush1.bf16.msra.mxu0 0
        %2120 = vmatprep.subr.bf16.mxu0 0
        %2121 = vmatpush1.bf16.msra.mxu0 0
        %2122 = vmatprep.subr.bf16.mxu0 0
        %2123 = vmatpush1.bf16.msra.mxu0 0
        %2124 = vmatprep.subr.bf16.mxu0 0
        %2125 = vmatpush1.bf16.msra.mxu0 0
        %2126 = vmatprep.subr.bf16.mxu0 0
        %2127 = vmatpush1.bf16.msra.mxu0 0
        %2128 = vmatprep.subr.bf16.mxu0 0
        %2129 = vmatpush1.bf16.msra.mxu0 0
        %2130 = vmatprep.subr.bf16.mxu0 0
        %2131 = vmatpush1.bf16.msra.mxu0 0
        %2132 = vmatprep.subr.bf16.mxu0 0
        %2133 = vmatpush1.bf16.msra.mxu0 0
        %2134 = vmatprep.mubr.bf16.mxu0 0
        %2135 = vmatmul.mubr.bf16.gmra.mrb[0].mxu0 %v1961
        %v2136 = vpop.f32.mrb[0].mxu0
        %v2137 = vadd.f32 %v2037, %v2136
        %v2138 = vpop.f32.mrb[0].mxu0
        %v2139 = vpop.f32.mrb[0].mxu0
        %v2140 = vpop.f32.mrb[0].mxu0
        %2141 = vdwg.mxu0
        %v2158 = vunpack.c.l.b16 %v1978
        %v2159 = vunpack.c.l.b16 %v1979
        %v2160 = vunpack.c.l.b16 %v1980
        %v2161 = vunpack.c.l.b16 %v1981
        %v2162 = vunpack.c.l.b16 %v1982
        %v2163 = vunpack.c.l.b16 %v1983
        %v2164 = vunpack.c.l.b16 %v1984
        %v2165 = vunpack.c.l.b16 %v1985
        %v2166 = vunpack.c.l.b16 %v1986
        %v2167 = vunpack.c.l.b16 %v1987
        %v2168 = vunpack.c.l.b16 %v1988
        %v2169 = vunpack.c.l.b16 %v1989
        %v2170 = vunpack.c.l.b16 %v1990
        %v2171 = vunpack.c.l.b16 %v1991
        %v2172 = vunpack.c.l.b16 %v1992
        %v2173 = vunpack.c.l.b16 %v1993
        %v2174 = vpack.c.b16 %v2159, %v2158
        %v2175 = vpack.c.b16 %v2161, %v2160
        %v2176 = vpack.c.b16 %v2163, %v2162
        %v2177 = vpack.c.b16 %v2165, %v2164
        %v2178 = vpack.c.b16 %v2167, %v2166
        %v2179 = vpack.c.b16 %v2169, %v2168
        %v2180 = vpack.c.b16 %v2171, %v2170
        %v2181 = vpack.c.b16 %v2173, %v2172
        %2190 = vmatprep.subr.bf16.mxu0 0
        %2191 = vmatpush1.bf16.msra.mxu0 %v2174
        %2192 = vmatprep.subr.bf16.mxu0 0
        %2193 = vmatpush1.bf16.msra.mxu0 %v2175
        %2194 = vmatprep.subr.bf16.mxu0 0
        %2195 = vmatpush1.bf16.msra.mxu0 %v2176
        %2196 = vmatprep.subr.bf16.mxu0 0
        %2197 = vmatpush1.bf16.msra.mxu0 %v2177
        %2198 = vmatprep.subr.bf16.mxu0 0
        %2199 = vmatpush1.bf16.msra.mxu0 %v2178
        %2200 = vmatprep.subr.bf16.mxu0 0
        %2201 = vmatpush1.bf16.msra.mxu0 %v2179
        %2202 = vmatprep.subr.bf16.mxu0 0
        %2203 = vmatpush1.bf16.msra.mxu0 %v2180
        %2204 = vmatprep.subr.bf16.mxu0 0
        %2205 = vmatpush1.bf16.msra.mxu0 %v2181
        %2206 = vmatprep.subr.bf16.mxu0 0
        %2207 = vmatpush1.bf16.msra.mxu0 0
        %2208 = vmatprep.subr.bf16.mxu0 0
        %2209 = vmatpush1.bf16.msra.mxu0 0
        %2210 = vmatprep.subr.bf16.mxu0 0
        %2211 = vmatpush1.bf16.msra.mxu0 0
        %2212 = vmatprep.subr.bf16.mxu0 0
        %2213 = vmatpush1.bf16.msra.mxu0 0
        %2214 = vmatprep.subr.bf16.mxu0 0
        %2215 = vmatpush1.bf16.msra.mxu0 0
        %2216 = vmatprep.subr.bf16.mxu0 0
        %2217 = vmatpush1.bf16.msra.mxu0 0
        %2218 = vmatprep.subr.bf16.mxu0 0
        %2219 = vmatpush1.bf16.msra.mxu0 0
        %2220 = vmatprep.subr.bf16.mxu0 0
        %2221 = vmatpush1.bf16.msra.mxu0 0
        %2222 = vmatprep.mubr.bf16.mxu0 0
        %2223 = vmatmul.mubr.bf16.gmra.mrb[0].mxu0 %v1961
        %v2224 = vpop.f32.mrb[0].mxu0
        %v2225 = vadd.f32 %v2041, %v2224
        %v2226 = vpop.f32.mrb[0].mxu0
        %v2227 = vpop.f32.mrb[0].mxu0
        %v2228 = vpop.f32.mrb[0].mxu0
        %2229 = vdwg.mxu0
        %v2246 = vunpack.c.l.b16 %v1994
        %v2247 = vunpack.c.l.b16 %v1995
        %v2248 = vunpack.c.l.b16 %v1996
        %v2249 = vunpack.c.l.b16 %v1997
        %v2250 = vunpack.c.l.b16 %v1998
        %v2251 = vunpack.c.l.b16 %v1999
        %v2252 = vunpack.c.l.b16 %v2000
        %v2253 = vunpack.c.l.b16 %v2001
        %v2254 = vunpack.c.l.b16 %v2002
        %v2255 = vunpack.c.l.b16 %v2003
        %v2256 = vunpack.c.l.b16 %v2004
        %v2257 = vunpack.c.l.b16 %v2005
        %v2258 = vunpack.c.l.b16 %v2006
        %v2259 = vunpack.c.l.b16 %v2007
        %v2260 = vunpack.c.l.b16 %v2008
        %v2261 = vunpack.c.l.b16 %v2009
        %v2262 = vpack.c.b16 %v2247, %v2246
        %v2263 = vpack.c.b16 %v2249, %v2248
        %v2264 = vpack.c.b16 %v2251, %v2250
        %v2265 = vpack.c.b16 %v2253, %v2252
        %v2266 = vpack.c.b16 %v2255, %v2254
        %v2267 = vpack.c.b16 %v2257, %v2256
        %v2268 = vpack.c.b16 %v2259, %v2258
        %v2269 = vpack.c.b16 %v2261, %v2260
        %2278 = vmatprep.subr.bf16.mxu0 0
        %2279 = vmatpush1.bf16.msra.mxu0 %v2262
        %2280 = vmatprep.subr.bf16.mxu0 0
        %2281 = vmatpush1.bf16.msra.mxu0 %v2263
        %2282 = vmatprep.subr.bf16.mxu0 0
        %2283 = vmatpush1.bf16.msra.mxu0 %v2264
        %2284 = vmatprep.subr.bf16.mxu0 0
        %2285 = vmatpush1.bf16.msra.mxu0 %v2265
        %2286 = vmatprep.subr.bf16.mxu0 0
        %2287 = vmatpush1.bf16.msra.mxu0 %v2266
        %2288 = vmatprep.subr.bf16.mxu0 0
        %2289 = vmatpush1.bf16.msra.mxu0 %v2267
        %2290 = vmatprep.subr.bf16.mxu0 0
        %2291 = vmatpush1.bf16.msra.mxu0 %v2268
        %2292 = vmatprep.subr.bf16.mxu0 0
        %2293 = vmatpush1.bf16.msra.mxu0 %v2269
        %2294 = vmatprep.subr.bf16.mxu0 0
        %2295 = vmatpush1.bf16.msra.mxu0 0
        %2296 = vmatprep.subr.bf16.mxu0 0
        %2297 = vmatpush1.bf16.msra.mxu0 0
        %2298 = vmatprep.subr.bf16.mxu0 0
        %2299 = vmatpush1.bf16.msra.mxu0 0
        %2300 = vmatprep.subr.bf16.mxu0 0
        %2301 = vmatpush1.bf16.msra.mxu0 0
        %2302 = vmatprep.subr.bf16.mxu0 0
        %2303 = vmatpush1.bf16.msra.mxu0 0
        %2304 = vmatprep.subr.bf16.mxu0 0
        %2305 = vmatpush1.bf16.msra.mxu0 0
        %2306 = vmatprep.subr.bf16.mxu0 0
        %2307 = vmatpush1.bf16.msra.mxu0 0
        %2308 = vmatprep.subr.bf16.mxu0 0
        %2309 = vmatpush1.bf16.msra.mxu0 0
        %2310 = vmatprep.mubr.bf16.mxu0 0
        %2311 = vmatmul.mubr.bf16.gmra.mrb[0].mxu0 %v1961
        %v2312 = vpop.f32.mrb[0].mxu0
        %v2313 = vadd.f32 %v2045, %v2312
        %v2314 = vpop.f32.mrb[0].mxu0
        %v2315 = vpop.f32.mrb[0].mxu0
        %v2316 = vpop.f32.mrb[0].mxu0
        %2317 = vdwg.mxu0
        %v2334 = vunpack.c.l.b16 %v2010
        %v2335 = vunpack.c.l.b16 %v2011
        %v2336 = vunpack.c.l.b16 %v2012
        %v2337 = vunpack.c.l.b16 %v2013
        %v2338 = vunpack.c.l.b16 %v2014
        %v2339 = vunpack.c.l.b16 %v2015
        %v2340 = vunpack.c.l.b16 %v2016
        %v2341 = vunpack.c.l.b16 %v2017
        %v2342 = vunpack.c.l.b16 %v2018
        %v2343 = vunpack.c.l.b16 %v2019
        %v2344 = vunpack.c.l.b16 %v2020
        %v2345 = vunpack.c.l.b16 %v2021
        %v2346 = vunpack.c.l.b16 %v2022
        %v2347 = vunpack.c.l.b16 %v2023
        %v2348 = vunpack.c.l.b16 %v2024
        %v2349 = vunpack.c.l.b16 %v2025
        %v2350 = vpack.c.b16 %v2335, %v2334
        %v2351 = vpack.c.b16 %v2337, %v2336
        %v2352 = vpack.c.b16 %v2339, %v2338
        %v2353 = vpack.c.b16 %v2341, %v2340
        %v2354 = vpack.c.b16 %v2343, %v2342
        %v2355 = vpack.c.b16 %v2345, %v2344
        %v2356 = vpack.c.b16 %v2347, %v2346
        %v2357 = vpack.c.b16 %v2349, %v2348
        %2366 = vmatprep.subr.bf16.mxu0 0
        %2367 = vmatpush1.bf16.msra.mxu0 %v2350
        %2368 = vmatprep.subr.bf16.mxu0 0
        %2369 = vmatpush1.bf16.msra.mxu0 %v2351
        %2370 = vmatprep.subr.bf16.mxu0 0
        %2371 = vmatpush1.bf16.msra.mxu0 %v2352
        %2372 = vmatprep.subr.bf16.mxu0 0
        %2373 = vmatpush1.bf16.msra.mxu0 %v2353
        %2374 = vmatprep.subr.bf16.mxu0 0
        %2375 = vmatpush1.bf16.msra.mxu0 %v2354
        %2376 = vmatprep.subr.bf16.mxu0 0
        %2377 = vmatpush1.bf16.msra.mxu0 %v2355
        %2378 = vmatprep.subr.bf16.mxu0 0
        %2379 = vmatpush1.bf16.msra.mxu0 %v2356
        %2380 = vmatprep.subr.bf16.mxu0 0
        %2381 = vmatpush1.bf16.msra.mxu0 %v2357
        %2382 = vmatprep.subr.bf16.mxu0 0
        %2383 = vmatpush1.bf16.msra.mxu0 0
        %2384 = vmatprep.subr.bf16.mxu0 0
        %2385 = vmatpush1.bf16.msra.mxu0 0
        %2386 = vmatprep.subr.bf16.mxu0 0
        %2387 = vmatpush1.bf16.msra.mxu0 0
        %2388 = vmatprep.subr.bf16.mxu0 0
        %2389 = vmatpush1.bf16.msra.mxu0 0
        %2390 = vmatprep.subr.bf16.mxu0 0
        %2391 = vmatpush1.bf16.msra.mxu0 0
        %2392 = vmatprep.subr.bf16.mxu0 0
        %2393 = vmatpush1.bf16.msra.mxu0 0
        %2394 = vmatprep.subr.bf16.mxu0 0
        %2395 = vmatpush1.bf16.msra.mxu0 0
        %2396 = vmatprep.subr.bf16.mxu0 0
        %2397 = vmatpush1.bf16.msra.mxu0 0
        %2398 = vmatprep.mubr.bf16.mxu0 0
        %2399 = vmatmul.mubr.bf16.gmra.mrb[0].mxu0 %v1961
        %v2400 = vpop.f32.mrb[0].mxu0
        %v2401 = vadd.f32 %v2049, %v2400
        %v2402 = vpop.f32.mrb[0].mxu0
        %v2403 = vpop.f32.mrb[0].mxu0
        %v2404 = vpop.f32.mrb[0].mxu0
        %2405 = vdwg.mxu0
        %v2406 = vpack.c.bf16 %v783, %v783
        %v2407 = vld [vmem:[%s10] sm:$0xf]
        %v2408 = vld [vmem:[%s10 + $0x4] sm:$0xf]
        %v2409 = vld [vmem:[%s10 + $0x8] sm:$0xf]
        %v2410 = vld [vmem:[%s10 + $0xc] sm:$0xf]
        %v2411 = vld [vmem:[%s10 + $0x10] sm:$0xf]
        %v2412 = vld [vmem:[%s10 + $0x14] sm:$0xf]
        %v2413 = vld [vmem:[%s10 + $0x18] sm:$0xf]
        %v2414 = vld [vmem:[%s10 + $0x1c] sm:$0xf]
        %v2415 = vld [vmem:[%s10 + $0x20] sm:$0xf]
        %v2416 = vld [vmem:[%s10 + $0x24] sm:$0xf]
        %v2417 = vld [vmem:[%s10 + $0x28] sm:$0xf]
        %v2418 = vld [vmem:[%s10 + $0x2c] sm:$0xf]
        %v2419 = vld [vmem:[%s10 + $0x30] sm:$0xf]
        %v2420 = vld [vmem:[%s10 + $0x34] sm:$0xf]
        %v2421 = vld [vmem:[%s10 + $0x38] sm:$0xf]
        %v2422 = vld [vmem:[%s10 + $0x3c] sm:$0xf]
        %v2423 = vld [vmem:[%s10 + $0x40] sm:$0xf]
        %v2424 = vld [vmem:[%s10 + $0x44] sm:$0xf]
        %v2425 = vld [vmem:[%s10 + $0x48] sm:$0xf]
        %v2426 = vld [vmem:[%s10 + $0x4c] sm:$0xf]
        %v2427 = vld [vmem:[%s10 + $0x50] sm:$0xf]
        %v2428 = vld [vmem:[%s10 + $0x54] sm:$0xf]
        %v2429 = vld [vmem:[%s10 + $0x58] sm:$0xf]
        %v2430 = vld [vmem:[%s10 + $0x5c] sm:$0xf]
        %v2431 = vld [vmem:[%s10 + $0x60] sm:$0xf]
        %v2432 = vld [vmem:[%s10 + $0x64] sm:$0xf]
        %v2433 = vld [vmem:[%s10 + $0x68] sm:$0xf]
        %v2434 = vld [vmem:[%s10 + $0x6c] sm:$0xf]
        %v2435 = vld [vmem:[%s10 + $0x70] sm:$0xf]
        %v2436 = vld [vmem:[%s10 + $0x74] sm:$0xf]
        %v2437 = vld [vmem:[%s10 + $0x78] sm:$0xf]
        %v2438 = vld [vmem:[%s10 + $0x7c] sm:$0xf]
        %v2439 = vld [vmem:[%s10 + $0x80] sm:$0xf]
        %v2440 = vld [vmem:[%s10 + $0x84] sm:$0xf]
        %v2441 = vld [vmem:[%s10 + $0x88] sm:$0xf]
        %v2442 = vld [vmem:[%s10 + $0x8c] sm:$0xf]
        %v2443 = vld [vmem:[%s10 + $0x90] sm:$0xf]
        %v2444 = vld [vmem:[%s10 + $0x94] sm:$0xf]
        %v2445 = vld [vmem:[%s10 + $0x98] sm:$0xf]
        %v2446 = vld [vmem:[%s10 + $0x9c] sm:$0xf]
        %v2447 = vld [vmem:[%s10 + $0xa0] sm:$0xf]
        %v2448 = vld [vmem:[%s10 + $0xa4] sm:$0xf]
        %v2449 = vld [vmem:[%s10 + $0xa8] sm:$0xf]
        %v2450 = vld [vmem:[%s10 + $0xac] sm:$0xf]
        %v2451 = vld [vmem:[%s10 + $0xb0] sm:$0xf]
        %v2452 = vld [vmem:[%s10 + $0xb4] sm:$0xf]
        %v2453 = vld [vmem:[%s10 + $0xb8] sm:$0xf]
        %v2454 = vld [vmem:[%s10 + $0xbc] sm:$0xf]
        %v2455 = vld [vmem:[%s10 + $0xc0] sm:$0xf]
        %v2456 = vld [vmem:[%s10 + $0xc4] sm:$0xf]
        %v2457 = vld [vmem:[%s10 + $0xc8] sm:$0xf]
        %v2458 = vld [vmem:[%s10 + $0xcc] sm:$0xf]
        %v2459 = vld [vmem:[%s10 + $0xd0] sm:$0xf]
        %v2460 = vld [vmem:[%s10 + $0xd4] sm:$0xf]
        %v2461 = vld [vmem:[%s10 + $0xd8] sm:$0xf]
        %v2462 = vld [vmem:[%s10 + $0xdc] sm:$0xf]
        %v2463 = vld [vmem:[%s10 + $0xe0] sm:$0xf]
        %v2464 = vld [vmem:[%s10 + $0xe4] sm:$0xf]
        %v2465 = vld [vmem:[%s10 + $0xe8] sm:$0xf]
        %v2466 = vld [vmem:[%s10 + $0xec] sm:$0xf]
        %v2467 = vld [vmem:[%s10 + $0xf0] sm:$0xf]
        %v2468 = vld [vmem:[%s10 + $0xf4] sm:$0xf]
        %v2469 = vld [vmem:[%s10 + $0xf8] sm:$0xf]
        %v2470 = vld [vmem:[%s10 + $0xfc] sm:$0xf]
        %v2471 = vld [vmem:[%s11] sm:$0x1]
        %v2472 = vld [vmem:[%s11 + $0x1] sm:$0x1]
        %v2473 = vld [vmem:[%s11 + $0x2] sm:$0x1]
        %v2474 = vld [vmem:[%s11 + $0x3] sm:$0x1]
        %v2479 = vlaneseq
        %v2480 = vshrl.u32 %v2479, 7
        %v2481 = vsub.s32 0, %v2480
        %v2482 = vrot.slane %v2471, %v2481
        %v2483 = vlaneseq
        %v2484 = vshrl.u32 %v2483, 7
        %v2485 = vsub.s32 0, %v2484
        %v2486 = vrot.slane %v2472, %v2485
        %v2487 = vlaneseq
        %v2488 = vshrl.u32 %v2487, 7
        %v2489 = vsub.s32 0, %v2488
        %v2490 = vrot.slane %v2473, %v2489
        %v2491 = vlaneseq
        %v2492 = vshrl.u32 %v2491, 7
        %v2493 = vsub.s32 0, %v2492
        %v2494 = vrot.slane %v2474, %v2493
        %v2515 = vunpack.c.l.b16 %v2407
        %v2516 = vunpack.c.l.b16 %v2408
        %v2517 = vunpack.c.l.b16 %v2409
        %v2518 = vunpack.c.l.b16 %v2410
        %v2519 = vunpack.c.l.b16 %v2411
        %v2520 = vunpack.c.l.b16 %v2412
        %v2521 = vunpack.c.l.b16 %v2413
        %v2522 = vunpack.c.l.b16 %v2414
        %v2523 = vunpack.c.l.b16 %v2415
        %v2524 = vunpack.c.l.b16 %v2416
        %v2525 = vunpack.c.l.b16 %v2417
        %v2526 = vunpack.c.l.b16 %v2418
        %v2527 = vunpack.c.l.b16 %v2419
        %v2528 = vunpack.c.l.b16 %v2420
        %v2529 = vunpack.c.l.b16 %v2421
        %v2530 = vunpack.c.l.b16 %v2422
        %v2531 = vpack.c.b16 %v2516, %v2515
        %v2532 = vpack.c.b16 %v2518, %v2517
        %v2533 = vpack.c.b16 %v2520, %v2519
        %v2534 = vpack.c.b16 %v2522, %v2521
        %v2535 = vpack.c.b16 %v2524, %v2523
        %v2536 = vpack.c.b16 %v2526, %v2525
        %v2537 = vpack.c.b16 %v2528, %v2527
        %v2538 = vpack.c.b16 %v2530, %v2529
        %2547 = vmatprep.subr.bf16.mxu0 0
        %2548 = vmatpush1.bf16.msra.mxu0 %v2531
        %2549 = vmatprep.subr.bf16.mxu0 0
        %2550 = vmatpush1.bf16.msra.mxu0 %v2532
        %2551 = vmatprep.subr.bf16.mxu0 0
        %2552 = vmatpush1.bf16.msra.mxu0 %v2533
        %2553 = vmatprep.subr.bf16.mxu0 0
        %2554 = vmatpush1.bf16.msra.mxu0 %v2534
        %2555 = vmatprep.subr.bf16.mxu0 0
        %2556 = vmatpush1.bf16.msra.mxu0 %v2535
        %2557 = vmatprep.subr.bf16.mxu0 0
        %2558 = vmatpush1.bf16.msra.mxu0 %v2536
        %2559 = vmatprep.subr.bf16.mxu0 0
        %2560 = vmatpush1.bf16.msra.mxu0 %v2537
        %2561 = vmatprep.subr.bf16.mxu0 0
        %2562 = vmatpush1.bf16.msra.mxu0 %v2538
        %2563 = vmatprep.subr.bf16.mxu0 0
        %2564 = vmatpush1.bf16.msra.mxu0 0
        %2565 = vmatprep.subr.bf16.mxu0 0
        %2566 = vmatpush1.bf16.msra.mxu0 0
        %2567 = vmatprep.subr.bf16.mxu0 0
        %2568 = vmatpush1.bf16.msra.mxu0 0
        %2569 = vmatprep.subr.bf16.mxu0 0
        %2570 = vmatpush1.bf16.msra.mxu0 0
        %2571 = vmatprep.subr.bf16.mxu0 0
        %2572 = vmatpush1.bf16.msra.mxu0 0
        %2573 = vmatprep.subr.bf16.mxu0 0
        %2574 = vmatpush1.bf16.msra.mxu0 0
        %2575 = vmatprep.subr.bf16.mxu0 0
        %2576 = vmatpush1.bf16.msra.mxu0 0
        %2577 = vmatprep.subr.bf16.mxu0 0
        %2578 = vmatpush1.bf16.msra.mxu0 0
        %2579 = vmatprep.mubr.bf16.mxu0 0
        %2580 = vmatmul.mubr.bf16.gmra.mrb[0].mxu0 %v2406
        %v2581 = vpop.f32.mrb[0].mxu0
        %v2582 = vadd.f32 %v2482, %v2581
        %v2583 = vpop.f32.mrb[0].mxu0
        %v2584 = vpop.f32.mrb[0].mxu0
        %v2585 = vpop.f32.mrb[0].mxu0
        %2586 = vdwg.mxu0
        %v2603 = vunpack.c.l.b16 %v2423
        %v2604 = vunpack.c.l.b16 %v2424
        %v2605 = vunpack.c.l.b16 %v2425
        %v2606 = vunpack.c.l.b16 %v2426
        %v2607 = vunpack.c.l.b16 %v2427
        %v2608 = vunpack.c.l.b16 %v2428
        %v2609 = vunpack.c.l.b16 %v2429
        %v2610 = vunpack.c.l.b16 %v2430
        %v2611 = vunpack.c.l.b16 %v2431
        %v2612 = vunpack.c.l.b16 %v2432
        %v2613 = vunpack.c.l.b16 %v2433
        %v2614 = vunpack.c.l.b16 %v2434
        %v2615 = vunpack.c.l.b16 %v2435
        %v2616 = vunpack.c.l.b16 %v2436
        %v2617 = vunpack.c.l.b16 %v2437
        %v2618 = vunpack.c.l.b16 %v2438
        %v2619 = vpack.c.b16 %v2604, %v2603
        %v2620 = vpack.c.b16 %v2606, %v2605
        %v2621 = vpack.c.b16 %v2608, %v2607
        %v2622 = vpack.c.b16 %v2610, %v2609
        %v2623 = vpack.c.b16 %v2612, %v2611
        %v2624 = vpack.c.b16 %v2614, %v2613
        %v2625 = vpack.c.b16 %v2616, %v2615
        %v2626 = vpack.c.b16 %v2618, %v2617
        %2635 = vmatprep.subr.bf16.mxu0 0
        %2636 = vmatpush1.bf16.msra.mxu0 %v2619
        %2637 = vmatprep.subr.bf16.mxu0 0
        %2638 = vmatpush1.bf16.msra.mxu0 %v2620
        %2639 = vmatprep.subr.bf16.mxu0 0
        %2640 = vmatpush1.bf16.msra.mxu0 %v2621
        %2641 = vmatprep.subr.bf16.mxu0 0
        %2642 = vmatpush1.bf16.msra.mxu0 %v2622
        %2643 = vmatprep.subr.bf16.mxu0 0
        %2644 = vmatpush1.bf16.msra.mxu0 %v2623
        %2645 = vmatprep.subr.bf16.mxu0 0
        %2646 = vmatpush1.bf16.msra.mxu0 %v2624
        %2647 = vmatprep.subr.bf16.mxu0 0
        %2648 = vmatpush1.bf16.msra.mxu0 %v2625
        %2649 = vmatprep.subr.bf16.mxu0 0
        %2650 = vmatpush1.bf16.msra.mxu0 %v2626
        %2651 = vmatprep.subr.bf16.mxu0 0
        %2652 = vmatpush1.bf16.msra.mxu0 0
        %2653 = vmatprep.subr.bf16.mxu0 0
        %2654 = vmatpush1.bf16.msra.mxu0 0
        %2655 = vmatprep.subr.bf16.mxu0 0
        %2656 = vmatpush1.bf16.msra.mxu0 0
        %2657 = vmatprep.subr.bf16.mxu0 0
        %2658 = vmatpush1.bf16.msra.mxu0 0
        %2659 = vmatprep.subr.bf16.mxu0 0
        %2660 = vmatpush1.bf16.msra.mxu0 0
        %2661 = vmatprep.subr.bf16.mxu0 0
        %2662 = vmatpush1.bf16.msra.mxu0 0
        %2663 = vmatprep.subr.bf16.mxu0 0
        %2664 = vmatpush1.bf16.msra.mxu0 0
        %2665 = vmatprep.subr.bf16.mxu0 0
        %2666 = vmatpush1.bf16.msra.mxu0 0
        %2667 = vmatprep.mubr.bf16.mxu0 0
        %2668 = vmatmul.mubr.bf16.gmra.mrb[0].mxu0 %v2406
        %v2669 = vpop.f32.mrb[0].mxu0
        %v2670 = vadd.f32 %v2486, %v2669
        %v2671 = vpop.f32.mrb[0].mxu0
        %v2672 = vpop.f32.mrb[0].mxu0
        %v2673 = vpop.f32.mrb[0].mxu0
        %2674 = vdwg.mxu0
        %v2691 = vunpack.c.l.b16 %v2439
        %v2692 = vunpack.c.l.b16 %v2440
        %v2693 = vunpack.c.l.b16 %v2441
        %v2694 = vunpack.c.l.b16 %v2442
        %v2695 = vunpack.c.l.b16 %v2443
        %v2696 = vunpack.c.l.b16 %v2444
        %v2697 = vunpack.c.l.b16 %v2445
        %v2698 = vunpack.c.l.b16 %v2446
        %v2699 = vunpack.c.l.b16 %v2447
        %v2700 = vunpack.c.l.b16 %v2448
        %v2701 = vunpack.c.l.b16 %v2449
        %v2702 = vunpack.c.l.b16 %v2450
        %v2703 = vunpack.c.l.b16 %v2451
        %v2704 = vunpack.c.l.b16 %v2452
        %v2705 = vunpack.c.l.b16 %v2453
        %v2706 = vunpack.c.l.b16 %v2454
        %v2707 = vpack.c.b16 %v2692, %v2691
        %v2708 = vpack.c.b16 %v2694, %v2693
        %v2709 = vpack.c.b16 %v2696, %v2695
        %v2710 = vpack.c.b16 %v2698, %v2697
        %v2711 = vpack.c.b16 %v2700, %v2699
        %v2712 = vpack.c.b16 %v2702, %v2701
        %v2713 = vpack.c.b16 %v2704, %v2703
        %v2714 = vpack.c.b16 %v2706, %v2705
        %2723 = vmatprep.subr.bf16.mxu0 0
        %2724 = vmatpush1.bf16.msra.mxu0 %v2707
        %2725 = vmatprep.subr.bf16.mxu0 0
        %2726 = vmatpush1.bf16.msra.mxu0 %v2708
        %2727 = vmatprep.subr.bf16.mxu0 0
        %2728 = vmatpush1.bf16.msra.mxu0 %v2709
        %2729 = vmatprep.subr.bf16.mxu0 0
        %2730 = vmatpush1.bf16.msra.mxu0 %v2710
        %2731 = vmatprep.subr.bf16.mxu0 0
        %2732 = vmatpush1.bf16.msra.mxu0 %v2711
        %2733 = vmatprep.subr.bf16.mxu0 0
        %2734 = vmatpush1.bf16.msra.mxu0 %v2712
        %2735 = vmatprep.subr.bf16.mxu0 0
        %2736 = vmatpush1.bf16.msra.mxu0 %v2713
        %2737 = vmatprep.subr.bf16.mxu0 0
        %2738 = vmatpush1.bf16.msra.mxu0 %v2714
        %2739 = vmatprep.subr.bf16.mxu0 0
        %2740 = vmatpush1.bf16.msra.mxu0 0
        %2741 = vmatprep.subr.bf16.mxu0 0
        %2742 = vmatpush1.bf16.msra.mxu0 0
        %2743 = vmatprep.subr.bf16.mxu0 0
        %2744 = vmatpush1.bf16.msra.mxu0 0
        %2745 = vmatprep.subr.bf16.mxu0 0
        %2746 = vmatpush1.bf16.msra.mxu0 0
        %2747 = vmatprep.subr.bf16.mxu0 0
        %2748 = vmatpush1.bf16.msra.mxu0 0
        %2749 = vmatprep.subr.bf16.mxu0 0
        %2750 = vmatpush1.bf16.msra.mxu0 0
        %2751 = vmatprep.subr.bf16.mxu0 0
        %2752 = vmatpush1.bf16.msra.mxu0 0
        %2753 = vmatprep.subr.bf16.mxu0 0
        %2754 = vmatpush1.bf16.msra.mxu0 0
        %2755 = vmatprep.mubr.bf16.mxu0 0
        %2756 = vmatmul.mubr.bf16.gmra.mrb[0].mxu0 %v2406
        %v2757 = vpop.f32.mrb[0].mxu0
        %v2758 = vadd.f32 %v2490, %v2757
        %v2759 = vpop.f32.mrb[0].mxu0
        %v2760 = vpop.f32.mrb[0].mxu0
        %v2761 = vpop.f32.mrb[0].mxu0
        %2762 = vdwg.mxu0
        %v2779 = vunpack.c.l.b16 %v2455
        %v2780 = vunpack.c.l.b16 %v2456
        %v2781 = vunpack.c.l.b16 %v2457
        %v2782 = vunpack.c.l.b16 %v2458
        %v2783 = vunpack.c.l.b16 %v2459
        %v2784 = vunpack.c.l.b16 %v2460
        %v2785 = vunpack.c.l.b16 %v2461
        %v2786 = vunpack.c.l.b16 %v2462
        %v2787 = vunpack.c.l.b16 %v2463
        %v2788 = vunpack.c.l.b16 %v2464
        %v2789 = vunpack.c.l.b16 %v2465
        %v2790 = vunpack.c.l.b16 %v2466
        %v2791 = vunpack.c.l.b16 %v2467
        %v2792 = vunpack.c.l.b16 %v2468
        %v2793 = vunpack.c.l.b16 %v2469
        %v2794 = vunpack.c.l.b16 %v2470
        %v2795 = vpack.c.b16 %v2780, %v2779
        %v2796 = vpack.c.b16 %v2782, %v2781
        %v2797 = vpack.c.b16 %v2784, %v2783
        %v2798 = vpack.c.b16 %v2786, %v2785
        %v2799 = vpack.c.b16 %v2788, %v2787
        %v2800 = vpack.c.b16 %v2790, %v2789
        %v2801 = vpack.c.b16 %v2792, %v2791
        %v2802 = vpack.c.b16 %v2794, %v2793
        %2811 = vmatprep.subr.bf16.mxu0 0
        %2812 = vmatpush1.bf16.msra.mxu0 %v2795
        %2813 = vmatprep.subr.bf16.mxu0 0
        %2814 = vmatpush1.bf16.msra.mxu0 %v2796
        %2815 = vmatprep.subr.bf16.mxu0 0
        %2816 = vmatpush1.bf16.msra.mxu0 %v2797
        %2817 = vmatprep.subr.bf16.mxu0 0
        %2818 = vmatpush1.bf16.msra.mxu0 %v2798
        %2819 = vmatprep.subr.bf16.mxu0 0
        %2820 = vmatpush1.bf16.msra.mxu0 %v2799
        %2821 = vmatprep.subr.bf16.mxu0 0
        %2822 = vmatpush1.bf16.msra.mxu0 %v2800
        %2823 = vmatprep.subr.bf16.mxu0 0
        %2824 = vmatpush1.bf16.msra.mxu0 %v2801
        %2825 = vmatprep.subr.bf16.mxu0 0
        %2826 = vmatpush1.bf16.msra.mxu0 %v2802
        %2827 = vmatprep.subr.bf16.mxu0 0
        %2828 = vmatpush1.bf16.msra.mxu0 0
        %2829 = vmatprep.subr.bf16.mxu0 0
        %2830 = vmatpush1.bf16.msra.mxu0 0
        %2831 = vmatprep.subr.bf16.mxu0 0
        %2832 = vmatpush1.bf16.msra.mxu0 0
        %2833 = vmatprep.subr.bf16.mxu0 0
        %2834 = vmatpush1.bf16.msra.mxu0 0
        %2835 = vmatprep.subr.bf16.mxu0 0
        %2836 = vmatpush1.bf16.msra.mxu0 0
        %2837 = vmatprep.subr.bf16.mxu0 0
        %2838 = vmatpush1.bf16.msra.mxu0 0
        %2839 = vmatprep.subr.bf16.mxu0 0
        %2840 = vmatpush1.bf16.msra.mxu0 0
        %2841 = vmatprep.subr.bf16.mxu0 0
        %2842 = vmatpush1.bf16.msra.mxu0 0
        %2843 = vmatprep.mubr.bf16.mxu0 0
        %2844 = vmatmul.mubr.bf16.gmra.mrb[0].mxu0 %v2406
        %v2845 = vpop.f32.mrb[0].mxu0
        %v2846 = vadd.f32 %v2494, %v2845
        %v2847 = vpop.f32.mrb[0].mxu0
        %v2848 = vpop.f32.mrb[0].mxu0
        %v2849 = vpop.f32.mrb[0].mxu0
        %2850 = vdwg.mxu0
        %v2851 = vld [vmem:[%s12] sm:$0xf]
        %v2852 = vld [vmem:[%s12 + $0x4] sm:$0xf]
        %v2853 = vld [vmem:[%s12 + $0x8] sm:$0xf]
        %v2854 = vld [vmem:[%s12 + $0xc] sm:$0xf]
        %v2855 = vld [vmem:[%s12 + $0x10] sm:$0xf]
        %v2856 = vld [vmem:[%s12 + $0x14] sm:$0xf]
        %v2857 = vld [vmem:[%s12 + $0x18] sm:$0xf]
        %v2858 = vld [vmem:[%s12 + $0x1c] sm:$0xf]
        %v2859 = vld [vmem:[%s12 + $0x20] sm:$0xf]
        %v2860 = vld [vmem:[%s12 + $0x24] sm:$0xf]
        %v2861 = vld [vmem:[%s12 + $0x28] sm:$0xf]
        %v2862 = vld [vmem:[%s12 + $0x2c] sm:$0xf]
        %v2863 = vld [vmem:[%s12 + $0x30] sm:$0xf]
        %v2864 = vld [vmem:[%s12 + $0x34] sm:$0xf]
        %v2865 = vld [vmem:[%s12 + $0x38] sm:$0xf]
        %v2866 = vld [vmem:[%s12 + $0x3c] sm:$0xf]
        %v2867 = vld [vmem:[%s13] sm:$0x1]
        %v2868 = vpack.c.bf16 %v2137, %v2137
        %v2869 = vpack.c.bf16 %v2225, %v2225
        %v2870 = vpack.c.bf16 %v2313, %v2313
        %v2871 = vpack.c.bf16 %v2401, %v2401
        %v2872 = vpack.c.bf16 %v2582, %v2582
        %v2873 = vpack.c.bf16 %v2670, %v2670
        %v2874 = vpack.c.bf16 %v2758, %v2758
        %v2875 = vpack.c.bf16 %v2846, %v2846
        %v2877 = vsel %vm1255, %v2868, 0
        %v2880 = vsel %vm1255, %v2872, 0
        %2882 = vmatprep.subr.bf16.mxu0 0
        %2883 = vmatpush1.bf16.xpose.msra.mxu0 %v2880
        %2884 = vmatprep.subr.bf16.mxu0 0
        %2885 = vmatpush1.bf16.xpose.msra.mxu0 0
        %2886 = vmatprep.subr.bf16.mxu0 0
        %2887 = vmatpush1.bf16.xpose.msra.mxu0 0
        %2888 = vmatprep.subr.bf16.mxu0 0
        %2889 = vmatpush1.bf16.xpose.msra.mxu0 0
        %2890 = vmatprep.subr.bf16.mxu0 0
        %2891 = vmatpush1.bf16.xpose.msra.mxu0 0
        %2892 = vmatprep.subr.bf16.mxu0 0
        %2893 = vmatpush1.bf16.xpose.msra.mxu0 0
        %2894 = vmatprep.subr.bf16.mxu0 0
        %2895 = vmatpush1.bf16.xpose.msra.mxu0 0
        %2896 = vmatprep.subr.bf16.mxu0 0
        %2897 = vmatpush1.bf16.xpose.msra.mxu0 0
        %2898 = vmatprep.subr.bf16.mxu0 0
        %2899 = vmatpush1.bf16.xpose.msra.mxu0 0
        %2900 = vmatprep.subr.bf16.mxu0 0
        %2901 = vmatpush1.bf16.xpose.msra.mxu0 0
        %2902 = vmatprep.subr.bf16.mxu0 0
        %2903 = vmatpush1.bf16.xpose.msra.mxu0 0
        %2904 = vmatprep.subr.bf16.mxu0 0
        %2905 = vmatpush1.bf16.xpose.msra.mxu0 0
        %2906 = vmatprep.subr.bf16.mxu0 0
        %2907 = vmatpush1.bf16.xpose.msra.mxu0 0
        %2908 = vmatprep.subr.bf16.mxu0 0
        %2909 = vmatpush1.bf16.xpose.msra.mxu0 0
        %2910 = vmatprep.subr.bf16.mxu0 0
        %2911 = vmatpush1.bf16.xpose.msra.mxu0 0
        %2912 = vmatprep.subr.bf16.mxu0 0
        %2913 = vmatpush1.bf16.xpose.msra.mxu0 0
        %2914 = vmatprep.mubr.bf16.mxu0 0
        %2915 = vmatmul.mubr.bf16.gmra.mrb[0].mxu0 %v2877
        %v2916 = vpop.f32.mrb[0].mxu0
        %v2917 = vadd.f32 0.0, %v2916
        %v2918 = vpop.f32.mrb[0].mxu0
        %v2919 = vpop.f32.mrb[0].mxu0
        %v2920 = vpop.f32.mrb[0].mxu0
        %2921 = vdwg.mxu0
        %v2923 = vsel %vm1255, %v2869, 0
        %v2926 = vsel %vm1255, %v2873, 0
        %2928 = vmatprep.subr.bf16.mxu0 0
        %2929 = vmatpush1.bf16.xpose.msra.mxu0 %v2926
        %2930 = vmatprep.subr.bf16.mxu0 0
        %2931 = vmatpush1.bf16.xpose.msra.mxu0 0
        %2932 = vmatprep.subr.bf16.mxu0 0
        %2933 = vmatpush1.bf16.xpose.msra.mxu0 0
        %2934 = vmatprep.subr.bf16.mxu0 0
        %2935 = vmatpush1.bf16.xpose.msra.mxu0 0
        %2936 = vmatprep.subr.bf16.mxu0 0
        %2937 = vmatpush1.bf16.xpose.msra.mxu0 0
        %2938 = vmatprep.subr.bf16.mxu0 0
        %2939 = vmatpush1.bf16.xpose.msra.mxu0 0
        %2940 = vmatprep.subr.bf16.mxu0 0
        %2941 = vmatpush1.bf16.xpose.msra.mxu0 0
        %2942 = vmatprep.subr.bf16.mxu0 0
        %2943 = vmatpush1.bf16.xpose.msra.mxu0 0
        %2944 = vmatprep.subr.bf16.mxu0 0
        %2945 = vmatpush1.bf16.xpose.msra.mxu0 0
        %2946 = vmatprep.subr.bf16.mxu0 0
        %2947 = vmatpush1.bf16.xpose.msra.mxu0 0
        %2948 = vmatprep.subr.bf16.mxu0 0
        %2949 = vmatpush1.bf16.xpose.msra.mxu0 0
        %2950 = vmatprep.subr.bf16.mxu0 0
        %2951 = vmatpush1.bf16.xpose.msra.mxu0 0
        %2952 = vmatprep.subr.bf16.mxu0 0
        %2953 = vmatpush1.bf16.xpose.msra.mxu0 0
        %2954 = vmatprep.subr.bf16.mxu0 0
        %2955 = vmatpush1.bf16.xpose.msra.mxu0 0
        %2956 = vmatprep.subr.bf16.mxu0 0
        %2957 = vmatpush1.bf16.xpose.msra.mxu0 0
        %2958 = vmatprep.subr.bf16.mxu0 0
        %2959 = vmatpush1.bf16.xpose.msra.mxu0 0
        %2960 = vmatprep.mubr.bf16.mxu0 0
        %2961 = vmatmul.mubr.bf16.gmra.mrb[0].mxu0 %v2923
        %v2962 = vpop.f32.mrb[0].mxu0
        %v2963 = vadd.f32 0.0, %v2962
        %v2964 = vpop.f32.mrb[0].mxu0
        %v2965 = vpop.f32.mrb[0].mxu0
        %v2966 = vpop.f32.mrb[0].mxu0
        %2967 = vdwg.mxu0
        %v2969 = vsel %vm1255, %v2870, 0
        %v2972 = vsel %vm1255, %v2874, 0
        %2974 = vmatprep.subr.bf16.mxu0 0
        %2975 = vmatpush1.bf16.xpose.msra.mxu0 %v2972
        %2976 = vmatprep.subr.bf16.mxu0 0
        %2977 = vmatpush1.bf16.xpose.msra.mxu0 0
        %2978 = vmatprep.subr.bf16.mxu0 0
        %2979 = vmatpush1.bf16.xpose.msra.mxu0 0
        %2980 = vmatprep.subr.bf16.mxu0 0
        %2981 = vmatpush1.bf16.xpose.msra.mxu0 0
        %2982 = vmatprep.subr.bf16.mxu0 0
        %2983 = vmatpush1.bf16.xpose.msra.mxu0 0
        %2984 = vmatprep.subr.bf16.mxu0 0
        %2985 = vmatpush1.bf16.xpose.msra.mxu0 0
        %2986 = vmatprep.subr.bf16.mxu0 0
        %2987 = vmatpush1.bf16.xpose.msra.mxu0 0
        %2988 = vmatprep.subr.bf16.mxu0 0
        %2989 = vmatpush1.bf16.xpose.msra.mxu0 0
        %2990 = vmatprep.subr.bf16.mxu0 0
        %2991 = vmatpush1.bf16.xpose.msra.mxu0 0
        %2992 = vmatprep.subr.bf16.mxu0 0
        %2993 = vmatpush1.bf16.xpose.msra.mxu0 0
        %2994 = vmatprep.subr.bf16.mxu0 0
        %2995 = vmatpush1.bf16.xpose.msra.mxu0 0
        %2996 = vmatprep.subr.bf16.mxu0 0
        %2997 = vmatpush1.bf16.xpose.msra.mxu0 0
        %2998 = vmatprep.subr.bf16.mxu0 0
        %2999 = vmatpush1.bf16.xpose.msra.mxu0 0
        %3000 = vmatprep.subr.bf16.mxu0 0
        %3001 = vmatpush1.bf16.xpose.msra.mxu0 0
        %3002 = vmatprep.subr.bf16.mxu0 0
        %3003 = vmatpush1.bf16.xpose.msra.mxu0 0
        %3004 = vmatprep.subr.bf16.mxu0 0
        %3005 = vmatpush1.bf16.xpose.msra.mxu0 0
        %3006 = vmatprep.mubr.bf16.mxu0 0
        %3007 = vmatmul.mubr.bf16.gmra.mrb[0].mxu0 %v2969
        %v3008 = vpop.f32.mrb[0].mxu0
        %v3009 = vadd.f32 0.0, %v3008
        %v3010 = vpop.f32.mrb[0].mxu0
        %v3011 = vpop.f32.mrb[0].mxu0
        %v3012 = vpop.f32.mrb[0].mxu0
        %3013 = vdwg.mxu0
        %v3015 = vsel %vm1255, %v2871, 0
        %v3018 = vsel %vm1255, %v2875, 0
        %3020 = vmatprep.subr.bf16.mxu0 0
        %3021 = vmatpush1.bf16.xpose.msra.mxu0 %v3018
        %3022 = vmatprep.subr.bf16.mxu0 0
        %3023 = vmatpush1.bf16.xpose.msra.mxu0 0
        %3024 = vmatprep.subr.bf16.mxu0 0
        %3025 = vmatpush1.bf16.xpose.msra.mxu0 0
        %3026 = vmatprep.subr.bf16.mxu0 0
        %3027 = vmatpush1.bf16.xpose.msra.mxu0 0
        %3028 = vmatprep.subr.bf16.mxu0 0
        %3029 = vmatpush1.bf16.xpose.msra.mxu0 0
        %3030 = vmatprep.subr.bf16.mxu0 0
        %3031 = vmatpush1.bf16.xpose.msra.mxu0 0
        %3032 = vmatprep.subr.bf16.mxu0 0
        %3033 = vmatpush1.bf16.xpose.msra.mxu0 0
        %3034 = vmatprep.subr.bf16.mxu0 0
        %3035 = vmatpush1.bf16.xpose.msra.mxu0 0
        %3036 = vmatprep.subr.bf16.mxu0 0
        %3037 = vmatpush1.bf16.xpose.msra.mxu0 0
        %3038 = vmatprep.subr.bf16.mxu0 0
        %3039 = vmatpush1.bf16.xpose.msra.mxu0 0
        %3040 = vmatprep.subr.bf16.mxu0 0
        %3041 = vmatpush1.bf16.xpose.msra.mxu0 0
        %3042 = vmatprep.subr.bf16.mxu0 0
        %3043 = vmatpush1.bf16.xpose.msra.mxu0 0
        %3044 = vmatprep.subr.bf16.mxu0 0
        %3045 = vmatpush1.bf16.xpose.msra.mxu0 0
        %3046 = vmatprep.subr.bf16.mxu0 0
        %3047 = vmatpush1.bf16.xpose.msra.mxu0 0
        %3048 = vmatprep.subr.bf16.mxu0 0
        %3049 = vmatpush1.bf16.xpose.msra.mxu0 0
        %3050 = vmatprep.subr.bf16.mxu0 0
        %3051 = vmatpush1.bf16.xpose.msra.mxu0 0
        %3052 = vmatprep.mubr.bf16.mxu0 0
        %3053 = vmatmul.mubr.bf16.gmra.mrb[0].mxu0 %v3015
        %v3054 = vpop.f32.mrb[0].mxu0
        %v3055 = vadd.f32 0.0, %v3054
        %v3056 = vpop.f32.mrb[0].mxu0
        %v3057 = vpop.f32.mrb[0].mxu0
        %v3058 = vpop.f32.mrb[0].mxu0
        %3059 = vdwg.mxu0
        %vm3060 = vcmp.eq.f32.partialorder %v785, 0.0
        %v3061 = vsel %vm3060, 1, 0
        %v3062 = vlaneseq
        %v3063 = vshrl.u32 %v3062, 7
        %v3064 = vsub.s32 0, %v3063
        %v3065 = vrot.slane %v3061, %v3064
        %vm3066 = vcmp.eq.s32.totalorder %v3065, 1
        %v3067 = vsel %vm3066, -1e+09, %v2917
        %v3068 = vsel %vm3066, -1e+09, %v2963
        %v3069 = vsel %vm3066, -1e+09, %v3009
        %v3070 = vsel %vm3066, -1e+09, %v3055
        %v3071 = vsel %vm1456, %v3067, -inf
        %3072 = vmax.xlane.f32.xlu0 %v3071
        %v3073 = vpop.xlane.xlu0 %3072
        %v3074 = vsel %vm1456, %v3068, -inf
        %3075 = vmax.xlane.f32.xlu0 %v3074
        %v3076 = vpop.xlane.xlu0 %3075
        %v3077 = vsel %vm1456, %v3069, -inf
        %3078 = vmax.xlane.f32.xlu0 %v3077
        %v3079 = vpop.xlane.xlu0 %3078
        %v3080 = vsel %vm1456, %v3070, -inf
        %3081 = vmax.xlane.f32.xlu0 %v3080
        %v3082 = vpop.xlane.xlu0 %3081
        %v3083 = vsub.f32 %v3067, %v3073
        %v3084 = vsub.f32 %v3068, %v3076
        %v3085 = vsub.f32 %v3069, %v3079
        %v3086 = vsub.f32 %v3070, %v3082
        %v3087 = vmul.f32 %v3083, 1.442695
        %v3088 = vpow.pop %v3087
        %v3089 = vmul.f32 %v3084, 1.442695
        %v3090 = vpow.pop %v3089
        %v3091 = vmul.f32 %v3085, 1.442695
        %v3092 = vpow.pop %v3091
        %v3093 = vmul.f32 %v3086, 1.442695
        %v3094 = vpow.pop %v3093
        %v3095 = vsel %vm1456, %v3088, 0.0
        %3096 = vadd.xlane.f32.xlu0 %v3095
        %v3097 = vpop.xlane.xlu0 %3096
        %v3098 = vsel %vm1456, %v3090, 0.0
        %3099 = vadd.xlane.f32.xlu0 %v3098
        %v3100 = vpop.xlane.xlu0 %3099
        %v3101 = vsel %vm1456, %v3092, 0.0
        %3102 = vadd.xlane.f32.xlu0 %v3101
        %v3103 = vpop.xlane.xlu0 %3102
        %v3104 = vsel %vm1456, %v3094, 0.0
        %3105 = vadd.xlane.f32.xlu0 %v3104
        %v3106 = vpop.xlane.xlu0 %3105
        %v3107 = vrcp.pop %v3097
        %v3108 = vrcp.pop %v3100
        %v3109 = vrcp.pop %v3103
        %v3110 = vrcp.pop %v3106
        %v3111 = vmul.f32 %v3088, %v3107
        %v3112 = vmul.f32 %v3090, %v3108
        %v3113 = vmul.f32 %v3092, %v3109
        %v3114 = vmul.f32 %v3094, %v3110
        %v3115 = vpack.c.bf16 %v3111, %v3111
        %v3116 = vpack.c.bf16 %v3112, %v3112
        %v3117 = vpack.c.bf16 %v3113, %v3113
        %v3118 = vpack.c.bf16 %v3114, %v3114
        %3120 = vrot.lane.b32.xlu0 %v2872, 96
        %v3121 = vpop.permute.xlu0 %3120
        %v3123 = vsel %vm1456, %v3115, 0
        %v3126 = vsel %vm1510, %v3121, 0
        %3128 = vmatprep.subr.bf16.mxu0 0
        %3129 = vmatpush1.bf16.msra.mxu0 %v3126
        %3130 = vmatprep.subr.bf16.mxu0 0
        %3131 = vmatpush1.bf16.msra.mxu0 0
        %3132 = vmatprep.subr.bf16.mxu0 0
        %3133 = vmatpush1.bf16.msra.mxu0 0
        %3134 = vmatprep.subr.bf16.mxu0 0
        %3135 = vmatpush1.bf16.msra.mxu0 0
        %3136 = vmatprep.subr.bf16.mxu0 0
        %3137 = vmatpush1.bf16.msra.mxu0 0
        %3138 = vmatprep.subr.bf16.mxu0 0
        %3139 = vmatpush1.bf16.msra.mxu0 0
        %3140 = vmatprep.subr.bf16.mxu0 0
        %3141 = vmatpush1.bf16.msra.mxu0 0
        %3142 = vmatprep.subr.bf16.mxu0 0
        %3143 = vmatpush1.bf16.msra.mxu0 0
        %3144 = vmatprep.subr.bf16.mxu0 0
        %3145 = vmatpush1.bf16.msra.mxu0 0
        %3146 = vmatprep.subr.bf16.mxu0 0
        %3147 = vmatpush1.bf16.msra.mxu0 0
        %3148 = vmatprep.subr.bf16.mxu0 0
        %3149 = vmatpush1.bf16.msra.mxu0 0
        %3150 = vmatprep.subr.bf16.mxu0 0
        %3151 = vmatpush1.bf16.msra.mxu0 0
        %3152 = vmatprep.subr.bf16.mxu0 0
        %3153 = vmatpush1.bf16.msra.mxu0 0
        %3154 = vmatprep.subr.bf16.mxu0 0
        %3155 = vmatpush1.bf16.msra.mxu0 0
        %3156 = vmatprep.subr.bf16.mxu0 0
        %3157 = vmatpush1.bf16.msra.mxu0 0
        %3158 = vmatprep.subr.bf16.mxu0 0
        %3159 = vmatpush1.bf16.msra.mxu0 0
        %3160 = vmatprep.mubr.bf16.mxu0 0
        %3161 = vmatmul.mubr.bf16.gmra.mrb[0].mxu0 %v3123
        %v3162 = vpop.f32.mrb[0].mxu0
        %v3163 = vadd.f32 0.0, %v3162
        %v3164 = vpop.f32.mrb[0].mxu0
        %v3165 = vpop.f32.mrb[0].mxu0
        %v3166 = vpop.f32.mrb[0].mxu0
        %3167 = vdwg.mxu0
        %3169 = vrot.lane.b32.xlu0 %v2873, 96
        %v3170 = vpop.permute.xlu0 %3169
        %v3172 = vsel %vm1456, %v3116, 0
        %v3175 = vsel %vm1510, %v3170, 0
        %3177 = vmatprep.subr.bf16.mxu0 0
        %3178 = vmatpush1.bf16.msra.mxu0 %v3175
        %3179 = vmatprep.subr.bf16.mxu0 0
        %3180 = vmatpush1.bf16.msra.mxu0 0
        %3181 = vmatprep.subr.bf16.mxu0 0
        %3182 = vmatpush1.bf16.msra.mxu0 0
        %3183 = vmatprep.subr.bf16.mxu0 0
        %3184 = vmatpush1.bf16.msra.mxu0 0
        %3185 = vmatprep.subr.bf16.mxu0 0
        %3186 = vmatpush1.bf16.msra.mxu0 0
        %3187 = vmatprep.subr.bf16.mxu0 0
        %3188 = vmatpush1.bf16.msra.mxu0 0
        %3189 = vmatprep.subr.bf16.mxu0 0
        %3190 = vmatpush1.bf16.msra.mxu0 0
        %3191 = vmatprep.subr.bf16.mxu0 0
        %3192 = vmatpush1.bf16.msra.mxu0 0
        %3193 = vmatprep.subr.bf16.mxu0 0
        %3194 = vmatpush1.bf16.msra.mxu0 0
        %3195 = vmatprep.subr.bf16.mxu0 0
        %3196 = vmatpush1.bf16.msra.mxu0 0
        %3197 = vmatprep.subr.bf16.mxu0 0
        %3198 = vmatpush1.bf16.msra.mxu0 0
        %3199 = vmatprep.subr.bf16.mxu0 0
        %3200 = vmatpush1.bf16.msra.mxu0 0
        %3201 = vmatprep.subr.bf16.mxu0 0
        %3202 = vmatpush1.bf16.msra.mxu0 0
        %3203 = vmatprep.subr.bf16.mxu0 0
        %3204 = vmatpush1.bf16.msra.mxu0 0
        %3205 = vmatprep.subr.bf16.mxu0 0
        %3206 = vmatpush1.bf16.msra.mxu0 0
        %3207 = vmatprep.subr.bf16.mxu0 0
        %3208 = vmatpush1.bf16.msra.mxu0 0
        %3209 = vmatprep.mubr.bf16.mxu0 0
        %3210 = vmatmul.mubr.bf16.gmra.mrb[0].mxu0 %v3172
        %v3211 = vpop.f32.mrb[0].mxu0
        %v3212 = vadd.f32 0.0, %v3211
        %v3213 = vpop.f32.mrb[0].mxu0
        %v3214 = vpop.f32.mrb[0].mxu0
        %v3215 = vpop.f32.mrb[0].mxu0
        %3216 = vdwg.mxu0
        %3218 = vrot.lane.b32.xlu0 %v2874, 96
        %v3219 = vpop.permute.xlu0 %3218
        %v3221 = vsel %vm1456, %v3117, 0
        %v3224 = vsel %vm1510, %v3219, 0
        %3226 = vmatprep.subr.bf16.mxu0 0
        %3227 = vmatpush1.bf16.msra.mxu0 %v3224
        %3228 = vmatprep.subr.bf16.mxu0 0
        %3229 = vmatpush1.bf16.msra.mxu0 0
        %3230 = vmatprep.subr.bf16.mxu0 0
        %3231 = vmatpush1.bf16.msra.mxu0 0
        %3232 = vmatprep.subr.bf16.mxu0 0
        %3233 = vmatpush1.bf16.msra.mxu0 0
        %3234 = vmatprep.subr.bf16.mxu0 0
        %3235 = vmatpush1.bf16.msra.mxu0 0
        %3236 = vmatprep.subr.bf16.mxu0 0
        %3237 = vmatpush1.bf16.msra.mxu0 0
        %3238 = vmatprep.subr.bf16.mxu0 0
        %3239 = vmatpush1.bf16.msra.mxu0 0
        %3240 = vmatprep.subr.bf16.mxu0 0
        %3241 = vmatpush1.bf16.msra.mxu0 0
        %3242 = vmatprep.subr.bf16.mxu0 0
        %3243 = vmatpush1.bf16.msra.mxu0 0
        %3244 = vmatprep.subr.bf16.mxu0 0
        %3245 = vmatpush1.bf16.msra.mxu0 0
        %3246 = vmatprep.subr.bf16.mxu0 0
        %3247 = vmatpush1.bf16.msra.mxu0 0
        %3248 = vmatprep.subr.bf16.mxu0 0
        %3249 = vmatpush1.bf16.msra.mxu0 0
        %3250 = vmatprep.subr.bf16.mxu0 0
        %3251 = vmatpush1.bf16.msra.mxu0 0
        %3252 = vmatprep.subr.bf16.mxu0 0
        %3253 = vmatpush1.bf16.msra.mxu0 0
        %3254 = vmatprep.subr.bf16.mxu0 0
        %3255 = vmatpush1.bf16.msra.mxu0 0
        %3256 = vmatprep.subr.bf16.mxu0 0
        %3257 = vmatpush1.bf16.msra.mxu0 0
        %3258 = vmatprep.mubr.bf16.mxu0 0
        %3259 = vmatmul.mubr.bf16.gmra.mrb[0].mxu0 %v3221
        %v3260 = vpop.f32.mrb[0].mxu0
        %v3261 = vadd.f32 0.0, %v3260
        %v3262 = vpop.f32.mrb[0].mxu0
        %v3263 = vpop.f32.mrb[0].mxu0
        %v3264 = vpop.f32.mrb[0].mxu0
        %3265 = vdwg.mxu0
        %3267 = vrot.lane.b32.xlu0 %v2875, 96
        %v3268 = vpop.permute.xlu0 %3267
        %v3270 = vsel %vm1456, %v3118, 0
        %v3273 = vsel %vm1510, %v3268, 0
        %3275 = vmatprep.subr.bf16.mxu0 0
        %3276 = vmatpush1.bf16.msra.mxu0 %v3273
        %3277 = vmatprep.subr.bf16.mxu0 0
        %3278 = vmatpush1.bf16.msra.mxu0 0
        %3279 = vmatprep.subr.bf16.mxu0 0
        %3280 = vmatpush1.bf16.msra.mxu0 0
        %3281 = vmatprep.subr.bf16.mxu0 0
        %3282 = vmatpush1.bf16.msra.mxu0 0
        %3283 = vmatprep.subr.bf16.mxu0 0
        %3284 = vmatpush1.bf16.msra.mxu0 0
        %3285 = vmatprep.subr.bf16.mxu0 0
        %3286 = vmatpush1.bf16.msra.mxu0 0
        %3287 = vmatprep.subr.bf16.mxu0 0
        %3288 = vmatpush1.bf16.msra.mxu0 0
        %3289 = vmatprep.subr.bf16.mxu0 0
        %3290 = vmatpush1.bf16.msra.mxu0 0
        %3291 = vmatprep.subr.bf16.mxu0 0
        %3292 = vmatpush1.bf16.msra.mxu0 0
        %3293 = vmatprep.subr.bf16.mxu0 0
        %3294 = vmatpush1.bf16.msra.mxu0 0
        %3295 = vmatprep.subr.bf16.mxu0 0
        %3296 = vmatpush1.bf16.msra.mxu0 0
        %3297 = vmatprep.subr.bf16.mxu0 0
        %3298 = vmatpush1.bf16.msra.mxu0 0
        %3299 = vmatprep.subr.bf16.mxu0 0
        %3300 = vmatpush1.bf16.msra.mxu0 0
        %3301 = vmatprep.subr.bf16.mxu0 0
        %3302 = vmatpush1.bf16.msra.mxu0 0
        %3303 = vmatprep.subr.bf16.mxu0 0
        %3304 = vmatpush1.bf16.msra.mxu0 0
        %3305 = vmatprep.subr.bf16.mxu0 0
        %3306 = vmatpush1.bf16.msra.mxu0 0
        %3307 = vmatprep.mubr.bf16.mxu0 0
        %3308 = vmatmul.mubr.bf16.gmra.mrb[0].mxu0 %v3270
        %v3309 = vpop.f32.mrb[0].mxu0
        %v3310 = vadd.f32 0.0, %v3309
        %v3311 = vpop.f32.mrb[0].mxu0
        %v3312 = vpop.f32.mrb[0].mxu0
        %v3313 = vpop.f32.mrb[0].mxu0
        %3314 = vdwg.mxu0
        %v3315 = vpack.c.bf16 %v3163, %v3163
        %v3316 = vpack.c.bf16 %v3212, %v3212
        %v3317 = vpack.c.bf16 %v3261, %v3261
        %v3318 = vpack.c.bf16 %v3310, %v3310
        %v3323 = vunpack.c.l.b16 %v2851
        %v3324 = vunpack.c.l.b16 %v2852
        %v3325 = vunpack.c.l.b16 %v2853
        %v3326 = vunpack.c.l.b16 %v2854
        %v3327 = vpack.c.b16 %v3324, %v3323
        %v3328 = vpack.c.b16 %v3326, %v3325
        %v3332 = vsel %vm1255, %v3315, 0
        %3334 = vmatprep.subr.bf16.mxu0 0
        %3335 = vmatpush1.bf16.msra.mxu0 %v3327
        %3336 = vmatprep.subr.bf16.mxu0 0
        %3337 = vmatpush1.bf16.msra.mxu0 %v3328
        %3338 = vmatprep.subr.bf16.mxu0 0
        %3339 = vmatpush1.bf16.msra.mxu0 0
        %3340 = vmatprep.subr.bf16.mxu0 0
        %3341 = vmatpush1.bf16.msra.mxu0 0
        %3342 = vmatprep.subr.bf16.mxu0 0
        %3343 = vmatpush1.bf16.msra.mxu0 0
        %3344 = vmatprep.subr.bf16.mxu0 0
        %3345 = vmatpush1.bf16.msra.mxu0 0
        %3346 = vmatprep.subr.bf16.mxu0 0
        %3347 = vmatpush1.bf16.msra.mxu0 0
        %3348 = vmatprep.subr.bf16.mxu0 0
        %3349 = vmatpush1.bf16.msra.mxu0 0
        %3350 = vmatprep.subr.bf16.mxu0 0
        %3351 = vmatpush1.bf16.msra.mxu0 0
        %3352 = vmatprep.subr.bf16.mxu0 0
        %3353 = vmatpush1.bf16.msra.mxu0 0
        %3354 = vmatprep.subr.bf16.mxu0 0
        %3355 = vmatpush1.bf16.msra.mxu0 0
        %3356 = vmatprep.subr.bf16.mxu0 0
        %3357 = vmatpush1.bf16.msra.mxu0 0
        %3358 = vmatprep.subr.bf16.mxu0 0
        %3359 = vmatpush1.bf16.msra.mxu0 0
        %3360 = vmatprep.subr.bf16.mxu0 0
        %3361 = vmatpush1.bf16.msra.mxu0 0
        %3362 = vmatprep.subr.bf16.mxu0 0
        %3363 = vmatpush1.bf16.msra.mxu0 0
        %3364 = vmatprep.subr.bf16.mxu0 0
        %3365 = vmatpush1.bf16.msra.mxu0 0
        %3366 = vmatprep.mubr.bf16.mxu0 0
        %3367 = vmatmul.mubr.bf16.gmra.mrb[0].mxu0 %v3332
        %v3368 = vpop.f32.mrb[0].mxu0
        %v3369 = vadd.f32 0.0, %v3368
        %v3370 = vpop.f32.mrb[0].mxu0
        %v3371 = vpop.f32.mrb[0].mxu0
        %v3372 = vpop.f32.mrb[0].mxu0
        %3373 = vdwg.mxu0
        %v3378 = vunpack.c.l.b16 %v2855
        %v3379 = vunpack.c.l.b16 %v2856
        %v3380 = vunpack.c.l.b16 %v2857
        %v3381 = vunpack.c.l.b16 %v2858
        %v3382 = vpack.c.b16 %v3379, %v3378
        %v3383 = vpack.c.b16 %v3381, %v3380
        %v3387 = vsel %vm1255, %v3316, 0
        %3389 = vmatprep.subr.bf16.mxu0 0
        %3390 = vmatpush1.bf16.msra.mxu0 %v3382
        %3391 = vmatprep.subr.bf16.mxu0 0
        %3392 = vmatpush1.bf16.msra.mxu0 %v3383
        %3393 = vmatprep.subr.bf16.mxu0 0
        %3394 = vmatpush1.bf16.msra.mxu0 0
        %3395 = vmatprep.subr.bf16.mxu0 0
        %3396 = vmatpush1.bf16.msra.mxu0 0
        %3397 = vmatprep.subr.bf16.mxu0 0
        %3398 = vmatpush1.bf16.msra.mxu0 0
        %3399 = vmatprep.subr.bf16.mxu0 0
        %3400 = vmatpush1.bf16.msra.mxu0 0
        %3401 = vmatprep.subr.bf16.mxu0 0
        %3402 = vmatpush1.bf16.msra.mxu0 0
        %3403 = vmatprep.subr.bf16.mxu0 0
        %3404 = vmatpush1.bf16.msra.mxu0 0
        %3405 = vmatprep.subr.bf16.mxu0 0
        %3406 = vmatpush1.bf16.msra.mxu0 0
        %3407 = vmatprep.subr.bf16.mxu0 0
        %3408 = vmatpush1.bf16.msra.mxu0 0
        %3409 = vmatprep.subr.bf16.mxu0 0
        %3410 = vmatpush1.bf16.msra.mxu0 0
        %3411 = vmatprep.subr.bf16.mxu0 0
        %3412 = vmatpush1.bf16.msra.mxu0 0
        %3413 = vmatprep.subr.bf16.mxu0 0
        %3414 = vmatpush1.bf16.msra.mxu0 0
        %3415 = vmatprep.subr.bf16.mxu0 0
        %3416 = vmatpush1.bf16.msra.mxu0 0
        %3417 = vmatprep.subr.bf16.mxu0 0
        %3418 = vmatpush1.bf16.msra.mxu0 0
        %3419 = vmatprep.subr.bf16.mxu0 0
        %3420 = vmatpush1.bf16.msra.mxu0 0
        %3421 = vmatprep.mubr.bf16.mxu0 0
        %3422 = vmatmul.mubr.bf16.gmra.mrb[0].mxu0 %v3387
        %v3423 = vpop.f32.mrb[0].mxu0
        %v3424 = vadd.f32 0.0, %v3423
        %v3425 = vpop.f32.mrb[0].mxu0
        %v3426 = vpop.f32.mrb[0].mxu0
        %v3427 = vpop.f32.mrb[0].mxu0
        %3428 = vdwg.mxu0
        %v3433 = vunpack.c.l.b16 %v2859
        %v3434 = vunpack.c.l.b16 %v2860
        %v3435 = vunpack.c.l.b16 %v2861
        %v3436 = vunpack.c.l.b16 %v2862
        %v3437 = vpack.c.b16 %v3434, %v3433
        %v3438 = vpack.c.b16 %v3436, %v3435
        %v3442 = vsel %vm1255, %v3317, 0
        %3444 = vmatprep.subr.bf16.mxu0 0
        %3445 = vmatpush1.bf16.msra.mxu0 %v3437
        %3446 = vmatprep.subr.bf16.mxu0 0
        %3447 = vmatpush1.bf16.msra.mxu0 %v3438
        %3448 = vmatprep.subr.bf16.mxu0 0
        %3449 = vmatpush1.bf16.msra.mxu0 0
        %3450 = vmatprep.subr.bf16.mxu0 0
        %3451 = vmatpush1.bf16.msra.mxu0 0
        %3452 = vmatprep.subr.bf16.mxu0 0
        %3453 = vmatpush1.bf16.msra.mxu0 0
        %3454 = vmatprep.subr.bf16.mxu0 0
        %3455 = vmatpush1.bf16.msra.mxu0 0
        %3456 = vmatprep.subr.bf16.mxu0 0
        %3457 = vmatpush1.bf16.msra.mxu0 0
        %3458 = vmatprep.subr.bf16.mxu0 0
        %3459 = vmatpush1.bf16.msra.mxu0 0
        %3460 = vmatprep.subr.bf16.mxu0 0
        %3461 = vmatpush1.bf16.msra.mxu0 0
        %3462 = vmatprep.subr.bf16.mxu0 0
        %3463 = vmatpush1.bf16.msra.mxu0 0
        %3464 = vmatprep.subr.bf16.mxu0 0
        %3465 = vmatpush1.bf16.msra.mxu0 0
        %3466 = vmatprep.subr.bf16.mxu0 0
        %3467 = vmatpush1.bf16.msra.mxu0 0
        %3468 = vmatprep.subr.bf16.mxu0 0
        %3469 = vmatpush1.bf16.msra.mxu0 0
        %3470 = vmatprep.subr.bf16.mxu0 0
        %3471 = vmatpush1.bf16.msra.mxu0 0
        %3472 = vmatprep.subr.bf16.mxu0 0
        %3473 = vmatpush1.bf16.msra.mxu0 0
        %3474 = vmatprep.subr.bf16.mxu0 0
        %3475 = vmatpush1.bf16.msra.mxu0 0
        %3476 = vmatprep.mubr.bf16.mxu0 0
        %3477 = vmatmul.mubr.bf16.gmra.mrb[0].mxu0 %v3442
        %v3478 = vpop.f32.mrb[0].mxu0
        %v3479 = vadd.f32 0.0, %v3478
        %v3480 = vpop.f32.mrb[0].mxu0
        %v3481 = vpop.f32.mrb[0].mxu0
        %v3482 = vpop.f32.mrb[0].mxu0
        %3483 = vdwg.mxu0
        %v3488 = vunpack.c.l.b16 %v2863
        %v3489 = vunpack.c.l.b16 %v2864
        %v3490 = vunpack.c.l.b16 %v2865
        %v3491 = vunpack.c.l.b16 %v2866
        %v3492 = vpack.c.b16 %v3489, %v3488
        %v3493 = vpack.c.b16 %v3491, %v3490
        %v3497 = vsel %vm1255, %v3318, 0
        %3499 = vmatprep.subr.bf16.mxu0 0
        %3500 = vmatpush1.bf16.msra.mxu0 %v3492
        %3501 = vmatprep.subr.bf16.mxu0 0
        %3502 = vmatpush1.bf16.msra.mxu0 %v3493
        %3503 = vmatprep.subr.bf16.mxu0 0
        %3504 = vmatpush1.bf16.msra.mxu0 0
        %3505 = vmatprep.subr.bf16.mxu0 0
        %3506 = vmatpush1.bf16.msra.mxu0 0
        %3507 = vmatprep.subr.bf16.mxu0 0
        %3508 = vmatpush1.bf16.msra.mxu0 0
        %3509 = vmatprep.subr.bf16.mxu0 0
        %3510 = vmatpush1.bf16.msra.mxu0 0
        %3511 = vmatprep.subr.bf16.mxu0 0
        %3512 = vmatpush1.bf16.msra.mxu0 0
        %3513 = vmatprep.subr.bf16.mxu0 0
        %3514 = vmatpush1.bf16.msra.mxu0 0
        %3515 = vmatprep.subr.bf16.mxu0 0
        %3516 = vmatpush1.bf16.msra.mxu0 0
        %3517 = vmatprep.subr.bf16.mxu0 0
        %3518 = vmatpush1.bf16.msra.mxu0 0
        %3519 = vmatprep.subr.bf16.mxu0 0
        %3520 = vmatpush1.bf16.msra.mxu0 0
        %3521 = vmatprep.subr.bf16.mxu0 0
        %3522 = vmatpush1.bf16.msra.mxu0 0
        %3523 = vmatprep.subr.bf16.mxu0 0
        %3524 = vmatpush1.bf16.msra.mxu0 0
        %3525 = vmatprep.subr.bf16.mxu0 0
        %3526 = vmatpush1.bf16.msra.mxu0 0
        %3527 = vmatprep.subr.bf16.mxu0 0
        %3528 = vmatpush1.bf16.msra.mxu0 0
        %3529 = vmatprep.subr.bf16.mxu0 0
        %3530 = vmatpush1.bf16.msra.mxu0 0
        %3531 = vmatprep.mubr.bf16.mxu0 0
        %3532 = vmatmul.mubr.bf16.gmra.mrb[0].mxu0 %v3497
        %v3533 = vpop.f32.mrb[0].mxu0
        %v3534 = vadd.f32 0.0, %v3533
        %v3535 = vpop.f32.mrb[0].mxu0
        %v3536 = vpop.f32.mrb[0].mxu0
        %v3537 = vpop.f32.mrb[0].mxu0
        %3538 = vdwg.mxu0
        %v3539 = vadd.f32 %v3369, %v3424
        %v3540 = vadd.f32 %v3539, %v3479
        %v3541 = vadd.f32 %v3540, %v3534
        %v3543 = vlaneseq
        %v3544 = vshrl.u32 %v3543, 7
        %v3545 = vsub.s32 0, %v3544
        %v3546 = vrot.slane %v2867, %v3545
        %v3548 = vadd.f32 %v3541, %v3546
        %v3549 = vadd.f32 %v1960, %v3548
        %v3550 = vld [vmem:[%s20] sm:$0x1]
        %v3551 = vld [vmem:[%s21] sm:$0x1]
        %3552 = vadd.xlane.f32.xlu0 %v3549
        %v3553 = vpop.xlane.xlu0 %3552
        %v3554 = vmul.f32 %v3553, %v1937
        %v3555 = vsub.f32 %v3549, %v3554
        %v3556 = vmul.f32 %v3555, %v3555
        %3557 = vadd.xlane.f32.xlu0 %v3556
        %v3558 = vpop.xlane.xlu0 %3557
        %v3559 = vmul.f32 %v3558, %v1937
        %v3560 = vadd.f32 %v3559, 1e-05
        %v3561 = vrsqrt.pop %v3560
        %v3562 = vmul.f32 %v3555, %v3561
        %v3564 = vlaneseq
        %v3565 = vshrl.u32 %v3564, 7
        %v3566 = vsub.s32 0, %v3565
        %v3567 = vrot.slane %v3550, %v3566
        %v3569 = vmul.f32 %v3562, %v3567
        %v3571 = vlaneseq
        %v3572 = vshrl.u32 %v3571, 7
        %v3573 = vsub.s32 0, %v3572
        %v3574 = vrot.slane %v3551, %v3573
        %v3576 = vadd.f32 %v3569, %v3574
        %v3577 = vpack.c.bf16 %v3576, %v3576
        %v3578 = vld [vmem:[%s14] sm:$0xff]
        %v3579 = vld [vmem:[%s14 + $0x8] sm:$0xff]
        %v3580 = vld [vmem:[%s14 + $0x10] sm:$0xff]
        %v3581 = vld [vmem:[%s14 + $0x18] sm:$0xff]
        %v3582 = vld [vmem:[%s14 + $0x20] sm:$0xff]
        %v3583 = vld [vmem:[%s14 + $0x28] sm:$0xff]
        %v3584 = vld [vmem:[%s14 + $0x30] sm:$0xff]
        %v3585 = vld [vmem:[%s14 + $0x38] sm:$0xff]
        %v3586 = vld [vmem:[%s14 + $0x40] sm:$0xff]
        %v3587 = vld [vmem:[%s14 + $0x48] sm:$0xff]
        %v3588 = vld [vmem:[%s14 + $0x50] sm:$0xff]
        %v3589 = vld [vmem:[%s14 + $0x58] sm:$0xff]
        %v3590 = vld [vmem:[%s14 + $0x60] sm:$0xff]
        %v3591 = vld [vmem:[%s14 + $0x68] sm:$0xff]
        %v3592 = vld [vmem:[%s14 + $0x70] sm:$0xff]
        %v3593 = vld [vmem:[%s14 + $0x78] sm:$0xff]
        %v3594 = vld [vmem:[%s15] sm:$0x3]
        %v3596 = vlaneseq
        %v3597 = vshrl.u32 %v3596, 7
        %v3598 = vsub.s32 0, %v3597
        %v3599 = vrot.slane %v3594, %v3598
        %v3600 = vlaneseq
        %v3601 = vshrl.u32 %v3600, 7
        %v3602 = vsub.s32 1, %v3601
        %v3603 = vrot.slane %v3594, %v3602
        %v3622 = vunpack.c.l.b16 %v3578
        %v3623 = vunpack.c.h.b16 %v3578
        %v3624 = vunpack.c.l.b16 %v3579
        %v3625 = vunpack.c.h.b16 %v3579
        %v3626 = vunpack.c.l.b16 %v3580
        %v3627 = vunpack.c.h.b16 %v3580
        %v3628 = vunpack.c.l.b16 %v3581
        %v3629 = vunpack.c.h.b16 %v3581
        %v3630 = vunpack.c.l.b16 %v3582
        %v3631 = vunpack.c.h.b16 %v3582
        %v3632 = vunpack.c.l.b16 %v3583
        %v3633 = vunpack.c.h.b16 %v3583
        %v3634 = vunpack.c.l.b16 %v3584
        %v3635 = vunpack.c.h.b16 %v3584
        %v3636 = vunpack.c.l.b16 %v3585
        %v3637 = vunpack.c.h.b16 %v3585
        %v3638 = vunpack.c.l.b16 %v3586
        %v3639 = vunpack.c.h.b16 %v3586
        %v3640 = vunpack.c.l.b16 %v3587
        %v3641 = vunpack.c.h.b16 %v3587
        %v3642 = vunpack.c.l.b16 %v3588
        %v3643 = vunpack.c.h.b16 %v3588
        %v3644 = vunpack.c.l.b16 %v3589
        %v3645 = vunpack.c.h.b16 %v3589
        %v3646 = vunpack.c.l.b16 %v3590
        %v3647 = vunpack.c.h.b16 %v3590
        %v3648 = vunpack.c.l.b16 %v3591
        %v3649 = vunpack.c.h.b16 %v3591
        %v3650 = vunpack.c.l.b16 %v3592
        %v3651 = vunpack.c.h.b16 %v3592
        %v3652 = vunpack.c.l.b16 %v3593
        %v3653 = vunpack.c.h.b16 %v3593
        %v3654 = vpack.c.b16 %v3624, %v3622
        %v3655 = vpack.c.b16 %v3625, %v3623
        %v3656 = vpack.c.b16 %v3628, %v3626
        %v3657 = vpack.c.b16 %v3629, %v3627
        %v3658 = vpack.c.b16 %v3632, %v3630
        %v3659 = vpack.c.b16 %v3633, %v3631
        %v3660 = vpack.c.b16 %v3636, %v3634
        %v3661 = vpack.c.b16 %v3637, %v3635
        %v3662 = vpack.c.b16 %v3640, %v3638
        %v3663 = vpack.c.b16 %v3641, %v3639
        %v3664 = vpack.c.b16 %v3644, %v3642
        %v3665 = vpack.c.b16 %v3645, %v3643
        %v3666 = vpack.c.b16 %v3648, %v3646
        %v3667 = vpack.c.b16 %v3649, %v3647
        %v3668 = vpack.c.b16 %v3652, %v3650
        %v3669 = vpack.c.b16 %v3653, %v3651
        %3686 = vmatprep.subr.bf16.mxu0 %v3655
        %3687 = vmatpush1.bf16.msra.mxu0 %v3654
        %3688 = vmatprep.subr.bf16.mxu0 %v3657
        %3689 = vmatpush1.bf16.msra.mxu0 %v3656
        %3690 = vmatprep.subr.bf16.mxu0 %v3659
        %3691 = vmatpush1.bf16.msra.mxu0 %v3658
        %3692 = vmatprep.subr.bf16.mxu0 %v3661
        %3693 = vmatpush1.bf16.msra.mxu0 %v3660
        %3694 = vmatprep.subr.bf16.mxu0 %v3663
        %3695 = vmatpush1.bf16.msra.mxu0 %v3662
        %3696 = vmatprep.subr.bf16.mxu0 %v3665
        %3697 = vmatpush1.bf16.msra.mxu0 %v3664
        %3698 = vmatprep.subr.bf16.mxu0 %v3667
        %3699 = vmatpush1.bf16.msra.mxu0 %v3666
        %3700 = vmatprep.subr.bf16.mxu0 %v3669
        %3701 = vmatpush1.bf16.msra.mxu0 %v3668
        %3702 = vmatprep.subr.bf16.mxu0 0
        %3703 = vmatpush1.bf16.msra.mxu0 0
        %3704 = vmatprep.subr.bf16.mxu0 0
        %3705 = vmatpush1.bf16.msra.mxu0 0
        %3706 = vmatprep.subr.bf16.mxu0 0
        %3707 = vmatpush1.bf16.msra.mxu0 0
        %3708 = vmatprep.subr.bf16.mxu0 0
        %3709 = vmatpush1.bf16.msra.mxu0 0
        %3710 = vmatprep.subr.bf16.mxu0 0
        %3711 = vmatpush1.bf16.msra.mxu0 0
        %3712 = vmatprep.subr.bf16.mxu0 0
        %3713 = vmatpush1.bf16.msra.mxu0 0
        %3714 = vmatprep.subr.bf16.mxu0 0
        %3715 = vmatpush1.bf16.msra.mxu0 0
        %3716 = vmatprep.subr.bf16.mxu0 0
        %3717 = vmatpush1.bf16.msra.mxu0 0
        %3718 = vmatprep.mubr.bf16.mxu0 0
        %3719 = vmatmul.mubr.bf16.gmra.mrb[0].mxu0 %v3577
        %v3720 = vpop.f32.mrb[0].mxu0
        %v3721 = vadd.f32 %v3599, %v3720
        %v3722 = vpop.f32.mrb[0].mxu0
        %v3723 = vadd.f32 %v3603, %v3722
        %v3724 = vpop.f32.mrb[0].mxu0
        %v3725 = vpop.f32.mrb[0].mxu0
        %3726 = vdwg.mxu0
        %v3727 = vmax.f32 %v3721, 0.0
        %v3728 = vmax.f32 %v3723, 0.0
        %v3729 = vpack.c.bf16 %v3727, %v3727
        %v3730 = vpack.c.bf16 %v3728, %v3728
        %v3731 = vld [vmem:[%s16] sm:$0xf]
        %v3732 = vld [vmem:[%s16 + $0x4] sm:$0xf]
        %v3733 = vld [vmem:[%s16 + $0x8] sm:$0xf]
        %v3734 = vld [vmem:[%s16 + $0xc] sm:$0xf]
        %v3735 = vld [vmem:[%s16 + $0x10] sm:$0xf]
        %v3736 = vld [vmem:[%s16 + $0x14] sm:$0xf]
        %v3737 = vld [vmem:[%s16 + $0x18] sm:$0xf]
        %v3738 = vld [vmem:[%s16 + $0x1c] sm:$0xf]
        %v3739 = vld [vmem:[%s16 + $0x20] sm:$0xf]
        %v3740 = vld [vmem:[%s16 + $0x24] sm:$0xf]
        %v3741 = vld [vmem:[%s16 + $0x28] sm:$0xf]
        %v3742 = vld [vmem:[%s16 + $0x2c] sm:$0xf]
        %v3743 = vld [vmem:[%s16 + $0x30] sm:$0xf]
        %v3744 = vld [vmem:[%s16 + $0x34] sm:$0xf]
        %v3745 = vld [vmem:[%s16 + $0x38] sm:$0xf]
        %v3746 = vld [vmem:[%s16 + $0x3c] sm:$0xf]
        %v3747 = vld [vmem:[%s16 + $0x40] sm:$0xf]
        %v3748 = vld [vmem:[%s16 + $0x44] sm:$0xf]
        %v3749 = vld [vmem:[%s16 + $0x48] sm:$0xf]
        %v3750 = vld [vmem:[%s16 + $0x4c] sm:$0xf]
        %v3751 = vld [vmem:[%s16 + $0x50] sm:$0xf]
        %v3752 = vld [vmem:[%s16 + $0x54] sm:$0xf]
        %v3753 = vld [vmem:[%s16 + $0x58] sm:$0xf]
        %v3754 = vld [vmem:[%s16 + $0x5c] sm:$0xf]
        %v3755 = vld [vmem:[%s16 + $0x60] sm:$0xf]
        %v3756 = vld [vmem:[%s16 + $0x64] sm:$0xf]
        %v3757 = vld [vmem:[%s16 + $0x68] sm:$0xf]
        %v3758 = vld [vmem:[%s16 + $0x6c] sm:$0xf]
        %v3759 = vld [vmem:[%s16 + $0x70] sm:$0xf]
        %v3760 = vld [vmem:[%s16 + $0x74] sm:$0xf]
        %v3761 = vld [vmem:[%s16 + $0x78] sm:$0xf]
        %v3762 = vld [vmem:[%s16 + $0x7c] sm:$0xf]
        %v3763 = vld [vmem:[%s17] sm:$0x1]
        %v3765 = vlaneseq
        %v3766 = vshrl.u32 %v3765, 7
        %v3767 = vsub.s32 0, %v3766
        %v3768 = vrot.slane %v3763, %v3767
        %v3802 = vunpack.c.l.b16 %v3731
        %v3803 = vunpack.c.l.b16 %v3732
        %v3804 = vunpack.c.l.b16 %v3733
        %v3805 = vunpack.c.l.b16 %v3734
        %v3806 = vunpack.c.l.b16 %v3735
        %v3807 = vunpack.c.l.b16 %v3736
        %v3808 = vunpack.c.l.b16 %v3737
        %v3809 = vunpack.c.l.b16 %v3738
        %v3810 = vunpack.c.l.b16 %v3739
        %v3811 = vunpack.c.l.b16 %v3740
        %v3812 = vunpack.c.l.b16 %v3741
        %v3813 = vunpack.c.l.b16 %v3742
        %v3814 = vunpack.c.l.b16 %v3743
        %v3815 = vunpack.c.l.b16 %v3744
        %v3816 = vunpack.c.l.b16 %v3745
        %v3817 = vunpack.c.l.b16 %v3746
        %v3818 = vunpack.c.l.b16 %v3747
        %v3819 = vunpack.c.l.b16 %v3748
        %v3820 = vunpack.c.l.b16 %v3749
        %v3821 = vunpack.c.l.b16 %v3750
        %v3822 = vunpack.c.l.b16 %v3751
        %v3823 = vunpack.c.l.b16 %v3752
        %v3824 = vunpack.c.l.b16 %v3753
        %v3825 = vunpack.c.l.b16 %v3754
        %v3826 = vunpack.c.l.b16 %v3755
        %v3827 = vunpack.c.l.b16 %v3756
        %v3828 = vunpack.c.l.b16 %v3757
        %v3829 = vunpack.c.l.b16 %v3758
        %v3830 = vunpack.c.l.b16 %v3759
        %v3831 = vunpack.c.l.b16 %v3760
        %v3832 = vunpack.c.l.b16 %v3761
        %v3833 = vunpack.c.l.b16 %v3762
        %v3834 = vpack.c.b16 %v3803, %v3802
        %v3835 = vpack.c.b16 %v3805, %v3804
        %v3836 = vpack.c.b16 %v3807, %v3806
        %v3837 = vpack.c.b16 %v3809, %v3808
        %v3838 = vpack.c.b16 %v3811, %v3810
        %v3839 = vpack.c.b16 %v3813, %v3812
        %v3840 = vpack.c.b16 %v3815, %v3814
        %v3841 = vpack.c.b16 %v3817, %v3816
        %v3842 = vpack.c.b16 %v3819, %v3818
        %v3843 = vpack.c.b16 %v3821, %v3820
        %v3844 = vpack.c.b16 %v3823, %v3822
        %v3845 = vpack.c.b16 %v3825, %v3824
        %v3846 = vpack.c.b16 %v3827, %v3826
        %v3847 = vpack.c.b16 %v3829, %v3828
        %v3848 = vpack.c.b16 %v3831, %v3830
        %v3849 = vpack.c.b16 %v3833, %v3832
        %3866 = vmatprep.subr.bf16.mxu0 0
        %3867 = vmatpush1.bf16.msra.mxu0 %v3834
        %3868 = vmatprep.subr.bf16.mxu0 0
        %3869 = vmatpush1.bf16.msra.mxu0 %v3835
        %3870 = vmatprep.subr.bf16.mxu0 0
        %3871 = vmatpush1.bf16.msra.mxu0 %v3836
        %3872 = vmatprep.subr.bf16.mxu0 0
        %3873 = vmatpush1.bf16.msra.mxu0 %v3837
        %3874 = vmatprep.subr.bf16.mxu0 0
        %3875 = vmatpush1.bf16.msra.mxu0 %v3838
        %3876 = vmatprep.subr.bf16.mxu0 0
        %3877 = vmatpush1.bf16.msra.mxu0 %v3839
        %3878 = vmatprep.subr.bf16.mxu0 0
        %3879 = vmatpush1.bf16.msra.mxu0 %v3840
        %3880 = vmatprep.subr.bf16.mxu0 0
        %3881 = vmatpush1.bf16.msra.mxu0 %v3841
        %3882 = vmatprep.subr.bf16.mxu0 0
        %3883 = vmatpush1.bf16.msra.mxu0 %v3842
        %3884 = vmatprep.subr.bf16.mxu0 0
        %3885 = vmatpush1.bf16.msra.mxu0 %v3843
        %3886 = vmatprep.subr.bf16.mxu0 0
        %3887 = vmatpush1.bf16.msra.mxu0 %v3844
        %3888 = vmatprep.subr.bf16.mxu0 0
        %3889 = vmatpush1.bf16.msra.mxu0 %v3845
        %3890 = vmatprep.subr.bf16.mxu0 0
        %3891 = vmatpush1.bf16.msra.mxu0 %v3846
        %3892 = vmatprep.subr.bf16.mxu0 0
        %3893 = vmatpush1.bf16.msra.mxu0 %v3847
        %3894 = vmatprep.subr.bf16.mxu0 0
        %3895 = vmatpush1.bf16.msra.mxu0 %v3848
        %3896 = vmatprep.subr.bf16.mxu0 0
        %3897 = vmatpush1.bf16.msra.mxu0 %v3849
        %3898 = vmatprep.mubr.bf16.mxu0 %v3730
        %3899 = vmatmul.mubr.bf16.gmra.mrb[0].mxu0 %v3729
        %v3900 = vpop.f32.mrb[0].mxu0
        %v3901 = vadd.f32 %v3768, %v3900
        %v3902 = vpop.f32.mrb[0].mxu0
        %v3903 = vpop.f32.mrb[0].mxu0
        %v3904 = vpop.f32.mrb[0].mxu0
        %3905 = vdwg.mxu0
        %v3906 = vadd.f32 %v3576, %v3901
        %v3907 = vld [vmem:[%s22] sm:$0x1]
        %v3908 = vld [vmem:[%s23] sm:$0x1]
        %3909 = vadd.xlane.f32.xlu0 %v3906
        %v3910 = vpop.xlane.xlu0 %3909
        %v3911 = vmul.f32 %v3910, %v1937
        %v3912 = vsub.f32 %v3906, %v3911
        %v3913 = vmul.f32 %v3912, %v3912
        %3914 = vadd.xlane.f32.xlu0 %v3913
        %v3915 = vpop.xlane.xlu0 %3914
        %v3916 = vmul.f32 %v3915, %v1937
        %v3917 = vadd.f32 %v3916, 1e-05
        %v3918 = vrsqrt.pop %v3917
        %v3919 = vmul.f32 %v3912, %v3918
        %v3921 = vlaneseq
        %v3922 = vshrl.u32 %v3921, 7
        %v3923 = vsub.s32 0, %v3922
        %v3924 = vrot.slane %v3907, %v3923
        %v3926 = vmul.f32 %v3919, %v3924
        %v3928 = vlaneseq
        %v3929 = vshrl.u32 %v3928, 7
        %v3930 = vsub.s32 0, %v3929
        %v3931 = vrot.slane %v3908, %v3930
        %v3933 = vadd.f32 %v3926, %v3931
        %3934 = vst [vmem:[%s765] sm:$0xff] %v3933
        %s3935 = sand.u32 %s570, 1
        %s3936 = scalar_lea.sflag [#allocation3], %s3935
        %s3937 = sand.u32 %s570, 1
        %s3938 = smul.addr %s3937, 8
        %s3939 = scalar_lea.vmem [#allocation2], %s3938
        // Predicated region
        $region117: #{tpu_custom_call.1} parent=115 // pred_check
          %p3940 = pneg %p580
        $region118: #{tpu_custom_call.1} parent=115 // pred_check_branch
          %3942 = sbr.rel (%p3940) target = $region120
        $region119: #{tpu_custom_call.1} parent=115 // pred_region
          %s3944 = ssub.s32 128, 128
          %3945 = vsyncadd %s3936, %s3944
          %s3946 = smul.addr %s38, 128
          %s3947 = scalar_lea.hbm %s24, %s3946
          %s3949 = sshll.u32 %s3939, 4
          %s3950 = int_to_ptr.vmem [resolvable:$true] %s3949
          %3952 = dma.vmem_to_hbm [thread:$0]  %s3950, 128, %s3947, %s3936
        $region120: #{tpu_custom_call.1} parent=115 // pred_fallthru
          _
      $region116: #{tpu_custom_call.1} parent=5 // pred_fallthru
        _
      %p3953 = scmp.le.s32.totalorder 2, %s33
      // Predicated region
      $region121: #{tpu_custom_call.1} parent=5 // pred_check
        %p3954 = pneg %p3953
      $region122: #{tpu_custom_call.1} parent=5 // pred_check_branch
        %3956 = sbr.rel (%p3954) target = $region124
      $region123: #{tpu_custom_call.1} parent=5 // pred_region
        %s3957 = ssub.s32 %s33, 2
        // Predicated region
        $region125: #{tpu_custom_call.1} parent=123 // pred_check
          %p3958 = pneg %p586
        $region126: #{tpu_custom_call.1} parent=123 // pred_check_branch
          %3960 = sbr.rel (%p3958) target = $region128
        $region127: #{tpu_custom_call.1} parent=123 // pred_region
          %s3961 = sand.u32 %s571, 1
          %s3962 = scalar_lea.sflag [#allocation3], %s3961
          %s3963 = sand.u32 %s571, 1
          %s3964 = smul.addr %s3963, 8
          %s3965 = scalar_lea.vmem [#allocation2], %s3964
          %3966 = dma.done %s3962, 128
        $region128: #{tpu_custom_call.1} parent=123 // pred_fallthru
          _
      $region124: #{tpu_custom_call.1} parent=5 // pred_fallthru
        _
    $region6: #{tpu_custom_call.1} parent=1 // loop_footer
      %s37 = sadd.s32 1, %s33
    $region7: #{tpu_custom_call.1} parent=1 // loop_footer_branch
      %32 = sbr.rel target = $region3
    $region8: #{tpu_custom_call.1} parent=1 // loop_exit
      _
    %3967 = vsyncpa [#allocation3], 1
    %s3968 = scalar_lea.sflag [#allocation3], 1
    %3969 = vsyncpa %s3968, 1

</llo_original>
